<compile_context>
chip_gen: v6e
topology: v6e:2x2x1
jax: 0.10.0
libtpu: 0.0.40
codegen_flags: <defaults>
</compile_context>

<pallas_src>
import jax
import jax.numpy as jnp
from jax.experimental import pallas as pl
from jax.experimental.pallas import tpu as pltpu

SEQ = 8        # max sequence length
BATCH = 8      # batch size
EMB = 16       # embedding dim == LSTM input size
HIDDEN = 32    # LSTM hidden size (power of two -> in-kernel shift/mask expansion)
VOCAB = 50     # embedding rows
DENSE1 = 128   # Dense1 output features
NCLASS = 3     # Dense2 output features (logits)
NPAD = 128     # lane-padded width for the final logits tile

assert HIDDEN & (HIDDEN - 1) == 0, "in-kernel expansion matrices assume power-of-two HIDDEN"


def malstm_fused_kernel(x_ref, wih_ref, whh_ref, b_ref,
                        w1_hbm, b1_ref, w2_hbm, b2_ref,
                        out_ref,
                        xg_ref, w1_vmem, w2_vmem, dma_sem):
    """Fused shared-weight LSTM + similarity head.

    x_ref:   (S*2B, E)  VMEM  both embedded sequences, row t*2B + b
    wih_ref: (E, 4H)    VMEM  weight_ih_l0, transposed
    whh_ref: (H, 4H)    VMEM  weight_hh_l0, transposed
    b_ref:   (1, 4H)    VMEM  bias_ih_l0 + bias_hh_l0
    w1_hbm:  (H*H, 128) HBM   Dense1 weight^T   (manual DMA, overlapped)
    b1_ref:  (1, 128)   VMEM
    w2_hbm:  (128, NPAD)HBM   Dense2 weight^T, lane-padded (manual DMA, overlapped)
    b2_ref:  (1, NPAD)  VMEM
    out_ref: (B, NPAD)  VMEM  padded logits (first NCLASS columns real)
    xg_ref, w1_vmem, w2_vmem: VMEM scratch; dma_sem: DMA semaphores (2,)
    """
    S, B, B2, H = SEQ, BATCH, 2 * BATCH, HIDDEN

    # --- kick off head-weight DMAs; they complete under the serial recurrence below ---
    w1_cp = pltpu.make_async_copy(w1_hbm, w1_vmem, dma_sem.at[0])
    w2_cp = pltpu.make_async_copy(w2_hbm, w2_vmem, dma_sem.at[1])
    w1_cp.start()
    w2_cp.start()

    wih = wih_ref[...]
    whh = whh_ref[...]
    bias = b_ref[...]

    # --- input projection for ALL timesteps as one (S*2B, E)@(E, 4H) matmul, staged in VMEM ---
    xg_ref[...] = jnp.dot(x_ref[...], wih, preferred_element_type=jnp.float32) + bias

    # --- recurrence: h, c live in vregs; loop fully unrolled (S is static) ---
    h = jnp.zeros((B2, H), jnp.float32)
    c = jnp.zeros((B2, H), jnp.float32)
    for t in range(S):
        gates = xg_ref[t * B2:(t + 1) * B2, :] + jnp.dot(
            h, whh, preferred_element_type=jnp.float32)          # (2B, 4H)
        sg = jax.nn.sigmoid(gates)                                # one full-width EUP pass
        i_g = sg[:, 0 * H:1 * H]
        f_g = sg[:, 1 * H:2 * H]
        o_g = sg[:, 3 * H:4 * H]
        g_g = jnp.tanh(gates[:, 2 * H:3 * H])
        c = f_g * c + i_g * g_g
        h = o_g * jnp.tanh(c)

    h1 = h[:B, :]        # (B, H) last hidden of lstm_1
    h2 = h[B:, :]        # (B, H) last hidden of lstm_2

    # --- similarity: sim[b, i*H+j] = h1[b, i] * h2[b, j], lane-dense via MXU ---
    # Expansion matrices generated in-kernel (no HBM traffic): H is a power of two so
    # k // H and k % H are a shift and a mask.
    shift = HIDDEN.bit_length() - 1
    row = jax.lax.broadcasted_iota(jnp.int32, (H, H * H), 0)
    col = jax.lax.broadcasted_iota(jnp.int32, (H, H * H), 1)
    rep = (jnp.right_shift(col, shift) == row).astype(jnp.float32)   # (H, H*H)
    til = (jnp.bitwise_and(col, H - 1) == row).astype(jnp.float32)   # (H, H*H)

    a = jnp.dot(h1, rep, preferred_element_type=jnp.float32)         # a[b,k] = h1[b, k//H]
    t_ = jnp.dot(h2, til, preferred_element_type=jnp.float32)        # t[b,k] = h2[b, k%H]
    sim = a * t_                                                      # (B, H*H)

    # nn.Softmax() with implicit dim -> dim=0 (batch) for the 3-D sim tensor.
    m = jnp.max(sim, axis=0, keepdims=True)
    e = jnp.exp(sim - m)
    align = e * (1.0 / jnp.sum(e, axis=0, keepdims=True))

    v = jnp.maximum(align * sim, 0.0)                                 # ReLU

    # --- head weights are needed only now: complete the overlapped DMAs ---
    w1_cp.wait()
    w2_cp.wait()

    v = jnp.dot(v, w1_vmem[...], preferred_element_type=jnp.float32) + b1_ref[...]
    v = jnp.maximum(v, 0.0)                                           # ReLU
    out_ref[...] = (jnp.dot(v, w2_vmem[...], preferred_element_type=jnp.float32)
                    + b2_ref[...])


def run_fused(x2d, p):
    """x2d: (S*2B, E) float32; p: kernel-ready param dict."""
    S, B2, E, H = SEQ, 2 * BATCH, EMB, HIDDEN
    return pl.pallas_call(
        malstm_fused_kernel,
        out_shape=jax.ShapeDtypeStruct((BATCH, NPAD), jnp.float32),
        grid=(1,),
        in_specs=[
            pl.BlockSpec((S * B2, E), lambda i: (0, 0)),       # x2d
            pl.BlockSpec((E, 4 * H), lambda i: (0, 0)),        # wih_t
            pl.BlockSpec((H, 4 * H), lambda i: (0, 0)),        # whh_t
            pl.BlockSpec((1, 4 * H), lambda i: (0, 0)),        # bias
            pl.BlockSpec(memory_space=pl.ANY),                 # w1_t   (HBM, manual DMA)
            pl.BlockSpec((1, DENSE1), lambda i: (0, 0)),       # b1
            pl.BlockSpec(memory_space=pl.ANY),                 # w2_pad (HBM, manual DMA)
            pl.BlockSpec((1, NPAD), lambda i: (0, 0)),         # b2_pad
        ],
        out_specs=pl.BlockSpec((BATCH, NPAD), lambda i: (0, 0)),
        scratch_shapes=[
            pltpu.VMEM((S * B2, 4 * H), jnp.float32),          # xg staging (128,128)
            pltpu.VMEM((H * H, DENSE1), jnp.float32),          # Dense1 weight
            pltpu.VMEM((DENSE1, NPAD), jnp.float32),           # Dense2 weight (padded)
            pltpu.SemaphoreType.DMA((2,)),
        ],
        compiler_params=pltpu.CompilerParams(dimension_semantics=("arbitrary",)),
    )(x2d, p["wih_t"], p["whh_t"], p["bias"], p["w1_t"], p["b1"], p["w2_pad"], p["b2_pad"])


def init_params(key):
    ks = jax.random.split(key, 8)

    def xavier(k, shape):
        fan_out, fan_in = shape
        std = (2.0 / (fan_in + fan_out)) ** 0.5
        return std * jax.random.normal(k, shape, dtype=jnp.float32)

    emb = 0.1 * jax.random.normal(ks[0], (VOCAB, EMB), dtype=jnp.float32)
    # LSTM params: xavier-normal weights, zero biases; lstm_2 is a copy of lstm_1
    # (matching init_weights), so one weight set serves both LSTMs (batch merge).
    w_ih = xavier(ks[1], (4 * HIDDEN, EMB))        # PyTorch layout (4H, E)
    w_hh = xavier(ks[2], (4 * HIDDEN, HIDDEN))     # PyTorch layout (4H, H)
    b_ih = jnp.zeros((4 * HIDDEN,), jnp.float32)
    b_hh = jnp.zeros((4 * HIDDEN,), jnp.float32)
    w1 = xavier(ks[3], (DENSE1, HIDDEN * HIDDEN))
    b1 = 0.01 * jax.random.normal(ks[4], (DENSE1,), dtype=jnp.float32)
    w2 = xavier(ks[5], (NCLASS, DENSE1))
    b2 = 0.01 * jax.random.normal(ks[6], (NCLASS,), dtype=jnp.float32)

    # --- kernel-ready (hoisted) forms: built once, reused every forward call ---
    w2_pad = jnp.zeros((DENSE1, NPAD), jnp.float32).at[:, :NCLASS].set(w2.T)
    b2_pad = jnp.zeros((1, NPAD), jnp.float32).at[:, :NCLASS].set(b2[None, :])

    return dict(
        emb=emb,
        wih_t=jnp.asarray(w_ih.T),                 # (E, 4H)
        whh_t=jnp.asarray(w_hh.T),                 # (H, 4H)
        bias=(b_ih + b_hh)[None, :],               # (1, 4H)
        w1_t=jnp.asarray(w1.T),                    # (H*H, 128)
        b1=b1[None, :],                            # (1, 128)
        w2_pad=w2_pad,                             # (128, NPAD)
        b2_pad=b2_pad,                             # (1, NPAD)
    )


@jax.jit
def manhattan_lstm_forward(token_ids, params):
    """token_ids: (2, S, B) int32 — matches the PyTorch forward's `input`."""
    # TODO(synk): embedding gather stays in the XLA wrapper; an in-kernel gather of the
    # (VOCAB, EMB) table would need a DMA-gather and buys nothing at this size.
    emb = params["emb"]
    x1 = emb[token_ids[0]].astype(jnp.float32)     # (S, B, E)
    x2 = emb[token_ids[1]].astype(jnp.float32)     # (S, B, E)
    x = jnp.concatenate([x1, x2], axis=1)          # (S, 2B, E) — shared-weight batch merge
    x2d = x.reshape(SEQ * 2 * BATCH, EMB)          # (S*2B, E), row index = t*2B + b

    logits_pad = run_fused(x2d, params)            # (B, NPAD)
    return logits_pad[:, :NCLASS]                  # (B, 3) logits


if __name__ == "__main__":
    key = jax.random.PRNGKey(0)
    k_ids, k_params = jax.random.split(key)
    params = init_params(k_params)
    token_ids = jax.random.randint(k_ids, (2, SEQ, BATCH), 0, VOCAB, dtype=jnp.int32)

    logits = manhattan_lstm_forward(token_ids, params)
    jax.block_until_ready(logits)
    assert logits.shape == (BATCH, NCLASS)
    print("KERNEL_OK")
</pallas_src>

<mosaic_0001>
module attributes {stable_mosaic.version = 11 : i64} {
  func.func @malstm_fused_kernel(%arg0: i32, %arg1: memref<128x16xf32, #tpu.memory_space<vmem>>, %arg2: memref<16x128xf32, #tpu.memory_space<vmem>>, %arg3: memref<32x128xf32, #tpu.memory_space<vmem>>, %arg4: memref<1x128xf32, #tpu.memory_space<vmem>>, %arg5: memref<1024x128xf32, #tpu.memory_space<any>>, %arg6: memref<1x128xf32, #tpu.memory_space<vmem>>, %arg7: memref<128x128xf32, #tpu.memory_space<any>>, %arg8: memref<1x128xf32, #tpu.memory_space<vmem>>, %arg9: memref<8x128xf32, #tpu.memory_space<vmem>>, %arg10: memref<128x128xf32, #tpu.memory_space<vmem>>, %arg11: memref<1024x128xf32, #tpu.memory_space<vmem>>, %arg12: memref<128x128xf32, #tpu.memory_space<vmem>>, %arg13: memref<2x!tpu.dma_semaphore, #tpu.memory_space<semaphore_mem>>) attributes {dimension_semantics = [#tpu.dimension_semantics<arbitrary>], iteration_bounds = array<i64: 1>, scalar_prefetch = 0 : i64, scratch_operands = 4 : i64, tpu.core_type = #tpu.core_type<tc>, window_params = [{pipeline_mode = #tpu.pipeline_mode<synchronous>, transform_indices = @transform_0, window_bounds = array<i64: 128, 16>}, {pipeline_mode = #tpu.pipeline_mode<synchronous>, transform_indices = @transform_1, window_bounds = array<i64: 16, 128>}, {pipeline_mode = #tpu.pipeline_mode<synchronous>, transform_indices = @transform_2, window_bounds = array<i64: 32, 128>}, {pipeline_mode = #tpu.pipeline_mode<synchronous>, transform_indices = @transform_3, window_bounds = array<i64: 1, 128>}, {}, {pipeline_mode = #tpu.pipeline_mode<synchronous>, transform_indices = @transform_5, window_bounds = array<i64: 1, 128>}, {}, {pipeline_mode = #tpu.pipeline_mode<synchronous>, transform_indices = @transform_7, window_bounds = array<i64: 1, 128>}, {pipeline_mode = #tpu.pipeline_mode<synchronous>, transform_indices = @transform_8, window_bounds = array<i64: 8, 128>}]} {
    %c0_i32 = arith.constant 0 : i32
    %0 = tpu.memref_slice %arg13[%c0_i32] : memref<2x!tpu.dma_semaphore, #tpu.memory_space<semaphore_mem>> -> memref<1x!tpu.dma_semaphore, #tpu.memory_space<semaphore_mem>>
    %1 = tpu.memref_squeeze %0 : memref<1x!tpu.dma_semaphore, #tpu.memory_space<semaphore_mem>> -> memref<!tpu.dma_semaphore, #tpu.memory_space<semaphore_mem>>
    tpu.enqueue_dma source(%arg5 : memref<1024x128xf32, #tpu.memory_space<any>>) target(%arg11 : memref<1024x128xf32, #tpu.memory_space<vmem>>) target_semaphore(%1 : memref<!tpu.dma_semaphore, #tpu.memory_space<semaphore_mem>>)
    %c1_i32 = arith.constant 1 : i32
    %2 = tpu.memref_slice %arg13[%c1_i32] : memref<2x!tpu.dma_semaphore, #tpu.memory_space<semaphore_mem>> -> memref<1x!tpu.dma_semaphore, #tpu.memory_space<semaphore_mem>>
    %3 = tpu.memref_squeeze %2 : memref<1x!tpu.dma_semaphore, #tpu.memory_space<semaphore_mem>> -> memref<!tpu.dma_semaphore, #tpu.memory_space<semaphore_mem>>
    tpu.enqueue_dma source(%arg7 : memref<128x128xf32, #tpu.memory_space<any>>) target(%arg12 : memref<128x128xf32, #tpu.memory_space<vmem>>) target_semaphore(%3 : memref<!tpu.dma_semaphore, #tpu.memory_space<semaphore_mem>>)
    %c0 = arith.constant 0 : index
    %c0_0 = arith.constant 0 : index
    %4 = vector.load %arg2[%c0, %c0_0] : memref<16x128xf32, #tpu.memory_space<vmem>>, vector<16x128xf32>
    %c0_1 = arith.constant 0 : index
    %c0_2 = arith.constant 0 : index
    %5 = vector.load %arg3[%c0_1, %c0_2] : memref<32x128xf32, #tpu.memory_space<vmem>>, vector<32x128xf32>
    %c0_3 = arith.constant 0 : index
    %c0_4 = arith.constant 0 : index
    %6 = vector.load %arg4[%c0_3, %c0_4] : memref<1x128xf32, #tpu.memory_space<vmem>>, vector<1x128xf32>
    %c0_5 = arith.constant 0 : index
    %c0_6 = arith.constant 0 : index
    %7 = vector.load %arg1[%c0_5, %c0_6] : memref<128x16xf32, #tpu.memory_space<vmem>>, vector<128x16xf32>
    %cst = arith.constant dense<0.000000e+00> : vector<128x128xf32>
    %8 = tpu.matmul %7, %4, %cst {dimension_numbers = #tpu.dot_dimension_numbers<[1], [0], [0], [1], [0, 0, 1, 1], [], []>} : vector<128x16xf32>, vector<16x128xf32>, vector<128x128xf32> -> vector<128x128xf32>
    %9 = vector.broadcast %6 : vector<1x128xf32> to vector<128x128xf32>
    %10 = arith.addf %8, %9 : vector<128x128xf32>
    %c0_7 = arith.constant 0 : index
    %c0_8 = arith.constant 0 : index
    %11 = vector.load %arg10[%c0_7, %c0_8] : memref<128x128xf32, #tpu.memory_space<vmem>>, vector<128x128xf32>
    tpu.vector_store %arg10[%c0_7, %c0_8], %10 {strides = array<i32>} : memref<128x128xf32, #tpu.memory_space<vmem>>, vector<128x128xf32>,
    %cst_9 = arith.constant 0.000000e+00 : f32
    %12 = vector.broadcast %cst_9 : f32 to vector<16x32xf32>
    %cst_10 = arith.constant 0.000000e+00 : f32
    %13 = vector.broadcast %cst_10 : f32 to vector<16x32xf32>
    %c0_11 = arith.constant 0 : index
    %c0_12 = arith.constant 0 : index
    %14 = vector.load %arg10[%c0_11, %c0_12] : memref<128x128xf32, #tpu.memory_space<vmem>>, vector<16x128xf32>
    %cst_13 = arith.constant dense<0.000000e+00> : vector<16x128xf32>
    %15 = tpu.matmul %12, %5, %cst_13 {dimension_numbers = #tpu.dot_dimension_numbers<[1], [0], [0], [1], [0, 0, 1, 1], [], []>} : vector<16x32xf32>, vector<32x128xf32>, vector<16x128xf32> -> vector<16x128xf32>
    %16 = arith.addf %14, %15 : vector<16x128xf32>
    %17 = arith.negf %16 : vector<16x128xf32>
    %18 = math.exp %17 : vector<16x128xf32>
    %cst_14 = arith.constant 1.000000e+00 : f32
    %19 = vector.broadcast %cst_14 : f32 to vector<16x128xf32>
    %20 = arith.addf %19, %18 : vector<16x128xf32>
    %21 = arith.divf %19, %20 : vector<16x128xf32>
    %22 = vector.extract_strided_slice %21 {offsets = [0, 0], sizes = [16, 32], strides = [1, 1]} : vector<16x128xf32> to vector<16x32xf32>
    %23 = vector.extract_strided_slice %21 {offsets = [0, 32], sizes = [16, 32], strides = [1, 1]} : vector<16x128xf32> to vector<16x32xf32>
    %24 = vector.extract_strided_slice %21 {offsets = [0, 96], sizes = [16, 32], strides = [1, 1]} : vector<16x128xf32> to vector<16x32xf32>
    %25 = vector.extract_strided_slice %16 {offsets = [0, 64], sizes = [16, 32], strides = [1, 1]} : vector<16x128xf32> to vector<16x32xf32>
    %26 = math.tanh %25 : vector<16x32xf32>
    %27 = arith.mulf %23, %13 : vector<16x32xf32>
    %28 = arith.mulf %22, %26 : vector<16x32xf32>
    %29 = arith.addf %27, %28 : vector<16x32xf32>
    %30 = math.tanh %29 : vector<16x32xf32>
    %31 = arith.mulf %24, %30 : vector<16x32xf32>
    %c16 = arith.constant 16 : index
    %c0_15 = arith.constant 0 : index
    %32 = vector.load %arg10[%c16, %c0_15] : memref<128x128xf32, #tpu.memory_space<vmem>>, vector<16x128xf32>
    %cst_16 = arith.constant dense<0.000000e+00> : vector<16x128xf32>
    %33 = tpu.matmul %31, %5, %cst_16 {dimension_numbers = #tpu.dot_dimension_numbers<[1], [0], [0], [1], [0, 0, 1, 1], [], []>} : vector<16x32xf32>, vector<32x128xf32>, vector<16x128xf32> -> vector<16x128xf32>
    %34 = arith.addf %32, %33 : vector<16x128xf32>
    %35 = arith.negf %34 : vector<16x128xf32>
    %36 = math.exp %35 : vector<16x128xf32>
    %cst_17 = arith.constant 1.000000e+00 : f32
    %37 = vector.broadcast %cst_17 : f32 to vector<16x128xf32>
    %38 = arith.addf %37, %36 : vector<16x128xf32>
    %39 = arith.divf %37, %38 : vector<16x128xf32>
    %40 = vector.extract_strided_slice %39 {offsets = [0, 0], sizes = [16, 32], strides = [1, 1]} : vector<16x128xf32> to vector<16x32xf32>
    %41 = vector.extract_strided_slice %39 {offsets = [0, 32], sizes = [16, 32], strides = [1, 1]} : vector<16x128xf32> to vector<16x32xf32>
    %42 = vector.extract_strided_slice %39 {offsets = [0, 96], sizes = [16, 32], strides = [1, 1]} : vector<16x128xf32> to vector<16x32xf32>
    %43 = vector.extract_strided_slice %34 {offsets = [0, 64], sizes = [16, 32], strides = [1, 1]} : vector<16x128xf32> to vector<16x32xf32>
    %44 = math.tanh %43 : vector<16x32xf32>
    %45 = arith.mulf %41, %29 : vector<16x32xf32>
    %46 = arith.mulf %40, %44 : vector<16x32xf32>
    %47 = arith.addf %45, %46 : vector<16x32xf32>
    %48 = math.tanh %47 : vector<16x32xf32>
    %49 = arith.mulf %42, %48 : vector<16x32xf32>
    %c32 = arith.constant 32 : index
    %c0_18 = arith.constant 0 : index
    %50 = vector.load %arg10[%c32, %c0_18] : memref<128x128xf32, #tpu.memory_space<vmem>>, vector<16x128xf32>
    %cst_19 = arith.constant dense<0.000000e+00> : vector<16x128xf32>
    %51 = tpu.matmul %49, %5, %cst_19 {dimension_numbers = #tpu.dot_dimension_numbers<[1], [0], [0], [1], [0, 0, 1, 1], [], []>} : vector<16x32xf32>, vector<32x128xf32>, vector<16x128xf32> -> vector<16x128xf32>
    %52 = arith.addf %50, %51 : vector<16x128xf32>
    %53 = arith.negf %52 : vector<16x128xf32>
    %54 = math.exp %53 : vector<16x128xf32>
    %cst_20 = arith.constant 1.000000e+00 : f32
    %55 = vector.broadcast %cst_20 : f32 to vector<16x128xf32>
    %56 = arith.addf %55, %54 : vector<16x128xf32>
    %57 = arith.divf %55, %56 : vector<16x128xf32>
    %58 = vector.extract_strided_slice %57 {offsets = [0, 0], sizes = [16, 32], strides = [1, 1]} : vector<16x128xf32> to vector<16x32xf32>
    %59 = vector.extract_strided_slice %57 {offsets = [0, 32], sizes = [16, 32], strides = [1, 1]} : vector<16x128xf32> to vector<16x32xf32>
    %60 = vector.extract_strided_slice %57 {offsets = [0, 96], sizes = [16, 32], strides = [1, 1]} : vector<16x128xf32> to vector<16x32xf32>
    %61 = vector.extract_strided_slice %52 {offsets = [0, 64], sizes = [16, 32], strides = [1, 1]} : vector<16x128xf32> to vector<16x32xf32>
    %62 = math.tanh %61 : vector<16x32xf32>
    %63 = arith.mulf %59, %47 : vector<16x32xf32>
    %64 = arith.mulf %58, %62 : vector<16x32xf32>
    %65 = arith.addf %63, %64 : vector<16x32xf32>
    %66 = math.tanh %65 : vector<16x32xf32>
    %67 = arith.mulf %60, %66 : vector<16x32xf32>
    %c48 = arith.constant 48 : index
    %c0_21 = arith.constant 0 : index
    %68 = vector.load %arg10[%c48, %c0_21] : memref<128x128xf32, #tpu.memory_space<vmem>>, vector<16x128xf32>
    %cst_22 = arith.constant dense<0.000000e+00> : vector<16x128xf32>
    %69 = tpu.matmul %67, %5, %cst_22 {dimension_numbers = #tpu.dot_dimension_numbers<[1], [0], [0], [1], [0, 0, 1, 1], [], []>} : vector<16x32xf32>, vector<32x128xf32>, vector<16x128xf32> -> vector<16x128xf32>
    %70 = arith.addf %68, %69 : vector<16x128xf32>
    %71 = arith.negf %70 : vector<16x128xf32>
    %72 = math.exp %71 : vector<16x128xf32>
    %cst_23 = arith.constant 1.000000e+00 : f32
    %73 = vector.broadcast %cst_23 : f32 to vector<16x128xf32>
    %74 = arith.addf %73, %72 : vector<16x128xf32>
    %75 = arith.divf %73, %74 : vector<16x128xf32>
    %76 = vector.extract_strided_slice %75 {offsets = [0, 0], sizes = [16, 32], strides = [1, 1]} : vector<16x128xf32> to vector<16x32xf32>
    %77 = vector.extract_strided_slice %75 {offsets = [0, 32], sizes = [16, 32], strides = [1, 1]} : vector<16x128xf32> to vector<16x32xf32>
    %78 = vector.extract_strided_slice %75 {offsets = [0, 96], sizes = [16, 32], strides = [1, 1]} : vector<16x128xf32> to vector<16x32xf32>
    %79 = vector.extract_strided_slice %70 {offsets = [0, 64], sizes = [16, 32], strides = [1, 1]} : vector<16x128xf32> to vector<16x32xf32>
    %80 = math.tanh %79 : vector<16x32xf32>
    %81 = arith.mulf %77, %65 : vector<16x32xf32>
    %82 = arith.mulf %76, %80 : vector<16x32xf32>
    %83 = arith.addf %81, %82 : vector<16x32xf32>
    %84 = math.tanh %83 : vector<16x32xf32>
    %85 = arith.mulf %78, %84 : vector<16x32xf32>
    %c64 = arith.constant 64 : index
    %c0_24 = arith.constant 0 : index
    %86 = vector.load %arg10[%c64, %c0_24] : memref<128x128xf32, #tpu.memory_space<vmem>>, vector<16x128xf32>
    %cst_25 = arith.constant dense<0.000000e+00> : vector<16x128xf32>
    %87 = tpu.matmul %85, %5, %cst_25 {dimension_numbers = #tpu.dot_dimension_numbers<[1], [0], [0], [1], [0, 0, 1, 1], [], []>} : vector<16x32xf32>, vector<32x128xf32>, vector<16x128xf32> -> vector<16x128xf32>
    %88 = arith.addf %86, %87 : vector<16x128xf32>
    %89 = arith.negf %88 : vector<16x128xf32>
    %90 = math.exp %89 : vector<16x128xf32>
    %cst_26 = arith.constant 1.000000e+00 : f32
    %91 = vector.broadcast %cst_26 : f32 to vector<16x128xf32>
    %92 = arith.addf %91, %90 : vector<16x128xf32>
    %93 = arith.divf %91, %92 : vector<16x128xf32>
    %94 = vector.extract_strided_slice %93 {offsets = [0, 0], sizes = [16, 32], strides = [1, 1]} : vector<16x128xf32> to vector<16x32xf32>
    %95 = vector.extract_strided_slice %93 {offsets = [0, 32], sizes = [16, 32], strides = [1, 1]} : vector<16x128xf32> to vector<16x32xf32>
    %96 = vector.extract_strided_slice %93 {offsets = [0, 96], sizes = [16, 32], strides = [1, 1]} : vector<16x128xf32> to vector<16x32xf32>
    %97 = vector.extract_strided_slice %88 {offsets = [0, 64], sizes = [16, 32], strides = [1, 1]} : vector<16x128xf32> to vector<16x32xf32>
    %98 = math.tanh %97 : vector<16x32xf32>
    %99 = arith.mulf %95, %83 : vector<16x32xf32>
    %100 = arith.mulf %94, %98 : vector<16x32xf32>
    %101 = arith.addf %99, %100 : vector<16x32xf32>
    %102 = math.tanh %101 : vector<16x32xf32>
    %103 = arith.mulf %96, %102 : vector<16x32xf32>
    %c80 = arith.constant 80 : index
    %c0_27 = arith.constant 0 : index
    %104 = vector.load %arg10[%c80, %c0_27] : memref<128x128xf32, #tpu.memory_space<vmem>>, vector<16x128xf32>
    %cst_28 = arith.constant dense<0.000000e+00> : vector<16x128xf32>
    %105 = tpu.matmul %103, %5, %cst_28 {dimension_numbers = #tpu.dot_dimension_numbers<[1], [0], [0], [1], [0, 0, 1, 1], [], []>} : vector<16x32xf32>, vector<32x128xf32>, vector<16x128xf32> -> vector<16x128xf32>
    %106 = arith.addf %104, %105 : vector<16x128xf32>
    %107 = arith.negf %106 : vector<16x128xf32>
    %108 = math.exp %107 : vector<16x128xf32>
    %cst_29 = arith.constant 1.000000e+00 : f32
    %109 = vector.broadcast %cst_29 : f32 to vector<16x128xf32>
    %110 = arith.addf %109, %108 : vector<16x128xf32>
    %111 = arith.divf %109, %110 : vector<16x128xf32>
    %112 = vector.extract_strided_slice %111 {offsets = [0, 0], sizes = [16, 32], strides = [1, 1]} : vector<16x128xf32> to vector<16x32xf32>
    %113 = vector.extract_strided_slice %111 {offsets = [0, 32], sizes = [16, 32], strides = [1, 1]} : vector<16x128xf32> to vector<16x32xf32>
    %114 = vector.extract_strided_slice %111 {offsets = [0, 96], sizes = [16, 32], strides = [1, 1]} : vector<16x128xf32> to vector<16x32xf32>
    %115 = vector.extract_strided_slice %106 {offsets = [0, 64], sizes = [16, 32], strides = [1, 1]} : vector<16x128xf32> to vector<16x32xf32>
    %116 = math.tanh %115 : vector<16x32xf32>
    %117 = arith.mulf %113, %101 : vector<16x32xf32>
    %118 = arith.mulf %112, %116 : vector<16x32xf32>
    %119 = arith.addf %117, %118 : vector<16x32xf32>
    %120 = math.tanh %119 : vector<16x32xf32>
    %121 = arith.mulf %114, %120 : vector<16x32xf32>
    %c96 = arith.constant 96 : index
    %c0_30 = arith.constant 0 : index
    %122 = vector.load %arg10[%c96, %c0_30] : memref<128x128xf32, #tpu.memory_space<vmem>>, vector<16x128xf32>
    %cst_31 = arith.constant dense<0.000000e+00> : vector<16x128xf32>
    %123 = tpu.matmul %121, %5, %cst_31 {dimension_numbers = #tpu.dot_dimension_numbers<[1], [0], [0], [1], [0, 0, 1, 1], [], []>} : vector<16x32xf32>, vector<32x128xf32>, vector<16x128xf32> -> vector<16x128xf32>
    %124 = arith.addf %122, %123 : vector<16x128xf32>
    %125 = arith.negf %124 : vector<16x128xf32>
    %126 = math.exp %125 : vector<16x128xf32>
    %cst_32 = arith.constant 1.000000e+00 : f32
    %127 = vector.broadcast %cst_32 : f32 to vector<16x128xf32>
    %128 = arith.addf %127, %126 : vector<16x128xf32>
    %129 = arith.divf %127, %128 : vector<16x128xf32>
    %130 = vector.extract_strided_slice %129 {offsets = [0, 0], sizes = [16, 32], strides = [1, 1]} : vector<16x128xf32> to vector<16x32xf32>
    %131 = vector.extract_strided_slice %129 {offsets = [0, 32], sizes = [16, 32], strides = [1, 1]} : vector<16x128xf32> to vector<16x32xf32>
    %132 = vector.extract_strided_slice %129 {offsets = [0, 96], sizes = [16, 32], strides = [1, 1]} : vector<16x128xf32> to vector<16x32xf32>
    %133 = vector.extract_strided_slice %124 {offsets = [0, 64], sizes = [16, 32], strides = [1, 1]} : vector<16x128xf32> to vector<16x32xf32>
    %134 = math.tanh %133 : vector<16x32xf32>
    %135 = arith.mulf %131, %119 : vector<16x32xf32>
    %136 = arith.mulf %130, %134 : vector<16x32xf32>
    %137 = arith.addf %135, %136 : vector<16x32xf32>
    %138 = math.tanh %137 : vector<16x32xf32>
    %139 = arith.mulf %132, %138 : vector<16x32xf32>
    %c112 = arith.constant 112 : index
    %c0_33 = arith.constant 0 : index
    %140 = vector.load %arg10[%c112, %c0_33] : memref<128x128xf32, #tpu.memory_space<vmem>>, vector<16x128xf32>
    %cst_34 = arith.constant dense<0.000000e+00> : vector<16x128xf32>
    %141 = tpu.matmul %139, %5, %cst_34 {dimension_numbers = #tpu.dot_dimension_numbers<[1], [0], [0], [1], [0, 0, 1, 1], [], []>} : vector<16x32xf32>, vector<32x128xf32>, vector<16x128xf32> -> vector<16x128xf32>
    %142 = arith.addf %140, %141 : vector<16x128xf32>
    %143 = arith.negf %142 : vector<16x128xf32>
    %144 = math.exp %143 : vector<16x128xf32>
    %cst_35 = arith.constant 1.000000e+00 : f32
    %145 = vector.broadcast %cst_35 : f32 to vector<16x128xf32>
    %146 = arith.addf %145, %144 : vector<16x128xf32>
    %147 = arith.divf %145, %146 : vector<16x128xf32>
    %148 = vector.extract_strided_slice %147 {offsets = [0, 0], sizes = [16, 32], strides = [1, 1]} : vector<16x128xf32> to vector<16x32xf32>
    %149 = vector.extract_strided_slice %147 {offsets = [0, 32], sizes = [16, 32], strides = [1, 1]} : vector<16x128xf32> to vector<16x32xf32>
    %150 = vector.extract_strided_slice %147 {offsets = [0, 96], sizes = [16, 32], strides = [1, 1]} : vector<16x128xf32> to vector<16x32xf32>
    %151 = vector.extract_strided_slice %142 {offsets = [0, 64], sizes = [16, 32], strides = [1, 1]} : vector<16x128xf32> to vector<16x32xf32>
    %152 = math.tanh %151 : vector<16x32xf32>
    %153 = arith.mulf %149, %137 : vector<16x32xf32>
    %154 = arith.mulf %148, %152 : vector<16x32xf32>
    %155 = arith.addf %153, %154 : vector<16x32xf32>
    %156 = math.tanh %155 : vector<16x32xf32>
    %157 = arith.mulf %150, %156 : vector<16x32xf32>
    %158 = vector.extract_strided_slice %157 {offsets = [0, 0], sizes = [8, 32], strides = [1, 1]} : vector<16x32xf32> to vector<8x32xf32>
    %159 = vector.extract_strided_slice %157 {offsets = [8, 0], sizes = [8, 32], strides = [1, 1]} : vector<16x32xf32> to vector<8x32xf32>
    %160 = tpu.iota {dimensions = array<i32: 0>} : vector<32x1024xi32>
    %161 = tpu.iota {dimensions = array<i32: 1>} : vector<32x1024xi32>
    %c5_i32 = arith.constant 5 : i32
    %162 = vector.broadcast %c5_i32 : i32 to vector<32x1024xi32>
    %163 = arith.shrsi %161, %162 : vector<32x1024xi32>
    %164 = arith.cmpi eq, %163, %160 : vector<32x1024xi32>
    %165 = arith.extui %164 : vector<32x1024xi1> to vector<32x1024xi32>
    %166 = arith.sitofp %165 : vector<32x1024xi32> to vector<32x1024xf32>
    %c31_i32 = arith.constant 31 : i32
    %167 = vector.broadcast %c31_i32 : i32 to vector<32x1024xi32>
    %168 = arith.andi %161, %167 : vector<32x1024xi32>
    %169 = arith.cmpi eq, %168, %160 : vector<32x1024xi32>
    %170 = arith.extui %169 : vector<32x1024xi1> to vector<32x1024xi32>
    %171 = arith.sitofp %170 : vector<32x1024xi32> to vector<32x1024xf32>
    %cst_36 = arith.constant dense<0.000000e+00> : vector<8x1024xf32>
    %172 = tpu.matmul %158, %166, %cst_36 {dimension_numbers = #tpu.dot_dimension_numbers<[1], [0], [0], [1], [0, 0, 1, 1], [], []>} : vector<8x32xf32>, vector<32x1024xf32>, vector<8x1024xf32> -> vector<8x1024xf32>
    %cst_37 = arith.constant dense<0.000000e+00> : vector<8x1024xf32>
    %173 = tpu.matmul %159, %171, %cst_37 {dimension_numbers = #tpu.dot_dimension_numbers<[1], [0], [0], [1], [0, 0, 1, 1], [], []>} : vector<8x32xf32>, vector<32x1024xf32>, vector<8x1024xf32> -> vector<8x1024xf32>
    %174 = arith.mulf %172, %173 : vector<8x1024xf32>
    %cst_38 = arith.constant dense<0xFF800000> : vector<1024xf32>
    %175 = vector.multi_reduction <maximumf>, %174, %cst_38 [0] : vector<8x1024xf32> to vector<1024xf32>
    %176 = vector.shape_cast %175 : vector<1024xf32> to vector<1x1024xf32>
    %177 = vector.broadcast %176 : vector<1x1024xf32> to vector<8x1024xf32>
    %178 = arith.subf %174, %177 : vector<8x1024xf32>
    %179 = math.exp %178 : vector<8x1024xf32>
    %cst_39 = arith.constant dense<0.000000e+00> : vector<1024xf32>
    %180 = vector.multi_reduction <add>, %179, %cst_39 [0] : vector<8x1024xf32> to vector<1024xf32>
    %181 = vector.shape_cast %180 : vector<1024xf32> to vector<1x1024xf32>
    %cst_40 = arith.constant 1.000000e+00 : f32
    %182 = vector.broadcast %cst_40 : f32 to vector<1x1024xf32>
    %183 = arith.divf %182, %181 : vector<1x1024xf32>
    %184 = vector.broadcast %183 : vector<1x1024xf32> to vector<8x1024xf32>
    %185 = arith.mulf %179, %184 : vector<8x1024xf32>
    %186 = arith.mulf %185, %174 : vector<8x1024xf32>
    %cst_41 = arith.constant 0.000000e+00 : f32
    %187 = vector.broadcast %cst_41 : f32 to vector<8x1024xf32>
    %188 = arith.maximumf %186, %187 : vector<8x1024xf32>
    %c0_i32_42 = arith.constant 0 : i32
    %189 = tpu.memref_slice %arg13[%c0_i32_42] : memref<2x!tpu.dma_semaphore, #tpu.memory_space<semaphore_mem>> -> memref<1x!tpu.dma_semaphore, #tpu.memory_space<semaphore_mem>>
    %190 = tpu.memref_squeeze %189 : memref<1x!tpu.dma_semaphore, #tpu.memory_space<semaphore_mem>> -> memref<!tpu.dma_semaphore, #tpu.memory_space<semaphore_mem>>
    tpu.wait_dma2 semaphore(%190 : memref<!tpu.dma_semaphore, #tpu.memory_space<semaphore_mem>>) src(%arg5 : memref<1024x128xf32, #tpu.memory_space<any>>) dst(%arg11 : memref<1024x128xf32, #tpu.memory_space<vmem>>)
    %c1_i32_43 = arith.constant 1 : i32
    %191 = tpu.memref_slice %arg13[%c1_i32_43] : memref<2x!tpu.dma_semaphore, #tpu.memory_space<semaphore_mem>> -> memref<1x!tpu.dma_semaphore, #tpu.memory_space<semaphore_mem>>
    %192 = tpu.memref_squeeze %191 : memref<1x!tpu.dma_semaphore, #tpu.memory_space<semaphore_mem>> -> memref<!tpu.dma_semaphore, #tpu.memory_space<semaphore_mem>>
    tpu.wait_dma2 semaphore(%192 : memref<!tpu.dma_semaphore, #tpu.memory_space<semaphore_mem>>) src(%arg7 : memref<128x128xf32, #tpu.memory_space<any>>) dst(%arg12 : memref<128x128xf32, #tpu.memory_space<vmem>>)
    %c0_44 = arith.constant 0 : index
    %c0_45 = arith.constant 0 : index
    %193 = vector.load %arg11[%c0_44, %c0_45] : memref<1024x128xf32, #tpu.memory_space<vmem>>, vector<1024x128xf32>
    %cst_46 = arith.constant dense<0.000000e+00> : vector<8x128xf32>
    %194 = tpu.matmul %188, %193, %cst_46 {dimension_numbers = #tpu.dot_dimension_numbers<[1], [0], [0], [1], [0, 0, 1, 1], [], []>} : vector<8x1024xf32>, vector<1024x128xf32>, vector<8x128xf32> -> vector<8x128xf32>
    %c0_47 = arith.constant 0 : index
    %c0_48 = arith.constant 0 : index
    %195 = vector.load %arg6[%c0_47, %c0_48] : memref<1x128xf32, #tpu.memory_space<vmem>>, vector<1x128xf32>
    %196 = vector.broadcast %195 : vector<1x128xf32> to vector<8x128xf32>
    %197 = arith.addf %194, %196 : vector<8x128xf32>
    %cst_49 = arith.constant 0.000000e+00 : f32
    %198 = vector.broadcast %cst_49 : f32 to vector<8x128xf32>
    %199 = arith.maximumf %197, %198 : vector<8x128xf32>
    %c0_50 = arith.constant 0 : index
    %c0_51 = arith.constant 0 : index
    %200 = vector.load %arg12[%c0_50, %c0_51] : memref<128x128xf32, #tpu.memory_space<vmem>>, vector<128x128xf32>
    %cst_52 = arith.constant dense<0.000000e+00> : vector<8x128xf32>
    %201 = tpu.matmul %199, %200, %cst_52 {dimension_numbers = #tpu.dot_dimension_numbers<[1], [0], [0], [1], [0, 0, 1, 1], [], []>} : vector<8x128xf32>, vector<128x128xf32>, vector<8x128xf32> -> vector<8x128xf32>
    %c0_53 = arith.constant 0 : index
    %c0_54 = arith.constant 0 : index
    %202 = vector.load %arg8[%c0_53, %c0_54] : memref<1x128xf32, #tpu.memory_space<vmem>>, vector<1x128xf32>
    %203 = vector.broadcast %202 : vector<1x128xf32> to vector<8x128xf32>
    %204 = arith.addf %201, %203 : vector<8x128xf32>
    %c0_55 = arith.constant 0 : index
    %c0_56 = arith.constant 0 : index
    %205 = vector.load %arg9[%c0_55, %c0_56] : memref<8x128xf32, #tpu.memory_space<vmem>>, vector<8x128xf32>
    tpu.vector_store %arg9[%c0_55, %c0_56], %204 {strides = array<i32>} : memref<8x128xf32, #tpu.memory_space<vmem>>, vector<8x128xf32>,
    return
  }
  func.func @transform_0(%arg0: i32) -> (i32, i32) {
    %c0_i32 = arith.constant 0 : i32
    %c0_i32_0 = arith.constant 0 : i32
    %c0_i32_1 = arith.constant 0 : i32
    return %c0_i32, %c0_i32_0 : i32, i32
  }
  func.func @transform_1(%arg0: i32) -> (i32, i32) {
    %c0_i32 = arith.constant 0 : i32
    %c0_i32_0 = arith.constant 0 : i32
    %c0_i32_1 = arith.constant 0 : i32
    return %c0_i32, %c0_i32_0 : i32, i32
  }
  func.func @transform_2(%arg0: i32) -> (i32, i32) {
    %c0_i32 = arith.constant 0 : i32
    %c0_i32_0 = arith.constant 0 : i32
    %c0_i32_1 = arith.constant 0 : i32
    return %c0_i32, %c0_i32_0 : i32, i32
  }
  func.func @transform_3(%arg0: i32) -> (i32, i32) {
    %c0_i32 = arith.constant 0 : i32
    %c0_i32_0 = arith.constant 0 : i32
    %c0_i32_1 = arith.constant 0 : i32
    return %c0_i32, %c0_i32_0 : i32, i32
  }
  func.func @transform_5(%arg0: i32) -> (i32, i32) {
    %c0_i32 = arith.constant 0 : i32
    %c0_i32_0 = arith.constant 0 : i32
    %c0_i32_1 = arith.constant 0 : i32
    return %c0_i32, %c0_i32_0 : i32, i32
  }
  func.func @transform_7(%arg0: i32) -> (i32, i32) {
    %c0_i32 = arith.constant 0 : i32
    %c0_i32_0 = arith.constant 0 : i32
    %c0_i32_1 = arith.constant 0 : i32
    return %c0_i32, %c0_i32_0 : i32, i32
  }
  func.func @transform_8(%arg0: i32) -> (i32, i32) {
    %c0_i32 = arith.constant 0 : i32
    %c0_i32_0 = arith.constant 0 : i32
    %c0_i32_1 = arith.constant 0 : i32
    return %c0_i32, %c0_i32_0 : i32, i32
  }
}

</mosaic_0001>

<llo_original>
// kernel: manhattan_lstm_forward.1
$region0: #{manhattan_lstm_forward.1}
  #allocation0 [shape = 'u32[]', space=smem, size = 0x4, offset = 0x4, fixed_abs, tag = 'smem constant byte address 0x4 - core index']
  #allocation1 [shape = 'u32[144,128]{1,0:T(1,128)}', space=vmem, size = 0x12000, scoped, tag = 'internal scratch']
  #allocation2 [shape = 'f32[128,128]{1,0:T(8,128)}', space=vmem, size = 0x10000, scoped, tag = 'scratch operand']
  #allocation3 [shape = 'f32[1024,128]{1,0:T(8,128)}', space=vmem, size = 0x80000, scoped, tag = 'scratch operand']
  #allocation4 [shape = 'f32[128,128]{1,0:T(8,128)}', space=vmem, size = 0x10000, scoped, tag = 'scratch operand']
  #allocation5 [shape = 's32[2]{0}', space=sflag, size = 0x8, scoped, tag = 'scratch operand']
  #allocation6 [shape = 's32[]', space=sflag, size = 0x4, offset = 0, fixed_abs, tag = 'sflag constant byte address 0x0 - dummy sync flag']
  #allocation7 [shape = 's32[]', space=sflag, size = 0x4, offset = 0, fixed_abs, tag = 'sflag constant byte address 0x0 - dummy sync flag']
  %s0 = inlined_call_operand.vmem [shape: f32[128,16], index: 0, kind: input, shape index: {}]
  %s1 = inlined_call_operand.vmem [shape: f32[16,128], index: 1, kind: input, shape index: {}]
  %s2 = inlined_call_operand.vmem [shape: f32[32,128], index: 2, kind: input, shape index: {}]
  %s3 = inlined_call_operand.vmem [shape: f32[1,128], index: 3, kind: input, shape index: {}]
  %s4 = inlined_call_operand.vmem [shape: f32[1024,128], index: 4, kind: input, shape index: {}]
  %s5 = inlined_call_operand.vmem [shape: f32[1,128], index: 5, kind: input, shape index: {}]
  %s6 = inlined_call_operand.vmem [shape: f32[128,128], index: 6, kind: input, shape index: {}]
  %s7 = inlined_call_operand.vmem [shape: f32[1,128], index: 7, kind: input, shape index: {}]
  %s8 = inlined_call_operand.vmem [shape: f32[8,128], index: 8, kind: output, shape index: {}]
  %s9 = sld [smem:[#allocation0]]
  $region102: #{manhattan_lstm_forward.1} parent=0
    _
  %s11 = ssub.s32 1, %s9
  %s12 = scalar_select 0, %s11, %s9
  // Predicated region
  $region2: #{manhattan_lstm_forward.1} parent=0 // pred_check
    _
  $region3: #{manhattan_lstm_forward.1} parent=0 // pred_check_branch
    %14 = sbr.rel (0) target = $region5
  $region4: #{manhattan_lstm_forward.1} parent=0 // pred_region
    _
  $region5: #{manhattan_lstm_forward.1} parent=0 // pred_fallthru
    _
  // Predicated region
  $region6: #{manhattan_lstm_forward.1} parent=0 // pred_check
    _
  $region7: #{manhattan_lstm_forward.1} parent=0 // pred_check_branch
    %16 = sbr.rel (0) target = $region9
  $region8: #{manhattan_lstm_forward.1} parent=0 // pred_region
    _
  $region9: #{manhattan_lstm_forward.1} parent=0 // pred_fallthru
    _
  // Predicated region
  $region10: #{manhattan_lstm_forward.1} parent=0 // pred_check
    _
  $region11: #{manhattan_lstm_forward.1} parent=0 // pred_check_branch
    %18 = sbr.rel (0) target = $region13
  $region12: #{manhattan_lstm_forward.1} parent=0 // pred_region
    _
  $region13: #{manhattan_lstm_forward.1} parent=0 // pred_fallthru
    _
  // Predicated region
  $region14: #{manhattan_lstm_forward.1} parent=0 // pred_check
    _
  $region15: #{manhattan_lstm_forward.1} parent=0 // pred_check_branch
    %20 = sbr.rel (0) target = $region17
  $region16: #{manhattan_lstm_forward.1} parent=0 // pred_region
    _
  $region17: #{manhattan_lstm_forward.1} parent=0 // pred_fallthru
    _
  // Predicated region
  $region18: #{manhattan_lstm_forward.1} parent=0 // pred_check
    _
  $region19: #{manhattan_lstm_forward.1} parent=0 // pred_check_branch
    %22 = sbr.rel (0) target = $region21
  $region20: #{manhattan_lstm_forward.1} parent=0 // pred_region
    _
  $region21: #{manhattan_lstm_forward.1} parent=0 // pred_fallthru
    _
  // Predicated region
  $region22: #{manhattan_lstm_forward.1} parent=0 // pred_check
    _
  $region23: #{manhattan_lstm_forward.1} parent=0 // pred_check_branch
    %24 = sbr.rel (0) target = $region25
  $region24: #{manhattan_lstm_forward.1} parent=0 // pred_region
    _
  $region25: #{manhattan_lstm_forward.1} parent=0 // pred_fallthru
    _
  %p26 = scmp.lt.u32.totalorder 1024, 8
  %p27 = pneg %p26
  // Predicated region
  $region26: #{manhattan_lstm_forward.1} parent=0 // pred_check
    _
  $region27: #{manhattan_lstm_forward.1} parent=0 // pred_check_branch
    %29 = sbr.rel (%p26) target = $region29
  $region28: #{manhattan_lstm_forward.1} parent=0 // pred_region
    %s45 = sand.u32 1024, 7
    %p46 = scmp.eq.s32.totalorder %s45, 0
    // Predicated region
    $region41: #{manhattan_lstm_forward.1} parent=28 // pred_check
      %p47 = pneg %p46
    $region42: #{manhattan_lstm_forward.1} parent=28 // pred_check_branch
      %49 = sbr.rel (%p47) target = $region44
    $region43: #{manhattan_lstm_forward.1} parent=28 // pred_region
      loop: start=0, step=1, limit=1
      $region45: #{manhattan_lstm_forward.1} parent=43 // loop_pre_header
        _
      $region46: #{manhattan_lstm_forward.1} parent=43 // loop_header
        %s51 = sphi 0, %s55
        %p52 = scmp.ge.s32.totalorder %s51, 1
        %s56 = sphi %s4, %s4
        %s57 = sphi [#allocation3], [#allocation3]
      $region47: #{manhattan_lstm_forward.1} parent=43 // loop_header_branch
        %54 = sbr.rel (%p52) target = $region51
      $region48: #{manhattan_lstm_forward.1} parent=43 // loop_body
        %v58 = vld [vmem:[%s56] sm:$0xff]
        %59 = vst [vmem:[%s57] sm:$0xff] %v58
        %v60 = vld [vmem:[%s56 + $0x8] sm:$0xff]
        %61 = vst [vmem:[%s57 + $0x8] sm:$0xff] %v60
        %v62 = vld [vmem:[%s56 + $0x10] sm:$0xff]
        %63 = vst [vmem:[%s57 + $0x10] sm:$0xff] %v62
        %v64 = vld [vmem:[%s56 + $0x18] sm:$0xff]
        %65 = vst [vmem:[%s57 + $0x18] sm:$0xff] %v64
        %v66 = vld [vmem:[%s56 + $0x20] sm:$0xff]
        %67 = vst [vmem:[%s57 + $0x20] sm:$0xff] %v66
        %v68 = vld [vmem:[%s56 + $0x28] sm:$0xff]
        %69 = vst [vmem:[%s57 + $0x28] sm:$0xff] %v68
        %v70 = vld [vmem:[%s56 + $0x30] sm:$0xff]
        %71 = vst [vmem:[%s57 + $0x30] sm:$0xff] %v70
        %v72 = vld [vmem:[%s56 + $0x38] sm:$0xff]
        %73 = vst [vmem:[%s57 + $0x38] sm:$0xff] %v72
        %v74 = vld [vmem:[%s56 + $0x40] sm:$0xff]
        %75 = vst [vmem:[%s57 + $0x40] sm:$0xff] %v74
        %v76 = vld [vmem:[%s56 + $0x48] sm:$0xff]
        %77 = vst [vmem:[%s57 + $0x48] sm:$0xff] %v76
        %v78 = vld [vmem:[%s56 + $0x50] sm:$0xff]
        %79 = vst [vmem:[%s57 + $0x50] sm:$0xff] %v78
        %v80 = vld [vmem:[%s56 + $0x58] sm:$0xff]
        %81 = vst [vmem:[%s57 + $0x58] sm:$0xff] %v80
        %v82 = vld [vmem:[%s56 + $0x60] sm:$0xff]
        %83 = vst [vmem:[%s57 + $0x60] sm:$0xff] %v82
        %v84 = vld [vmem:[%s56 + $0x68] sm:$0xff]
        %85 = vst [vmem:[%s57 + $0x68] sm:$0xff] %v84
        %v86 = vld [vmem:[%s56 + $0x70] sm:$0xff]
        %87 = vst [vmem:[%s57 + $0x70] sm:$0xff] %v86
        %v88 = vld [vmem:[%s56 + $0x78] sm:$0xff]
        %89 = vst [vmem:[%s57 + $0x78] sm:$0xff] %v88
        %v90 = vld [vmem:[%s56 + $0x80] sm:$0xff]
        %91 = vst [vmem:[%s57 + $0x80] sm:$0xff] %v90
        %v92 = vld [vmem:[%s56 + $0x88] sm:$0xff]
        %93 = vst [vmem:[%s57 + $0x88] sm:$0xff] %v92
        %v94 = vld [vmem:[%s56 + $0x90] sm:$0xff]
        %95 = vst [vmem:[%s57 + $0x90] sm:$0xff] %v94
        %v96 = vld [vmem:[%s56 + $0x98] sm:$0xff]
        %97 = vst [vmem:[%s57 + $0x98] sm:$0xff] %v96
        %v98 = vld [vmem:[%s56 + $0xa0] sm:$0xff]
        %99 = vst [vmem:[%s57 + $0xa0] sm:$0xff] %v98
        %v100 = vld [vmem:[%s56 + $0xa8] sm:$0xff]
        %101 = vst [vmem:[%s57 + $0xa8] sm:$0xff] %v100
        %v102 = vld [vmem:[%s56 + $0xb0] sm:$0xff]
        %103 = vst [vmem:[%s57 + $0xb0] sm:$0xff] %v102
        %v104 = vld [vmem:[%s56 + $0xb8] sm:$0xff]
        %105 = vst [vmem:[%s57 + $0xb8] sm:$0xff] %v104
        %v106 = vld [vmem:[%s56 + $0xc0] sm:$0xff]
        %107 = vst [vmem:[%s57 + $0xc0] sm:$0xff] %v106
        %v108 = vld [vmem:[%s56 + $0xc8] sm:$0xff]
        %109 = vst [vmem:[%s57 + $0xc8] sm:$0xff] %v108
        %v110 = vld [vmem:[%s56 + $0xd0] sm:$0xff]
        %111 = vst [vmem:[%s57 + $0xd0] sm:$0xff] %v110
        %v112 = vld [vmem:[%s56 + $0xd8] sm:$0xff]
        %113 = vst [vmem:[%s57 + $0xd8] sm:$0xff] %v112
        %v114 = vld [vmem:[%s56 + $0xe0] sm:$0xff]
        %115 = vst [vmem:[%s57 + $0xe0] sm:$0xff] %v114
        %v116 = vld [vmem:[%s56 + $0xe8] sm:$0xff]
        %117 = vst [vmem:[%s57 + $0xe8] sm:$0xff] %v116
        %v118 = vld [vmem:[%s56 + $0xf0] sm:$0xff]
        %119 = vst [vmem:[%s57 + $0xf0] sm:$0xff] %v118
        %v120 = vld [vmem:[%s56 + $0xf8] sm:$0xff]
        %121 = vst [vmem:[%s57 + $0xf8] sm:$0xff] %v120
        %v122 = vld [vmem:[%s56 + $0x100] sm:$0xff]
        %123 = vst [vmem:[%s57 + $0x100] sm:$0xff] %v122
        %v124 = vld [vmem:[%s56 + $0x108] sm:$0xff]
        %125 = vst [vmem:[%s57 + $0x108] sm:$0xff] %v124
        %v126 = vld [vmem:[%s56 + $0x110] sm:$0xff]
        %127 = vst [vmem:[%s57 + $0x110] sm:$0xff] %v126
        %v128 = vld [vmem:[%s56 + $0x118] sm:$0xff]
        %129 = vst [vmem:[%s57 + $0x118] sm:$0xff] %v128
        %v130 = vld [vmem:[%s56 + $0x120] sm:$0xff]
        %131 = vst [vmem:[%s57 + $0x120] sm:$0xff] %v130
        %v132 = vld [vmem:[%s56 + $0x128] sm:$0xff]
        %133 = vst [vmem:[%s57 + $0x128] sm:$0xff] %v132
        %v134 = vld [vmem:[%s56 + $0x130] sm:$0xff]
        %135 = vst [vmem:[%s57 + $0x130] sm:$0xff] %v134
        %v136 = vld [vmem:[%s56 + $0x138] sm:$0xff]
        %137 = vst [vmem:[%s57 + $0x138] sm:$0xff] %v136
        %v138 = vld [vmem:[%s56 + $0x140] sm:$0xff]
        %139 = vst [vmem:[%s57 + $0x140] sm:$0xff] %v138
        %v140 = vld [vmem:[%s56 + $0x148] sm:$0xff]
        %141 = vst [vmem:[%s57 + $0x148] sm:$0xff] %v140
        %v142 = vld [vmem:[%s56 + $0x150] sm:$0xff]
        %143 = vst [vmem:[%s57 + $0x150] sm:$0xff] %v142
        %v144 = vld [vmem:[%s56 + $0x158] sm:$0xff]
        %145 = vst [vmem:[%s57 + $0x158] sm:$0xff] %v144
        %v146 = vld [vmem:[%s56 + $0x160] sm:$0xff]
        %147 = vst [vmem:[%s57 + $0x160] sm:$0xff] %v146
        %v148 = vld [vmem:[%s56 + $0x168] sm:$0xff]
        %149 = vst [vmem:[%s57 + $0x168] sm:$0xff] %v148
        %v150 = vld [vmem:[%s56 + $0x170] sm:$0xff]
        %151 = vst [vmem:[%s57 + $0x170] sm:$0xff] %v150
        %v152 = vld [vmem:[%s56 + $0x178] sm:$0xff]
        %153 = vst [vmem:[%s57 + $0x178] sm:$0xff] %v152
        %v154 = vld [vmem:[%s56 + $0x180] sm:$0xff]
        %155 = vst [vmem:[%s57 + $0x180] sm:$0xff] %v154
        %v156 = vld [vmem:[%s56 + $0x188] sm:$0xff]
        %157 = vst [vmem:[%s57 + $0x188] sm:$0xff] %v156
        %v158 = vld [vmem:[%s56 + $0x190] sm:$0xff]
        %159 = vst [vmem:[%s57 + $0x190] sm:$0xff] %v158
        %v160 = vld [vmem:[%s56 + $0x198] sm:$0xff]
        %161 = vst [vmem:[%s57 + $0x198] sm:$0xff] %v160
        %v162 = vld [vmem:[%s56 + $0x1a0] sm:$0xff]
        %163 = vst [vmem:[%s57 + $0x1a0] sm:$0xff] %v162
        %v164 = vld [vmem:[%s56 + $0x1a8] sm:$0xff]
        %165 = vst [vmem:[%s57 + $0x1a8] sm:$0xff] %v164
        %v166 = vld [vmem:[%s56 + $0x1b0] sm:$0xff]
        %167 = vst [vmem:[%s57 + $0x1b0] sm:$0xff] %v166
        %v168 = vld [vmem:[%s56 + $0x1b8] sm:$0xff]
        %169 = vst [vmem:[%s57 + $0x1b8] sm:$0xff] %v168
        %v170 = vld [vmem:[%s56 + $0x1c0] sm:$0xff]
        %171 = vst [vmem:[%s57 + $0x1c0] sm:$0xff] %v170
        %v172 = vld [vmem:[%s56 + $0x1c8] sm:$0xff]
        %173 = vst [vmem:[%s57 + $0x1c8] sm:$0xff] %v172
        %v174 = vld [vmem:[%s56 + $0x1d0] sm:$0xff]
        %175 = vst [vmem:[%s57 + $0x1d0] sm:$0xff] %v174
        %v176 = vld [vmem:[%s56 + $0x1d8] sm:$0xff]
        %177 = vst [vmem:[%s57 + $0x1d8] sm:$0xff] %v176
        %v178 = vld [vmem:[%s56 + $0x1e0] sm:$0xff]
        %179 = vst [vmem:[%s57 + $0x1e0] sm:$0xff] %v178
        %v180 = vld [vmem:[%s56 + $0x1e8] sm:$0xff]
        %181 = vst [vmem:[%s57 + $0x1e8] sm:$0xff] %v180
        %v182 = vld [vmem:[%s56 + $0x1f0] sm:$0xff]
        %183 = vst [vmem:[%s57 + $0x1f0] sm:$0xff] %v182
        %v184 = vld [vmem:[%s56 + $0x1f8] sm:$0xff]
        %185 = vst [vmem:[%s57 + $0x1f8] sm:$0xff] %v184
        %v186 = vld [vmem:[%s56 + $0x200] sm:$0xff]
        %187 = vst [vmem:[%s57 + $0x200] sm:$0xff] %v186
        %v188 = vld [vmem:[%s56 + $0x208] sm:$0xff]
        %189 = vst [vmem:[%s57 + $0x208] sm:$0xff] %v188
        %v190 = vld [vmem:[%s56 + $0x210] sm:$0xff]
        %191 = vst [vmem:[%s57 + $0x210] sm:$0xff] %v190
        %v192 = vld [vmem:[%s56 + $0x218] sm:$0xff]
        %193 = vst [vmem:[%s57 + $0x218] sm:$0xff] %v192
        %v194 = vld [vmem:[%s56 + $0x220] sm:$0xff]
        %195 = vst [vmem:[%s57 + $0x220] sm:$0xff] %v194
        %v196 = vld [vmem:[%s56 + $0x228] sm:$0xff]
        %197 = vst [vmem:[%s57 + $0x228] sm:$0xff] %v196
        %v198 = vld [vmem:[%s56 + $0x230] sm:$0xff]
        %199 = vst [vmem:[%s57 + $0x230] sm:$0xff] %v198
        %v200 = vld [vmem:[%s56 + $0x238] sm:$0xff]
        %201 = vst [vmem:[%s57 + $0x238] sm:$0xff] %v200
        %v202 = vld [vmem:[%s56 + $0x240] sm:$0xff]
        %203 = vst [vmem:[%s57 + $0x240] sm:$0xff] %v202
        %v204 = vld [vmem:[%s56 + $0x248] sm:$0xff]
        %205 = vst [vmem:[%s57 + $0x248] sm:$0xff] %v204
        %v206 = vld [vmem:[%s56 + $0x250] sm:$0xff]
        %207 = vst [vmem:[%s57 + $0x250] sm:$0xff] %v206
        %v208 = vld [vmem:[%s56 + $0x258] sm:$0xff]
        %209 = vst [vmem:[%s57 + $0x258] sm:$0xff] %v208
        %v210 = vld [vmem:[%s56 + $0x260] sm:$0xff]
        %211 = vst [vmem:[%s57 + $0x260] sm:$0xff] %v210
        %v212 = vld [vmem:[%s56 + $0x268] sm:$0xff]
        %213 = vst [vmem:[%s57 + $0x268] sm:$0xff] %v212
        %v214 = vld [vmem:[%s56 + $0x270] sm:$0xff]
        %215 = vst [vmem:[%s57 + $0x270] sm:$0xff] %v214
        %v216 = vld [vmem:[%s56 + $0x278] sm:$0xff]
        %217 = vst [vmem:[%s57 + $0x278] sm:$0xff] %v216
        %v218 = vld [vmem:[%s56 + $0x280] sm:$0xff]
        %219 = vst [vmem:[%s57 + $0x280] sm:$0xff] %v218
        %v220 = vld [vmem:[%s56 + $0x288] sm:$0xff]
        %221 = vst [vmem:[%s57 + $0x288] sm:$0xff] %v220
        %v222 = vld [vmem:[%s56 + $0x290] sm:$0xff]
        %223 = vst [vmem:[%s57 + $0x290] sm:$0xff] %v222
        %v224 = vld [vmem:[%s56 + $0x298] sm:$0xff]
        %225 = vst [vmem:[%s57 + $0x298] sm:$0xff] %v224
        %v226 = vld [vmem:[%s56 + $0x2a0] sm:$0xff]
        %227 = vst [vmem:[%s57 + $0x2a0] sm:$0xff] %v226
        %v228 = vld [vmem:[%s56 + $0x2a8] sm:$0xff]
        %229 = vst [vmem:[%s57 + $0x2a8] sm:$0xff] %v228
        %v230 = vld [vmem:[%s56 + $0x2b0] sm:$0xff]
        %231 = vst [vmem:[%s57 + $0x2b0] sm:$0xff] %v230
        %v232 = vld [vmem:[%s56 + $0x2b8] sm:$0xff]
        %233 = vst [vmem:[%s57 + $0x2b8] sm:$0xff] %v232
        %v234 = vld [vmem:[%s56 + $0x2c0] sm:$0xff]
        %235 = vst [vmem:[%s57 + $0x2c0] sm:$0xff] %v234
        %v236 = vld [vmem:[%s56 + $0x2c8] sm:$0xff]
        %237 = vst [vmem:[%s57 + $0x2c8] sm:$0xff] %v236
        %v238 = vld [vmem:[%s56 + $0x2d0] sm:$0xff]
        %239 = vst [vmem:[%s57 + $0x2d0] sm:$0xff] %v238
        %v240 = vld [vmem:[%s56 + $0x2d8] sm:$0xff]
        %241 = vst [vmem:[%s57 + $0x2d8] sm:$0xff] %v240
        %v242 = vld [vmem:[%s56 + $0x2e0] sm:$0xff]
        %243 = vst [vmem:[%s57 + $0x2e0] sm:$0xff] %v242
        %v244 = vld [vmem:[%s56 + $0x2e8] sm:$0xff]
        %245 = vst [vmem:[%s57 + $0x2e8] sm:$0xff] %v244
        %v246 = vld [vmem:[%s56 + $0x2f0] sm:$0xff]
        %247 = vst [vmem:[%s57 + $0x2f0] sm:$0xff] %v246
        %v248 = vld [vmem:[%s56 + $0x2f8] sm:$0xff]
        %249 = vst [vmem:[%s57 + $0x2f8] sm:$0xff] %v248
        %v250 = vld [vmem:[%s56 + $0x300] sm:$0xff]
        %251 = vst [vmem:[%s57 + $0x300] sm:$0xff] %v250
        %v252 = vld [vmem:[%s56 + $0x308] sm:$0xff]
        %253 = vst [vmem:[%s57 + $0x308] sm:$0xff] %v252
        %v254 = vld [vmem:[%s56 + $0x310] sm:$0xff]
        %255 = vst [vmem:[%s57 + $0x310] sm:$0xff] %v254
        %v256 = vld [vmem:[%s56 + $0x318] sm:$0xff]
        %257 = vst [vmem:[%s57 + $0x318] sm:$0xff] %v256
        %v258 = vld [vmem:[%s56 + $0x320] sm:$0xff]
        %259 = vst [vmem:[%s57 + $0x320] sm:$0xff] %v258
        %v260 = vld [vmem:[%s56 + $0x328] sm:$0xff]
        %261 = vst [vmem:[%s57 + $0x328] sm:$0xff] %v260
        %v262 = vld [vmem:[%s56 + $0x330] sm:$0xff]
        %263 = vst [vmem:[%s57 + $0x330] sm:$0xff] %v262
        %v264 = vld [vmem:[%s56 + $0x338] sm:$0xff]
        %265 = vst [vmem:[%s57 + $0x338] sm:$0xff] %v264
        %v266 = vld [vmem:[%s56 + $0x340] sm:$0xff]
        %267 = vst [vmem:[%s57 + $0x340] sm:$0xff] %v266
        %v268 = vld [vmem:[%s56 + $0x348] sm:$0xff]
        %269 = vst [vmem:[%s57 + $0x348] sm:$0xff] %v268
        %v270 = vld [vmem:[%s56 + $0x350] sm:$0xff]
        %271 = vst [vmem:[%s57 + $0x350] sm:$0xff] %v270
        %v272 = vld [vmem:[%s56 + $0x358] sm:$0xff]
        %273 = vst [vmem:[%s57 + $0x358] sm:$0xff] %v272
        %v274 = vld [vmem:[%s56 + $0x360] sm:$0xff]
        %275 = vst [vmem:[%s57 + $0x360] sm:$0xff] %v274
        %v276 = vld [vmem:[%s56 + $0x368] sm:$0xff]
        %277 = vst [vmem:[%s57 + $0x368] sm:$0xff] %v276
        %v278 = vld [vmem:[%s56 + $0x370] sm:$0xff]
        %279 = vst [vmem:[%s57 + $0x370] sm:$0xff] %v278
        %v280 = vld [vmem:[%s56 + $0x378] sm:$0xff]
        %281 = vst [vmem:[%s57 + $0x378] sm:$0xff] %v280
        %v282 = vld [vmem:[%s56 + $0x380] sm:$0xff]
        %283 = vst [vmem:[%s57 + $0x380] sm:$0xff] %v282
        %v284 = vld [vmem:[%s56 + $0x388] sm:$0xff]
        %285 = vst [vmem:[%s57 + $0x388] sm:$0xff] %v284
        %v286 = vld [vmem:[%s56 + $0x390] sm:$0xff]
        %287 = vst [vmem:[%s57 + $0x390] sm:$0xff] %v286
        %v288 = vld [vmem:[%s56 + $0x398] sm:$0xff]
        %289 = vst [vmem:[%s57 + $0x398] sm:$0xff] %v288
        %v290 = vld [vmem:[%s56 + $0x3a0] sm:$0xff]
        %291 = vst [vmem:[%s57 + $0x3a0] sm:$0xff] %v290
        %v292 = vld [vmem:[%s56 + $0x3a8] sm:$0xff]
        %293 = vst [vmem:[%s57 + $0x3a8] sm:$0xff] %v292
        %v294 = vld [vmem:[%s56 + $0x3b0] sm:$0xff]
        %295 = vst [vmem:[%s57 + $0x3b0] sm:$0xff] %v294
        %v296 = vld [vmem:[%s56 + $0x3b8] sm:$0xff]
        %297 = vst [vmem:[%s57 + $0x3b8] sm:$0xff] %v296
        %v298 = vld [vmem:[%s56 + $0x3c0] sm:$0xff]
        %299 = vst [vmem:[%s57 + $0x3c0] sm:$0xff] %v298
        %v300 = vld [vmem:[%s56 + $0x3c8] sm:$0xff]
        %301 = vst [vmem:[%s57 + $0x3c8] sm:$0xff] %v300
        %v302 = vld [vmem:[%s56 + $0x3d0] sm:$0xff]
        %303 = vst [vmem:[%s57 + $0x3d0] sm:$0xff] %v302
        %v304 = vld [vmem:[%s56 + $0x3d8] sm:$0xff]
        %305 = vst [vmem:[%s57 + $0x3d8] sm:$0xff] %v304
        %v306 = vld [vmem:[%s56 + $0x3e0] sm:$0xff]
        %307 = vst [vmem:[%s57 + $0x3e0] sm:$0xff] %v306
        %v308 = vld [vmem:[%s56 + $0x3e8] sm:$0xff]
        %309 = vst [vmem:[%s57 + $0x3e8] sm:$0xff] %v308
        %v310 = vld [vmem:[%s56 + $0x3f0] sm:$0xff]
        %311 = vst [vmem:[%s57 + $0x3f0] sm:$0xff] %v310
        %v312 = vld [vmem:[%s56 + $0x3f8] sm:$0xff]
        %313 = vst [vmem:[%s57 + $0x3f8] sm:$0xff] %v312
      $region49: #{manhattan_lstm_forward.1} parent=43 // loop_footer
        %s55 = sadd.s32 1, %s51
      $region50: #{manhattan_lstm_forward.1} parent=43 // loop_footer_branch
        %50 = sbr.rel target = $region46
      $region51: #{manhattan_lstm_forward.1} parent=43 // loop_exit
        _
    $region44: #{manhattan_lstm_forward.1} parent=28 // pred_fallthru
      _
    %p314 = pneg %p46
    // Predicated region
    $region52: #{manhattan_lstm_forward.1} parent=28 // pred_check
      _
    $region53: #{manhattan_lstm_forward.1} parent=28 // pred_check_branch
      %316 = sbr.rel (%p46) target = $region55
    $region54: #{manhattan_lstm_forward.1} parent=28 // pred_region
      %s317 = sand.u32 1024, 7
    $region55: #{manhattan_lstm_forward.1} parent=28 // pred_fallthru
      _
  $region29: #{manhattan_lstm_forward.1} parent=0 // pred_fallthru
    _
  // Predicated region
  $region30: #{manhattan_lstm_forward.1} parent=0 // pred_check
    %p30 = pneg %p26
  $region31: #{manhattan_lstm_forward.1} parent=0 // pred_check_branch
    %32 = sbr.rel (%p30) target = $region33
  $region32: #{manhattan_lstm_forward.1} parent=0 // pred_region
    %s33 = sshll.u32 1, 1024
    %s34 = ssub.s32 %s33, 1
    loop: start=0, step=1, limit=1
    $region34: #{manhattan_lstm_forward.1} parent=32 // loop_pre_header
      _
    $region35: #{manhattan_lstm_forward.1} parent=32 // loop_header
      %s36 = sphi 0, %s40
      %p37 = scmp.ge.s32.totalorder %s36, 1
      %s41 = sphi %s4, %s4
      %s42 = sphi [#allocation3], [#allocation3]
    $region36: #{manhattan_lstm_forward.1} parent=32 // loop_header_branch
      %39 = sbr.rel (%p37) target = $region40
    $region37: #{manhattan_lstm_forward.1} parent=32 // loop_body
      %v43 = vld [vmem:[%s41] sm:%s34]
      %44 = vst [vmem:[%s42] sm:%s34] %v43
    $region38: #{manhattan_lstm_forward.1} parent=32 // loop_footer
      %s40 = sadd.s32 1, %s36
    $region39: #{manhattan_lstm_forward.1} parent=32 // loop_footer_branch
      %35 = sbr.rel target = $region35
    $region40: #{manhattan_lstm_forward.1} parent=32 // loop_exit
      _
  $region33: #{manhattan_lstm_forward.1} parent=0 // pred_fallthru
    _
  // Predicated region
  $region56: #{manhattan_lstm_forward.1} parent=0 // pred_check
    _
  $region57: #{manhattan_lstm_forward.1} parent=0 // pred_check_branch
    %320 = sbr.rel (0) target = $region59
  $region58: #{manhattan_lstm_forward.1} parent=0 // pred_region
    %321 = vsyncadd [#allocation5], 16384
  $region59: #{manhattan_lstm_forward.1} parent=0 // pred_fallthru
    _
  %s322 = scalar_lea.sflag [#allocation5], 1
  %p324 = scmp.lt.u32.totalorder 128, 8
  %p325 = pneg %p324
  // Predicated region
  $region60: #{manhattan_lstm_forward.1} parent=0 // pred_check
    _
  $region61: #{manhattan_lstm_forward.1} parent=0 // pred_check_branch
    %327 = sbr.rel (%p324) target = $region63
  $region62: #{manhattan_lstm_forward.1} parent=0 // pred_region
    %s343 = sand.u32 128, 7
    %p344 = scmp.eq.s32.totalorder %s343, 0
    // Predicated region
    $region75: #{manhattan_lstm_forward.1} parent=62 // pred_check
      %p345 = pneg %p344
    $region76: #{manhattan_lstm_forward.1} parent=62 // pred_check_branch
      %347 = sbr.rel (%p345) target = $region78
    $region77: #{manhattan_lstm_forward.1} parent=62 // pred_region
      loop: start=0, step=1, limit=1
      $region79: #{manhattan_lstm_forward.1} parent=77 // loop_pre_header
        _
      $region80: #{manhattan_lstm_forward.1} parent=77 // loop_header
        %s349 = sphi 0, %s353
        %p350 = scmp.ge.s32.totalorder %s349, 1
        %s354 = sphi %s6, %s6
        %s355 = sphi [#allocation4], [#allocation4]
      $region81: #{manhattan_lstm_forward.1} parent=77 // loop_header_branch
        %352 = sbr.rel (%p350) target = $region85
      $region82: #{manhattan_lstm_forward.1} parent=77 // loop_body
        %v356 = vld [vmem:[%s354] sm:$0xff]
        %357 = vst [vmem:[%s355] sm:$0xff] %v356
        %v358 = vld [vmem:[%s354 + $0x8] sm:$0xff]
        %359 = vst [vmem:[%s355 + $0x8] sm:$0xff] %v358
        %v360 = vld [vmem:[%s354 + $0x10] sm:$0xff]
        %361 = vst [vmem:[%s355 + $0x10] sm:$0xff] %v360
        %v362 = vld [vmem:[%s354 + $0x18] sm:$0xff]
        %363 = vst [vmem:[%s355 + $0x18] sm:$0xff] %v362
        %v364 = vld [vmem:[%s354 + $0x20] sm:$0xff]
        %365 = vst [vmem:[%s355 + $0x20] sm:$0xff] %v364
        %v366 = vld [vmem:[%s354 + $0x28] sm:$0xff]
        %367 = vst [vmem:[%s355 + $0x28] sm:$0xff] %v366
        %v368 = vld [vmem:[%s354 + $0x30] sm:$0xff]
        %369 = vst [vmem:[%s355 + $0x30] sm:$0xff] %v368
        %v370 = vld [vmem:[%s354 + $0x38] sm:$0xff]
        %371 = vst [vmem:[%s355 + $0x38] sm:$0xff] %v370
        %v372 = vld [vmem:[%s354 + $0x40] sm:$0xff]
        %373 = vst [vmem:[%s355 + $0x40] sm:$0xff] %v372
        %v374 = vld [vmem:[%s354 + $0x48] sm:$0xff]
        %375 = vst [vmem:[%s355 + $0x48] sm:$0xff] %v374
        %v376 = vld [vmem:[%s354 + $0x50] sm:$0xff]
        %377 = vst [vmem:[%s355 + $0x50] sm:$0xff] %v376
        %v378 = vld [vmem:[%s354 + $0x58] sm:$0xff]
        %379 = vst [vmem:[%s355 + $0x58] sm:$0xff] %v378
        %v380 = vld [vmem:[%s354 + $0x60] sm:$0xff]
        %381 = vst [vmem:[%s355 + $0x60] sm:$0xff] %v380
        %v382 = vld [vmem:[%s354 + $0x68] sm:$0xff]
        %383 = vst [vmem:[%s355 + $0x68] sm:$0xff] %v382
        %v384 = vld [vmem:[%s354 + $0x70] sm:$0xff]
        %385 = vst [vmem:[%s355 + $0x70] sm:$0xff] %v384
        %v386 = vld [vmem:[%s354 + $0x78] sm:$0xff]
        %387 = vst [vmem:[%s355 + $0x78] sm:$0xff] %v386
      $region83: #{manhattan_lstm_forward.1} parent=77 // loop_footer
        %s353 = sadd.s32 1, %s349
      $region84: #{manhattan_lstm_forward.1} parent=77 // loop_footer_branch
        %348 = sbr.rel target = $region80
      $region85: #{manhattan_lstm_forward.1} parent=77 // loop_exit
        _
    $region78: #{manhattan_lstm_forward.1} parent=62 // pred_fallthru
      _
    %p388 = pneg %p344
    // Predicated region
    $region86: #{manhattan_lstm_forward.1} parent=62 // pred_check
      _
    $region87: #{manhattan_lstm_forward.1} parent=62 // pred_check_branch
      %390 = sbr.rel (%p344) target = $region89
    $region88: #{manhattan_lstm_forward.1} parent=62 // pred_region
      %s391 = sand.u32 128, 7
    $region89: #{manhattan_lstm_forward.1} parent=62 // pred_fallthru
      _
  $region63: #{manhattan_lstm_forward.1} parent=0 // pred_fallthru
    _
  // Predicated region
  $region64: #{manhattan_lstm_forward.1} parent=0 // pred_check
    %p328 = pneg %p324
  $region65: #{manhattan_lstm_forward.1} parent=0 // pred_check_branch
    %330 = sbr.rel (%p328) target = $region67
  $region66: #{manhattan_lstm_forward.1} parent=0 // pred_region
    %s331 = sshll.u32 1, 128
    %s332 = ssub.s32 %s331, 1
    loop: start=0, step=1, limit=1
    $region68: #{manhattan_lstm_forward.1} parent=66 // loop_pre_header
      _
    $region69: #{manhattan_lstm_forward.1} parent=66 // loop_header
      %s334 = sphi 0, %s338
      %p335 = scmp.ge.s32.totalorder %s334, 1
      %s339 = sphi %s6, %s6
      %s340 = sphi [#allocation4], [#allocation4]
    $region70: #{manhattan_lstm_forward.1} parent=66 // loop_header_branch
      %337 = sbr.rel (%p335) target = $region74
    $region71: #{manhattan_lstm_forward.1} parent=66 // loop_body
      %v341 = vld [vmem:[%s339] sm:%s332]
      %342 = vst [vmem:[%s340] sm:%s332] %v341
    $region72: #{manhattan_lstm_forward.1} parent=66 // loop_footer
      %s338 = sadd.s32 1, %s334
    $region73: #{manhattan_lstm_forward.1} parent=66 // loop_footer_branch
      %333 = sbr.rel target = $region69
    $region74: #{manhattan_lstm_forward.1} parent=66 // loop_exit
      _
  $region67: #{manhattan_lstm_forward.1} parent=0 // pred_fallthru
    _
  // Predicated region
  $region90: #{manhattan_lstm_forward.1} parent=0 // pred_check
    _
  $region91: #{manhattan_lstm_forward.1} parent=0 // pred_check_branch
    %394 = sbr.rel (0) target = $region93
  $region92: #{manhattan_lstm_forward.1} parent=0 // pred_region
    %395 = vsyncadd %s322, 2048
  $region93: #{manhattan_lstm_forward.1} parent=0 // pred_fallthru
    _
  %v396 = vld [vmem:[%s1] sm:$0xff]
  %v397 = vld [vmem:[%s1 + $0x8] sm:$0xff]
  %v398 = vld [vmem:[%s2] sm:$0xff]
  %v399 = vld [vmem:[%s2 + $0x8] sm:$0xff]
  %v400 = vld [vmem:[%s2 + $0x10] sm:$0xff]
  %v401 = vld [vmem:[%s2 + $0x18] sm:$0xff]
  %v402 = vld [vmem:[%s3] sm:$0x1]
  %v403 = vld [vmem:[%s0] sm:$0xff]
  %v404 = vld [vmem:[%s0 + $0x8] sm:$0xff]
  %v405 = vld [vmem:[%s0 + $0x10] sm:$0xff]
  %v406 = vld [vmem:[%s0 + $0x18] sm:$0xff]
  %v407 = vld [vmem:[%s0 + $0x20] sm:$0xff]
  %v408 = vld [vmem:[%s0 + $0x28] sm:$0xff]
  %v409 = vld [vmem:[%s0 + $0x30] sm:$0xff]
  %v410 = vld [vmem:[%s0 + $0x38] sm:$0xff]
  %v411 = vld [vmem:[%s0 + $0x40] sm:$0xff]
  %v412 = vld [vmem:[%s0 + $0x48] sm:$0xff]
  %v413 = vld [vmem:[%s0 + $0x50] sm:$0xff]
  %v414 = vld [vmem:[%s0 + $0x58] sm:$0xff]
  %v415 = vld [vmem:[%s0 + $0x60] sm:$0xff]
  %v416 = vld [vmem:[%s0 + $0x68] sm:$0xff]
  %v417 = vld [vmem:[%s0 + $0x70] sm:$0xff]
  %v418 = vld [vmem:[%s0 + $0x78] sm:$0xff]
  %v420 = vlaneseq
  %v421 = vshrl.u32 %v420, 7
  %v422 = vsub.s32 0, %v421
  %v423 = vrot.slane %v402, %v422
  %vm425 = vcmask 130048
  %v427 = vsel %vm425, %v403, 0
  %v430 = vsel %vm425, %v404, 0
  %v433 = vsel %vm425, %v405, 0
  %v436 = vsel %vm425, %v406, 0
  %v439 = vsel %vm425, %v407, 0
  %v442 = vsel %vm425, %v408, 0
  %v445 = vsel %vm425, %v409, 0
  %v448 = vsel %vm425, %v410, 0
  %v451 = vsel %vm425, %v411, 0
  %v454 = vsel %vm425, %v412, 0
  %v457 = vsel %vm425, %v413, 0
  %v460 = vsel %vm425, %v414, 0
  %v463 = vsel %vm425, %v415, 0
  %v466 = vsel %vm425, %v416, 0
  %v469 = vsel %vm425, %v417, 0
  %v472 = vsel %vm425, %v418, 0
  %474 = vmatprep.subr.mxu0 0.0
  %475 = vmatpush1.msra.mxu0 0.0
  %476 = vmatprep.subr.mxu0 0.0
  %477 = vmatpush1.msra.mxu0 0.0
  %478 = vmatprep.subr.mxu0 0.0
  %479 = vmatpush1.msra.mxu0 0.0
  %480 = vmatprep.subr.mxu0 0.0
  %481 = vmatpush1.msra.mxu0 0.0
  %482 = vmatprep.subr.mxu0 0.0
  %483 = vmatpush1.msra.mxu0 0.0
  %484 = vmatprep.subr.mxu0 0.0
  %485 = vmatpush1.msra.mxu0 0.0
  %486 = vmatprep.subr.mxu0 0.0
  %487 = vmatpush1.msra.mxu0 0.0
  %488 = vmatprep.subr.mxu0 0.0
  %489 = vmatpush1.msra.mxu0 0.0
  %490 = vmatprep.subr.mxu0 0.0
  %491 = vmatpush1.msra.mxu0 0.0
  %492 = vmatprep.subr.mxu0 0.0
  %493 = vmatpush1.msra.mxu0 0.0
  %494 = vmatprep.subr.mxu0 0.0
  %495 = vmatpush1.msra.mxu0 0.0
  %496 = vmatprep.subr.mxu0 0.0
  %497 = vmatpush1.msra.mxu0 0.0
  %498 = vmatprep.subr.mxu0 0.0
  %499 = vmatpush1.msra.mxu0 0.0
  %500 = vmatprep.subr.mxu0 0.0
  %501 = vmatpush1.msra.mxu0 0.0
  %502 = vmatprep.subr.mxu0 0.0
  %503 = vmatpush1.msra.mxu0 %v397
  %504 = vmatprep.subr.mxu0 0.0
  %505 = vmatpush1.msra.mxu0 %v396
  %506 = vmatprep.subr.mxu0 0.0
  %507 = vmatpush2.msra.mxu0 0.0
  %508 = vmatprep.subr.mxu0 0.0
  %509 = vmatpush2.msra.mxu0 0.0
  %510 = vmatprep.subr.mxu0 0.0
  %511 = vmatpush2.msra.mxu0 0.0
  %512 = vmatprep.subr.mxu0 0.0
  %513 = vmatpush2.msra.mxu0 0.0
  %514 = vmatprep.subr.mxu0 0.0
  %515 = vmatpush2.msra.mxu0 0.0
  %516 = vmatprep.subr.mxu0 0.0
  %517 = vmatpush2.msra.mxu0 0.0
  %518 = vmatprep.subr.mxu0 0.0
  %519 = vmatpush2.msra.mxu0 0.0
  %520 = vmatprep.subr.mxu0 0.0
  %521 = vmatpush2.msra.mxu0 0.0
  %522 = vmatprep.subr.mxu0 0.0
  %523 = vmatpush2.msra.mxu0 0.0
  %524 = vmatprep.subr.mxu0 0.0
  %525 = vmatpush2.msra.mxu0 0.0
  %526 = vmatprep.subr.mxu0 0.0
  %527 = vmatpush2.msra.mxu0 0.0
  %528 = vmatprep.subr.mxu0 0.0
  %529 = vmatpush2.msra.mxu0 0.0
  %530 = vmatprep.subr.mxu0 0.0
  %531 = vmatpush2.msra.mxu0 0.0
  %532 = vmatprep.subr.mxu0 0.0
  %533 = vmatpush2.msra.mxu0 0.0
  %534 = vmatprep.subr.mxu0 0.0
  %535 = vmatpush2.msra.mxu0 0.0
  %536 = vmatprep.subr.mxu0 0.0
  %537 = vmatpush2.msra.mxu0 0.0
  %538 = vmatprep.mubr.f32.mxu0 0.0
  %539 = vmatmul.mubr.f32.gmra.mxu0 %v427
  %v540 = vpop.f32.mrf.mxu0
  %v541 = vadd.f32 %v423, %v540
  %v542 = vpop.f32.mrf.mxu0
  %543 = vmatprep.mubr.f32.mxu0 0.0
  %544 = vmatmul.mubr.f32.gmra.mxu0 %v430
  %v545 = vpop.f32.mrf.mxu0
  %v546 = vadd.f32 %v423, %v545
  %v547 = vpop.f32.mrf.mxu0
  %548 = vmatprep.mubr.f32.mxu0 0.0
  %549 = vmatmul.mubr.f32.gmra.mxu0 %v433
  %v550 = vpop.f32.mrf.mxu0
  %v551 = vadd.f32 %v423, %v550
  %v552 = vpop.f32.mrf.mxu0
  %553 = vmatprep.mubr.f32.mxu0 0.0
  %554 = vmatmul.mubr.f32.gmra.mxu0 %v436
  %v555 = vpop.f32.mrf.mxu0
  %v556 = vadd.f32 %v423, %v555
  %v557 = vpop.f32.mrf.mxu0
  %558 = vmatprep.mubr.f32.mxu0 0.0
  %559 = vmatmul.mubr.f32.gmra.mxu0 %v439
  %v560 = vpop.f32.mrf.mxu0
  %v561 = vadd.f32 %v423, %v560
  %v562 = vpop.f32.mrf.mxu0
  %563 = vmatprep.mubr.f32.mxu0 0.0
  %564 = vmatmul.mubr.f32.gmra.mxu0 %v442
  %v565 = vpop.f32.mrf.mxu0
  %v566 = vadd.f32 %v423, %v565
  %v567 = vpop.f32.mrf.mxu0
  %568 = vmatprep.mubr.f32.mxu0 0.0
  %569 = vmatmul.mubr.f32.gmra.mxu0 %v445
  %v570 = vpop.f32.mrf.mxu0
  %v571 = vadd.f32 %v423, %v570
  %v572 = vpop.f32.mrf.mxu0
  %573 = vmatprep.mubr.f32.mxu0 0.0
  %574 = vmatmul.mubr.f32.gmra.mxu0 %v448
  %v575 = vpop.f32.mrf.mxu0
  %v576 = vadd.f32 %v423, %v575
  %v577 = vpop.f32.mrf.mxu0
  %578 = vmatprep.mubr.f32.mxu0 0.0
  %579 = vmatmul.mubr.f32.gmra.mxu0 %v451
  %v580 = vpop.f32.mrf.mxu0
  %v581 = vadd.f32 %v423, %v580
  %v582 = vpop.f32.mrf.mxu0
  %583 = vmatprep.mubr.f32.mxu0 0.0
  %584 = vmatmul.mubr.f32.gmra.mxu0 %v454
  %v585 = vpop.f32.mrf.mxu0
  %v586 = vadd.f32 %v423, %v585
  %v587 = vpop.f32.mrf.mxu0
  %588 = vmatprep.mubr.f32.mxu0 0.0
  %589 = vmatmul.mubr.f32.gmra.mxu0 %v457
  %v590 = vpop.f32.mrf.mxu0
  %v591 = vadd.f32 %v423, %v590
  %v592 = vpop.f32.mrf.mxu0
  %593 = vmatprep.mubr.f32.mxu0 0.0
  %594 = vmatmul.mubr.f32.gmra.mxu0 %v460
  %v595 = vpop.f32.mrf.mxu0
  %v596 = vadd.f32 %v423, %v595
  %v597 = vpop.f32.mrf.mxu0
  %598 = vmatprep.mubr.f32.mxu0 0.0
  %599 = vmatmul.mubr.f32.gmra.mxu0 %v463
  %v600 = vpop.f32.mrf.mxu0
  %v601 = vadd.f32 %v423, %v600
  %v602 = vpop.f32.mrf.mxu0
  %603 = vmatprep.mubr.f32.mxu0 0.0
  %604 = vmatmul.mubr.f32.gmra.mxu0 %v466
  %v605 = vpop.f32.mrf.mxu0
  %v606 = vadd.f32 %v423, %v605
  %v607 = vpop.f32.mrf.mxu0
  %608 = vmatprep.mubr.f32.mxu0 0.0
  %609 = vmatmul.mubr.f32.gmra.mxu0 %v469
  %v610 = vpop.f32.mrf.mxu0
  %v611 = vadd.f32 %v423, %v610
  %v612 = vpop.f32.mrf.mxu0
  %613 = vmatprep.mubr.f32.mxu0 0.0
  %614 = vmatmul.mubr.f32.gmra.mxu0 %v472
  %v615 = vpop.f32.mrf.mxu0
  %v616 = vadd.f32 %v423, %v615
  %v617 = vpop.f32.mrf.mxu0
  %618 = vdwg.mxu0
  %619 = vst [vmem:[#allocation2] sm:$0xff] %v541
  %620 = vst [vmem:[#allocation2 + $0x8] sm:$0xff] %v546
  %621 = vst [vmem:[#allocation2 + $0x10] sm:$0xff] %v551
  %622 = vst [vmem:[#allocation2 + $0x18] sm:$0xff] %v556
  %623 = vst [vmem:[#allocation2 + $0x20] sm:$0xff] %v561
  %624 = vst [vmem:[#allocation2 + $0x28] sm:$0xff] %v566
  %625 = vst [vmem:[#allocation2 + $0x30] sm:$0xff] %v571
  %626 = vst [vmem:[#allocation2 + $0x38] sm:$0xff] %v576
  %627 = vst [vmem:[#allocation2 + $0x40] sm:$0xff] %v581
  %628 = vst [vmem:[#allocation2 + $0x48] sm:$0xff] %v586
  %629 = vst [vmem:[#allocation2 + $0x50] sm:$0xff] %v591
  %630 = vst [vmem:[#allocation2 + $0x58] sm:$0xff] %v596
  %631 = vst [vmem:[#allocation2 + $0x60] sm:$0xff] %v601
  %632 = vst [vmem:[#allocation2 + $0x68] sm:$0xff] %v606
  %633 = vst [vmem:[#allocation2 + $0x70] sm:$0xff] %v611
  %634 = vst [vmem:[#allocation2 + $0x78] sm:$0xff] %v616
  %v635 = vld [vmem:[#allocation2] sm:$0xff]
  %v636 = vld [vmem:[#allocation2 + $0x8] sm:$0xff]
  %vm637 = vcmask 261120
  %v639 = vsel %vm637, 0.0, 0
  %641 = vmatprep.subr.mxu0 0.0
  %642 = vmatpush1.msra.mxu0 0.0
  %643 = vmatprep.subr.mxu0 0.0
  %644 = vmatpush1.msra.mxu0 0.0
  %645 = vmatprep.subr.mxu0 0.0
  %646 = vmatpush1.msra.mxu0 0.0
  %647 = vmatprep.subr.mxu0 0.0
  %648 = vmatpush1.msra.mxu0 0.0
  %649 = vmatprep.subr.mxu0 0.0
  %650 = vmatpush1.msra.mxu0 0.0
  %651 = vmatprep.subr.mxu0 0.0
  %652 = vmatpush1.msra.mxu0 0.0
  %653 = vmatprep.subr.mxu0 0.0
  %654 = vmatpush1.msra.mxu0 0.0
  %655 = vmatprep.subr.mxu0 0.0
  %656 = vmatpush1.msra.mxu0 0.0
  %657 = vmatprep.subr.mxu0 0.0
  %658 = vmatpush1.msra.mxu0 0.0
  %659 = vmatprep.subr.mxu0 0.0
  %660 = vmatpush1.msra.mxu0 0.0
  %661 = vmatprep.subr.mxu0 0.0
  %662 = vmatpush1.msra.mxu0 0.0
  %663 = vmatprep.subr.mxu0 0.0
  %664 = vmatpush1.msra.mxu0 0.0
  %665 = vmatprep.subr.mxu0 0.0
  %666 = vmatpush1.msra.mxu0 %v401
  %667 = vmatprep.subr.mxu0 0.0
  %668 = vmatpush1.msra.mxu0 %v400
  %669 = vmatprep.subr.mxu0 0.0
  %670 = vmatpush1.msra.mxu0 %v399
  %671 = vmatprep.subr.mxu0 0.0
  %672 = vmatpush1.msra.mxu0 %v398
  %673 = vmatprep.subr.mxu0 0.0
  %674 = vmatpush2.msra.mxu0 0.0
  %675 = vmatprep.subr.mxu0 0.0
  %676 = vmatpush2.msra.mxu0 0.0
  %677 = vmatprep.subr.mxu0 0.0
  %678 = vmatpush2.msra.mxu0 0.0
  %679 = vmatprep.subr.mxu0 0.0
  %680 = vmatpush2.msra.mxu0 0.0
  %681 = vmatprep.subr.mxu0 0.0
  %682 = vmatpush2.msra.mxu0 0.0
  %683 = vmatprep.subr.mxu0 0.0
  %684 = vmatpush2.msra.mxu0 0.0
  %685 = vmatprep.subr.mxu0 0.0
  %686 = vmatpush2.msra.mxu0 0.0
  %687 = vmatprep.subr.mxu0 0.0
  %688 = vmatpush2.msra.mxu0 0.0
  %689 = vmatprep.subr.mxu0 0.0
  %690 = vmatpush2.msra.mxu0 0.0
  %691 = vmatprep.subr.mxu0 0.0
  %692 = vmatpush2.msra.mxu0 0.0
  %693 = vmatprep.subr.mxu0 0.0
  %694 = vmatpush2.msra.mxu0 0.0
  %695 = vmatprep.subr.mxu0 0.0
  %696 = vmatpush2.msra.mxu0 0.0
  %697 = vmatprep.subr.mxu0 0.0
  %698 = vmatpush2.msra.mxu0 0.0
  %699 = vmatprep.subr.mxu0 0.0
  %700 = vmatpush2.msra.mxu0 0.0
  %701 = vmatprep.subr.mxu0 0.0
  %702 = vmatpush2.msra.mxu0 0.0
  %703 = vmatprep.subr.mxu0 0.0
  %704 = vmatpush2.msra.mxu0 0.0
  %705 = vmatprep.mubr.f32.mxu0 0.0
  %706 = vmatmul.mubr.f32.gmra.mxu0 %v639
  %v707 = vpop.f32.mrf.mxu0
  %v708 = vadd.f32 0.0, %v707
  %v709 = vpop.f32.mrf.mxu0
  %710 = vmatprep.mubr.f32.mxu0 0.0
  %711 = vmatmul.mubr.f32.gmra.mxu0 %v639
  %v712 = vpop.f32.mrf.mxu0
  %v713 = vadd.f32 0.0, %v712
  %v714 = vpop.f32.mrf.mxu0
  %715 = vdwg.mxu0
  %v716 = vadd.f32 %v635, %v708
  %v717 = vadd.f32 %v636, %v713
  %v718 = vxor.u32 %v716, 2147483648
  %v719 = vxor.u32 %v717, 2147483648
  %v720 = vmul.f32 %v718, 1.442695
  %v721 = vpow.pop %v720
  %v722 = vmul.f32 %v719, 1.442695
  %v723 = vpow.pop %v722
  %v724 = vadd.f32 %v721, 1.0
  %v725 = vadd.f32 %v723, 1.0
  %v726 = vrcp.pop %v724
  %v727 = vmul.f32 1.0, %v726
  %v728 = vrcp.pop %v725
  %v729 = vmul.f32 1.0, %v728
  %v730 = vtanh.pop %v716
  %v731 = vtanh.pop %v717
  %v732 = vmul.f32 %v727, 0.0
  %v733 = vmul.f32 %v729, 0.0
  %736 = vrot.lane.b32.xlu0 %v730, 64
  %v737 = vpop.permute.xlu0 %736
  %738 = vrot.lane.b32.xlu0 %v731, 64
  %v739 = vpop.permute.xlu0 %738
  %v742 = vmul.f32 %v727, %v737
  %v743 = vmul.f32 %v729, %v739
  %746 = vrot.lane.b32.xlu0 %v742, 32
  %v747 = vpop.permute.xlu0 %746
  %748 = vrot.lane.b32.xlu0 %v743, 32
  %v749 = vpop.permute.xlu0 %748
  %v752 = vadd.f32 %v732, %v747
  %v753 = vadd.f32 %v733, %v749
  %v754 = vtanh.pop %v752
  %v755 = vtanh.pop %v753
  %758 = vrot.lane.b32.xlu0 %v754, 64
  %v759 = vpop.permute.xlu0 %758
  %760 = vrot.lane.b32.xlu0 %v755, 64
  %v761 = vpop.permute.xlu0 %760
  %v764 = vmul.f32 %v727, %v759
  %v765 = vmul.f32 %v729, %v761
  %v766 = vld [vmem:[#allocation2 + $0x10] sm:$0xff]
  %v767 = vld [vmem:[#allocation2 + $0x18] sm:$0xff]
  %770 = vrot.lane.b32.xlu0 %v764, 32
  %v771 = vpop.permute.xlu0 %770
  %772 = vrot.lane.b32.xlu0 %v765, 32
  %v773 = vpop.permute.xlu0 %772
  %v774 = vsel %vm637, %v771, 0
  %v776 = vsel %vm637, %v773, 0
  %778 = vmatprep.subr.mxu0 0.0
  %779 = vmatpush1.msra.mxu0 0.0
  %780 = vmatprep.subr.mxu0 0.0
  %781 = vmatpush1.msra.mxu0 0.0
  %782 = vmatprep.subr.mxu0 0.0
  %783 = vmatpush1.msra.mxu0 0.0
  %784 = vmatprep.subr.mxu0 0.0
  %785 = vmatpush1.msra.mxu0 0.0
  %786 = vmatprep.subr.mxu0 0.0
  %787 = vmatpush1.msra.mxu0 0.0
  %788 = vmatprep.subr.mxu0 0.0
  %789 = vmatpush1.msra.mxu0 0.0
  %790 = vmatprep.subr.mxu0 0.0
  %791 = vmatpush1.msra.mxu0 0.0
  %792 = vmatprep.subr.mxu0 0.0
  %793 = vmatpush1.msra.mxu0 0.0
  %794 = vmatprep.subr.mxu0 0.0
  %795 = vmatpush1.msra.mxu0 0.0
  %796 = vmatprep.subr.mxu0 0.0
  %797 = vmatpush1.msra.mxu0 0.0
  %798 = vmatprep.subr.mxu0 0.0
  %799 = vmatpush1.msra.mxu0 0.0
  %800 = vmatprep.subr.mxu0 0.0
  %801 = vmatpush1.msra.mxu0 0.0
  %802 = vmatprep.subr.mxu0 0.0
  %803 = vmatpush1.msra.mxu0 %v401
  %804 = vmatprep.subr.mxu0 0.0
  %805 = vmatpush1.msra.mxu0 %v400
  %806 = vmatprep.subr.mxu0 0.0
  %807 = vmatpush1.msra.mxu0 %v399
  %808 = vmatprep.subr.mxu0 0.0
  %809 = vmatpush1.msra.mxu0 %v398
  %810 = vmatprep.subr.mxu0 0.0
  %811 = vmatpush2.msra.mxu0 0.0
  %812 = vmatprep.subr.mxu0 0.0
  %813 = vmatpush2.msra.mxu0 0.0
  %814 = vmatprep.subr.mxu0 0.0
  %815 = vmatpush2.msra.mxu0 0.0
  %816 = vmatprep.subr.mxu0 0.0
  %817 = vmatpush2.msra.mxu0 0.0
  %818 = vmatprep.subr.mxu0 0.0
  %819 = vmatpush2.msra.mxu0 0.0
  %820 = vmatprep.subr.mxu0 0.0
  %821 = vmatpush2.msra.mxu0 0.0
  %822 = vmatprep.subr.mxu0 0.0
  %823 = vmatpush2.msra.mxu0 0.0
  %824 = vmatprep.subr.mxu0 0.0
  %825 = vmatpush2.msra.mxu0 0.0
  %826 = vmatprep.subr.mxu0 0.0
  %827 = vmatpush2.msra.mxu0 0.0
  %828 = vmatprep.subr.mxu0 0.0
  %829 = vmatpush2.msra.mxu0 0.0
  %830 = vmatprep.subr.mxu0 0.0
  %831 = vmatpush2.msra.mxu0 0.0
  %832 = vmatprep.subr.mxu0 0.0
  %833 = vmatpush2.msra.mxu0 0.0
  %834 = vmatprep.subr.mxu0 0.0
  %835 = vmatpush2.msra.mxu0 0.0
  %836 = vmatprep.subr.mxu0 0.0
  %837 = vmatpush2.msra.mxu0 0.0
  %838 = vmatprep.subr.mxu0 0.0
  %839 = vmatpush2.msra.mxu0 0.0
  %840 = vmatprep.subr.mxu0 0.0
  %841 = vmatpush2.msra.mxu0 0.0
  %842 = vmatprep.mubr.f32.mxu0 0.0
  %843 = vmatmul.mubr.f32.gmra.mxu0 %v774
  %v844 = vpop.f32.mrf.mxu0
  %v845 = vadd.f32 0.0, %v844
  %v846 = vpop.f32.mrf.mxu0
  %847 = vmatprep.mubr.f32.mxu0 0.0
  %848 = vmatmul.mubr.f32.gmra.mxu0 %v776
  %v849 = vpop.f32.mrf.mxu0
  %v850 = vadd.f32 0.0, %v849
  %v851 = vpop.f32.mrf.mxu0
  %852 = vdwg.mxu0
  %v853 = vadd.f32 %v766, %v845
  %v854 = vadd.f32 %v767, %v850
  %v855 = vxor.u32 %v853, 2147483648
  %v856 = vxor.u32 %v854, 2147483648
  %v857 = vmul.f32 %v855, 1.442695
  %v858 = vpow.pop %v857
  %v859 = vmul.f32 %v856, 1.442695
  %v860 = vpow.pop %v859
  %v861 = vadd.f32 %v858, 1.0
  %v862 = vadd.f32 %v860, 1.0
  %v863 = vrcp.pop %v861
  %v864 = vmul.f32 1.0, %v863
  %v865 = vrcp.pop %v862
  %v866 = vmul.f32 1.0, %v865
  %v867 = vtanh.pop %v853
  %v868 = vtanh.pop %v854
  %v869 = vmul.f32 %v864, %v752
  %v870 = vmul.f32 %v866, %v753
  %873 = vrot.lane.b32.xlu0 %v867, 64
  %v874 = vpop.permute.xlu0 %873
  %875 = vrot.lane.b32.xlu0 %v868, 64
  %v876 = vpop.permute.xlu0 %875
  %v879 = vmul.f32 %v864, %v874
  %v880 = vmul.f32 %v866, %v876
  %883 = vrot.lane.b32.xlu0 %v879, 32
  %v884 = vpop.permute.xlu0 %883
  %885 = vrot.lane.b32.xlu0 %v880, 32
  %v886 = vpop.permute.xlu0 %885
  %v889 = vadd.f32 %v869, %v884
  %v890 = vadd.f32 %v870, %v886
  %v891 = vtanh.pop %v889
  %v892 = vtanh.pop %v890
  %895 = vrot.lane.b32.xlu0 %v891, 64
  %v896 = vpop.permute.xlu0 %895
  %897 = vrot.lane.b32.xlu0 %v892, 64
  %v898 = vpop.permute.xlu0 %897
  %v901 = vmul.f32 %v864, %v896
  %v902 = vmul.f32 %v866, %v898
  %v903 = vld [vmem:[#allocation2 + $0x20] sm:$0xff]
  %v904 = vld [vmem:[#allocation2 + $0x28] sm:$0xff]
  %907 = vrot.lane.b32.xlu0 %v901, 32
  %v908 = vpop.permute.xlu0 %907
  %909 = vrot.lane.b32.xlu0 %v902, 32
  %v910 = vpop.permute.xlu0 %909
  %v911 = vsel %vm637, %v908, 0
  %v913 = vsel %vm637, %v910, 0
  %915 = vmatprep.subr.mxu0 0.0
  %916 = vmatpush1.msra.mxu0 0.0
  %917 = vmatprep.subr.mxu0 0.0
  %918 = vmatpush1.msra.mxu0 0.0
  %919 = vmatprep.subr.mxu0 0.0
  %920 = vmatpush1.msra.mxu0 0.0
  %921 = vmatprep.subr.mxu0 0.0
  %922 = vmatpush1.msra.mxu0 0.0
  %923 = vmatprep.subr.mxu0 0.0
  %924 = vmatpush1.msra.mxu0 0.0
  %925 = vmatprep.subr.mxu0 0.0
  %926 = vmatpush1.msra.mxu0 0.0
  %927 = vmatprep.subr.mxu0 0.0
  %928 = vmatpush1.msra.mxu0 0.0
  %929 = vmatprep.subr.mxu0 0.0
  %930 = vmatpush1.msra.mxu0 0.0
  %931 = vmatprep.subr.mxu0 0.0
  %932 = vmatpush1.msra.mxu0 0.0
  %933 = vmatprep.subr.mxu0 0.0
  %934 = vmatpush1.msra.mxu0 0.0
  %935 = vmatprep.subr.mxu0 0.0
  %936 = vmatpush1.msra.mxu0 0.0
  %937 = vmatprep.subr.mxu0 0.0
  %938 = vmatpush1.msra.mxu0 0.0
  %939 = vmatprep.subr.mxu0 0.0
  %940 = vmatpush1.msra.mxu0 %v401
  %941 = vmatprep.subr.mxu0 0.0
  %942 = vmatpush1.msra.mxu0 %v400
  %943 = vmatprep.subr.mxu0 0.0
  %944 = vmatpush1.msra.mxu0 %v399
  %945 = vmatprep.subr.mxu0 0.0
  %946 = vmatpush1.msra.mxu0 %v398
  %947 = vmatprep.subr.mxu0 0.0
  %948 = vmatpush2.msra.mxu0 0.0
  %949 = vmatprep.subr.mxu0 0.0
  %950 = vmatpush2.msra.mxu0 0.0
  %951 = vmatprep.subr.mxu0 0.0
  %952 = vmatpush2.msra.mxu0 0.0
  %953 = vmatprep.subr.mxu0 0.0
  %954 = vmatpush2.msra.mxu0 0.0
  %955 = vmatprep.subr.mxu0 0.0
  %956 = vmatpush2.msra.mxu0 0.0
  %957 = vmatprep.subr.mxu0 0.0
  %958 = vmatpush2.msra.mxu0 0.0
  %959 = vmatprep.subr.mxu0 0.0
  %960 = vmatpush2.msra.mxu0 0.0
  %961 = vmatprep.subr.mxu0 0.0
  %962 = vmatpush2.msra.mxu0 0.0
  %963 = vmatprep.subr.mxu0 0.0
  %964 = vmatpush2.msra.mxu0 0.0
  %965 = vmatprep.subr.mxu0 0.0
  %966 = vmatpush2.msra.mxu0 0.0
  %967 = vmatprep.subr.mxu0 0.0
  %968 = vmatpush2.msra.mxu0 0.0
  %969 = vmatprep.subr.mxu0 0.0
  %970 = vmatpush2.msra.mxu0 0.0
  %971 = vmatprep.subr.mxu0 0.0
  %972 = vmatpush2.msra.mxu0 0.0
  %973 = vmatprep.subr.mxu0 0.0
  %974 = vmatpush2.msra.mxu0 0.0
  %975 = vmatprep.subr.mxu0 0.0
  %976 = vmatpush2.msra.mxu0 0.0
  %977 = vmatprep.subr.mxu0 0.0
  %978 = vmatpush2.msra.mxu0 0.0
  %979 = vmatprep.mubr.f32.mxu0 0.0
  %980 = vmatmul.mubr.f32.gmra.mxu0 %v911
  %v981 = vpop.f32.mrf.mxu0
  %v982 = vadd.f32 0.0, %v981
  %v983 = vpop.f32.mrf.mxu0
  %984 = vmatprep.mubr.f32.mxu0 0.0
  %985 = vmatmul.mubr.f32.gmra.mxu0 %v913
  %v986 = vpop.f32.mrf.mxu0
  %v987 = vadd.f32 0.0, %v986
  %v988 = vpop.f32.mrf.mxu0
  %989 = vdwg.mxu0
  %v990 = vadd.f32 %v903, %v982
  %v991 = vadd.f32 %v904, %v987
  %v992 = vxor.u32 %v990, 2147483648
  %v993 = vxor.u32 %v991, 2147483648
  %v994 = vmul.f32 %v992, 1.442695
  %v995 = vpow.pop %v994
  %v996 = vmul.f32 %v993, 1.442695
  %v997 = vpow.pop %v996
  %v998 = vadd.f32 %v995, 1.0
  %v999 = vadd.f32 %v997, 1.0
  %v1000 = vrcp.pop %v998
  %v1001 = vmul.f32 1.0, %v1000
  %v1002 = vrcp.pop %v999
  %v1003 = vmul.f32 1.0, %v1002
  %v1004 = vtanh.pop %v990
  %v1005 = vtanh.pop %v991
  %v1006 = vmul.f32 %v1001, %v889
  %v1007 = vmul.f32 %v1003, %v890
  %1010 = vrot.lane.b32.xlu0 %v1004, 64
  %v1011 = vpop.permute.xlu0 %1010
  %1012 = vrot.lane.b32.xlu0 %v1005, 64
  %v1013 = vpop.permute.xlu0 %1012
  %v1016 = vmul.f32 %v1001, %v1011
  %v1017 = vmul.f32 %v1003, %v1013
  %1020 = vrot.lane.b32.xlu0 %v1016, 32
  %v1021 = vpop.permute.xlu0 %1020
  %1022 = vrot.lane.b32.xlu0 %v1017, 32
  %v1023 = vpop.permute.xlu0 %1022
  %v1026 = vadd.f32 %v1006, %v1021
  %v1027 = vadd.f32 %v1007, %v1023
  %v1028 = vtanh.pop %v1026
  %v1029 = vtanh.pop %v1027
  %1032 = vrot.lane.b32.xlu0 %v1028, 64
  %v1033 = vpop.permute.xlu0 %1032
  %1034 = vrot.lane.b32.xlu0 %v1029, 64
  %v1035 = vpop.permute.xlu0 %1034
  %v1038 = vmul.f32 %v1001, %v1033
  %v1039 = vmul.f32 %v1003, %v1035
  %v1040 = vld [vmem:[#allocation2 + $0x30] sm:$0xff]
  %v1041 = vld [vmem:[#allocation2 + $0x38] sm:$0xff]
  %1044 = vrot.lane.b32.xlu0 %v1038, 32
  %v1045 = vpop.permute.xlu0 %1044
  %1046 = vrot.lane.b32.xlu0 %v1039, 32
  %v1047 = vpop.permute.xlu0 %1046
  %v1048 = vsel %vm637, %v1045, 0
  %v1050 = vsel %vm637, %v1047, 0
  %1052 = vmatprep.subr.mxu0 0.0
  %1053 = vmatpush1.msra.mxu0 0.0
  %1054 = vmatprep.subr.mxu0 0.0
  %1055 = vmatpush1.msra.mxu0 0.0
  %1056 = vmatprep.subr.mxu0 0.0
  %1057 = vmatpush1.msra.mxu0 0.0
  %1058 = vmatprep.subr.mxu0 0.0
  %1059 = vmatpush1.msra.mxu0 0.0
  %1060 = vmatprep.subr.mxu0 0.0
  %1061 = vmatpush1.msra.mxu0 0.0
  %1062 = vmatprep.subr.mxu0 0.0
  %1063 = vmatpush1.msra.mxu0 0.0
  %1064 = vmatprep.subr.mxu0 0.0
  %1065 = vmatpush1.msra.mxu0 0.0
  %1066 = vmatprep.subr.mxu0 0.0
  %1067 = vmatpush1.msra.mxu0 0.0
  %1068 = vmatprep.subr.mxu0 0.0
  %1069 = vmatpush1.msra.mxu0 0.0
  %1070 = vmatprep.subr.mxu0 0.0
  %1071 = vmatpush1.msra.mxu0 0.0
  %1072 = vmatprep.subr.mxu0 0.0
  %1073 = vmatpush1.msra.mxu0 0.0
  %1074 = vmatprep.subr.mxu0 0.0
  %1075 = vmatpush1.msra.mxu0 0.0
  %1076 = vmatprep.subr.mxu0 0.0
  %1077 = vmatpush1.msra.mxu0 %v401
  %1078 = vmatprep.subr.mxu0 0.0
  %1079 = vmatpush1.msra.mxu0 %v400
  %1080 = vmatprep.subr.mxu0 0.0
  %1081 = vmatpush1.msra.mxu0 %v399
  %1082 = vmatprep.subr.mxu0 0.0
  %1083 = vmatpush1.msra.mxu0 %v398
  %1084 = vmatprep.subr.mxu0 0.0
  %1085 = vmatpush2.msra.mxu0 0.0
  %1086 = vmatprep.subr.mxu0 0.0
  %1087 = vmatpush2.msra.mxu0 0.0
  %1088 = vmatprep.subr.mxu0 0.0
  %1089 = vmatpush2.msra.mxu0 0.0
  %1090 = vmatprep.subr.mxu0 0.0
  %1091 = vmatpush2.msra.mxu0 0.0
  %1092 = vmatprep.subr.mxu0 0.0
  %1093 = vmatpush2.msra.mxu0 0.0
  %1094 = vmatprep.subr.mxu0 0.0
  %1095 = vmatpush2.msra.mxu0 0.0
  %1096 = vmatprep.subr.mxu0 0.0
  %1097 = vmatpush2.msra.mxu0 0.0
  %1098 = vmatprep.subr.mxu0 0.0
  %1099 = vmatpush2.msra.mxu0 0.0
  %1100 = vmatprep.subr.mxu0 0.0
  %1101 = vmatpush2.msra.mxu0 0.0
  %1102 = vmatprep.subr.mxu0 0.0
  %1103 = vmatpush2.msra.mxu0 0.0
  %1104 = vmatprep.subr.mxu0 0.0
  %1105 = vmatpush2.msra.mxu0 0.0
  %1106 = vmatprep.subr.mxu0 0.0
  %1107 = vmatpush2.msra.mxu0 0.0
  %1108 = vmatprep.subr.mxu0 0.0
  %1109 = vmatpush2.msra.mxu0 0.0
  %1110 = vmatprep.subr.mxu0 0.0
  %1111 = vmatpush2.msra.mxu0 0.0
  %1112 = vmatprep.subr.mxu0 0.0
  %1113 = vmatpush2.msra.mxu0 0.0
  %1114 = vmatprep.subr.mxu0 0.0
  %1115 = vmatpush2.msra.mxu0 0.0
  %1116 = vmatprep.mubr.f32.mxu0 0.0
  %1117 = vmatmul.mubr.f32.gmra.mxu0 %v1048
  %v1118 = vpop.f32.mrf.mxu0
  %v1119 = vadd.f32 0.0, %v1118
  %v1120 = vpop.f32.mrf.mxu0
  %1121 = vmatprep.mubr.f32.mxu0 0.0
  %1122 = vmatmul.mubr.f32.gmra.mxu0 %v1050
  %v1123 = vpop.f32.mrf.mxu0
  %v1124 = vadd.f32 0.0, %v1123
  %v1125 = vpop.f32.mrf.mxu0
  %1126 = vdwg.mxu0
  %v1127 = vadd.f32 %v1040, %v1119
  %v1128 = vadd.f32 %v1041, %v1124
  %v1129 = vxor.u32 %v1127, 2147483648
  %v1130 = vxor.u32 %v1128, 2147483648
  %v1131 = vmul.f32 %v1129, 1.442695
  %v1132 = vpow.pop %v1131
  %v1133 = vmul.f32 %v1130, 1.442695
  %v1134 = vpow.pop %v1133
  %v1135 = vadd.f32 %v1132, 1.0
  %v1136 = vadd.f32 %v1134, 1.0
  %v1137 = vrcp.pop %v1135
  %v1138 = vmul.f32 1.0, %v1137
  %v1139 = vrcp.pop %v1136
  %v1140 = vmul.f32 1.0, %v1139
  %v1141 = vtanh.pop %v1127
  %v1142 = vtanh.pop %v1128
  %v1143 = vmul.f32 %v1138, %v1026
  %v1144 = vmul.f32 %v1140, %v1027
  %1147 = vrot.lane.b32.xlu0 %v1141, 64
  %v1148 = vpop.permute.xlu0 %1147
  %1149 = vrot.lane.b32.xlu0 %v1142, 64
  %v1150 = vpop.permute.xlu0 %1149
  %v1153 = vmul.f32 %v1138, %v1148
  %v1154 = vmul.f32 %v1140, %v1150
  %1157 = vrot.lane.b32.xlu0 %v1153, 32
  %v1158 = vpop.permute.xlu0 %1157
  %1159 = vrot.lane.b32.xlu0 %v1154, 32
  %v1160 = vpop.permute.xlu0 %1159
  %v1163 = vadd.f32 %v1143, %v1158
  %v1164 = vadd.f32 %v1144, %v1160
  %v1165 = vtanh.pop %v1163
  %v1166 = vtanh.pop %v1164
  %1169 = vrot.lane.b32.xlu0 %v1165, 64
  %v1170 = vpop.permute.xlu0 %1169
  %1171 = vrot.lane.b32.xlu0 %v1166, 64
  %v1172 = vpop.permute.xlu0 %1171
  %v1175 = vmul.f32 %v1138, %v1170
  %v1176 = vmul.f32 %v1140, %v1172
  %v1177 = vld [vmem:[#allocation2 + $0x40] sm:$0xff]
  %v1178 = vld [vmem:[#allocation2 + $0x48] sm:$0xff]
  %1181 = vrot.lane.b32.xlu0 %v1175, 32
  %v1182 = vpop.permute.xlu0 %1181
  %1183 = vrot.lane.b32.xlu0 %v1176, 32
  %v1184 = vpop.permute.xlu0 %1183
  %v1185 = vsel %vm637, %v1182, 0
  %v1187 = vsel %vm637, %v1184, 0
  %1189 = vmatprep.subr.mxu0 0.0
  %1190 = vmatpush1.msra.mxu0 0.0
  %1191 = vmatprep.subr.mxu0 0.0
  %1192 = vmatpush1.msra.mxu0 0.0
  %1193 = vmatprep.subr.mxu0 0.0
  %1194 = vmatpush1.msra.mxu0 0.0
  %1195 = vmatprep.subr.mxu0 0.0
  %1196 = vmatpush1.msra.mxu0 0.0
  %1197 = vmatprep.subr.mxu0 0.0
  %1198 = vmatpush1.msra.mxu0 0.0
  %1199 = vmatprep.subr.mxu0 0.0
  %1200 = vmatpush1.msra.mxu0 0.0
  %1201 = vmatprep.subr.mxu0 0.0
  %1202 = vmatpush1.msra.mxu0 0.0
  %1203 = vmatprep.subr.mxu0 0.0
  %1204 = vmatpush1.msra.mxu0 0.0
  %1205 = vmatprep.subr.mxu0 0.0
  %1206 = vmatpush1.msra.mxu0 0.0
  %1207 = vmatprep.subr.mxu0 0.0
  %1208 = vmatpush1.msra.mxu0 0.0
  %1209 = vmatprep.subr.mxu0 0.0
  %1210 = vmatpush1.msra.mxu0 0.0
  %1211 = vmatprep.subr.mxu0 0.0
  %1212 = vmatpush1.msra.mxu0 0.0
  %1213 = vmatprep.subr.mxu0 0.0
  %1214 = vmatpush1.msra.mxu0 %v401
  %1215 = vmatprep.subr.mxu0 0.0
  %1216 = vmatpush1.msra.mxu0 %v400
  %1217 = vmatprep.subr.mxu0 0.0
  %1218 = vmatpush1.msra.mxu0 %v399
  %1219 = vmatprep.subr.mxu0 0.0
  %1220 = vmatpush1.msra.mxu0 %v398
  %1221 = vmatprep.subr.mxu0 0.0
  %1222 = vmatpush2.msra.mxu0 0.0
  %1223 = vmatprep.subr.mxu0 0.0
  %1224 = vmatpush2.msra.mxu0 0.0
  %1225 = vmatprep.subr.mxu0 0.0
  %1226 = vmatpush2.msra.mxu0 0.0
  %1227 = vmatprep.subr.mxu0 0.0
  %1228 = vmatpush2.msra.mxu0 0.0
  %1229 = vmatprep.subr.mxu0 0.0
  %1230 = vmatpush2.msra.mxu0 0.0
  %1231 = vmatprep.subr.mxu0 0.0
  %1232 = vmatpush2.msra.mxu0 0.0
  %1233 = vmatprep.subr.mxu0 0.0
  %1234 = vmatpush2.msra.mxu0 0.0
  %1235 = vmatprep.subr.mxu0 0.0
  %1236 = vmatpush2.msra.mxu0 0.0
  %1237 = vmatprep.subr.mxu0 0.0
  %1238 = vmatpush2.msra.mxu0 0.0
  %1239 = vmatprep.subr.mxu0 0.0
  %1240 = vmatpush2.msra.mxu0 0.0
  %1241 = vmatprep.subr.mxu0 0.0
  %1242 = vmatpush2.msra.mxu0 0.0
  %1243 = vmatprep.subr.mxu0 0.0
  %1244 = vmatpush2.msra.mxu0 0.0
  %1245 = vmatprep.subr.mxu0 0.0
  %1246 = vmatpush2.msra.mxu0 0.0
  %1247 = vmatprep.subr.mxu0 0.0
  %1248 = vmatpush2.msra.mxu0 0.0
  %1249 = vmatprep.subr.mxu0 0.0
  %1250 = vmatpush2.msra.mxu0 0.0
  %1251 = vmatprep.subr.mxu0 0.0
  %1252 = vmatpush2.msra.mxu0 0.0
  %1253 = vmatprep.mubr.f32.mxu0 0.0
  %1254 = vmatmul.mubr.f32.gmra.mxu0 %v1185
  %v1255 = vpop.f32.mrf.mxu0
  %v1256 = vadd.f32 0.0, %v1255
  %v1257 = vpop.f32.mrf.mxu0
  %1258 = vmatprep.mubr.f32.mxu0 0.0
  %1259 = vmatmul.mubr.f32.gmra.mxu0 %v1187
  %v1260 = vpop.f32.mrf.mxu0
  %v1261 = vadd.f32 0.0, %v1260
  %v1262 = vpop.f32.mrf.mxu0
  %1263 = vdwg.mxu0
  %v1264 = vadd.f32 %v1177, %v1256
  %v1265 = vadd.f32 %v1178, %v1261
  %v1266 = vxor.u32 %v1264, 2147483648
  %v1267 = vxor.u32 %v1265, 2147483648
  %v1268 = vmul.f32 %v1266, 1.442695
  %v1269 = vpow.pop %v1268
  %v1270 = vmul.f32 %v1267, 1.442695
  %v1271 = vpow.pop %v1270
  %v1272 = vadd.f32 %v1269, 1.0
  %v1273 = vadd.f32 %v1271, 1.0
  %v1274 = vrcp.pop %v1272
  %v1275 = vmul.f32 1.0, %v1274
  %v1276 = vrcp.pop %v1273
  %v1277 = vmul.f32 1.0, %v1276
  %v1278 = vtanh.pop %v1264
  %v1279 = vtanh.pop %v1265
  %v1280 = vmul.f32 %v1275, %v1163
  %v1281 = vmul.f32 %v1277, %v1164
  %1284 = vrot.lane.b32.xlu0 %v1278, 64
  %v1285 = vpop.permute.xlu0 %1284
  %1286 = vrot.lane.b32.xlu0 %v1279, 64
  %v1287 = vpop.permute.xlu0 %1286
  %v1290 = vmul.f32 %v1275, %v1285
  %v1291 = vmul.f32 %v1277, %v1287
  %1294 = vrot.lane.b32.xlu0 %v1290, 32
  %v1295 = vpop.permute.xlu0 %1294
  %1296 = vrot.lane.b32.xlu0 %v1291, 32
  %v1297 = vpop.permute.xlu0 %1296
  %v1300 = vadd.f32 %v1280, %v1295
  %v1301 = vadd.f32 %v1281, %v1297
  %v1302 = vtanh.pop %v1300
  %v1303 = vtanh.pop %v1301
  %1306 = vrot.lane.b32.xlu0 %v1302, 64
  %v1307 = vpop.permute.xlu0 %1306
  %1308 = vrot.lane.b32.xlu0 %v1303, 64
  %v1309 = vpop.permute.xlu0 %1308
  %v1312 = vmul.f32 %v1275, %v1307
  %v1313 = vmul.f32 %v1277, %v1309
  %v1314 = vld [vmem:[#allocation2 + $0x50] sm:$0xff]
  %v1315 = vld [vmem:[#allocation2 + $0x58] sm:$0xff]
  %1318 = vrot.lane.b32.xlu0 %v1312, 32
  %v1319 = vpop.permute.xlu0 %1318
  %1320 = vrot.lane.b32.xlu0 %v1313, 32
  %v1321 = vpop.permute.xlu0 %1320
  %v1322 = vsel %vm637, %v1319, 0
  %v1324 = vsel %vm637, %v1321, 0
  %1326 = vmatprep.subr.mxu0 0.0
  %1327 = vmatpush1.msra.mxu0 0.0
  %1328 = vmatprep.subr.mxu0 0.0
  %1329 = vmatpush1.msra.mxu0 0.0
  %1330 = vmatprep.subr.mxu0 0.0
  %1331 = vmatpush1.msra.mxu0 0.0
  %1332 = vmatprep.subr.mxu0 0.0
  %1333 = vmatpush1.msra.mxu0 0.0
  %1334 = vmatprep.subr.mxu0 0.0
  %1335 = vmatpush1.msra.mxu0 0.0
  %1336 = vmatprep.subr.mxu0 0.0
  %1337 = vmatpush1.msra.mxu0 0.0
  %1338 = vmatprep.subr.mxu0 0.0
  %1339 = vmatpush1.msra.mxu0 0.0
  %1340 = vmatprep.subr.mxu0 0.0
  %1341 = vmatpush1.msra.mxu0 0.0
  %1342 = vmatprep.subr.mxu0 0.0
  %1343 = vmatpush1.msra.mxu0 0.0
  %1344 = vmatprep.subr.mxu0 0.0
  %1345 = vmatpush1.msra.mxu0 0.0
  %1346 = vmatprep.subr.mxu0 0.0
  %1347 = vmatpush1.msra.mxu0 0.0
  %1348 = vmatprep.subr.mxu0 0.0
  %1349 = vmatpush1.msra.mxu0 0.0
  %1350 = vmatprep.subr.mxu0 0.0
  %1351 = vmatpush1.msra.mxu0 %v401
  %1352 = vmatprep.subr.mxu0 0.0
  %1353 = vmatpush1.msra.mxu0 %v400
  %1354 = vmatprep.subr.mxu0 0.0
  %1355 = vmatpush1.msra.mxu0 %v399
  %1356 = vmatprep.subr.mxu0 0.0
  %1357 = vmatpush1.msra.mxu0 %v398
  %1358 = vmatprep.subr.mxu0 0.0
  %1359 = vmatpush2.msra.mxu0 0.0
  %1360 = vmatprep.subr.mxu0 0.0
  %1361 = vmatpush2.msra.mxu0 0.0
  %1362 = vmatprep.subr.mxu0 0.0
  %1363 = vmatpush2.msra.mxu0 0.0
  %1364 = vmatprep.subr.mxu0 0.0
  %1365 = vmatpush2.msra.mxu0 0.0
  %1366 = vmatprep.subr.mxu0 0.0
  %1367 = vmatpush2.msra.mxu0 0.0
  %1368 = vmatprep.subr.mxu0 0.0
  %1369 = vmatpush2.msra.mxu0 0.0
  %1370 = vmatprep.subr.mxu0 0.0
  %1371 = vmatpush2.msra.mxu0 0.0
  %1372 = vmatprep.subr.mxu0 0.0
  %1373 = vmatpush2.msra.mxu0 0.0
  %1374 = vmatprep.subr.mxu0 0.0
  %1375 = vmatpush2.msra.mxu0 0.0
  %1376 = vmatprep.subr.mxu0 0.0
  %1377 = vmatpush2.msra.mxu0 0.0
  %1378 = vmatprep.subr.mxu0 0.0
  %1379 = vmatpush2.msra.mxu0 0.0
  %1380 = vmatprep.subr.mxu0 0.0
  %1381 = vmatpush2.msra.mxu0 0.0
  %1382 = vmatprep.subr.mxu0 0.0
  %1383 = vmatpush2.msra.mxu0 0.0
  %1384 = vmatprep.subr.mxu0 0.0
  %1385 = vmatpush2.msra.mxu0 0.0
  %1386 = vmatprep.subr.mxu0 0.0
  %1387 = vmatpush2.msra.mxu0 0.0
  %1388 = vmatprep.subr.mxu0 0.0
  %1389 = vmatpush2.msra.mxu0 0.0
  %1390 = vmatprep.mubr.f32.mxu0 0.0
  %1391 = vmatmul.mubr.f32.gmra.mxu0 %v1322
  %v1392 = vpop.f32.mrf.mxu0
  %v1393 = vadd.f32 0.0, %v1392
  %v1394 = vpop.f32.mrf.mxu0
  %1395 = vmatprep.mubr.f32.mxu0 0.0
  %1396 = vmatmul.mubr.f32.gmra.mxu0 %v1324
  %v1397 = vpop.f32.mrf.mxu0
  %v1398 = vadd.f32 0.0, %v1397
  %v1399 = vpop.f32.mrf.mxu0
  %1400 = vdwg.mxu0
  %v1401 = vadd.f32 %v1314, %v1393
  %v1402 = vadd.f32 %v1315, %v1398
  %v1403 = vxor.u32 %v1401, 2147483648
  %v1404 = vxor.u32 %v1402, 2147483648
  %v1405 = vmul.f32 %v1403, 1.442695
  %v1406 = vpow.pop %v1405
  %v1407 = vmul.f32 %v1404, 1.442695
  %v1408 = vpow.pop %v1407
  %v1409 = vadd.f32 %v1406, 1.0
  %v1410 = vadd.f32 %v1408, 1.0
  %v1411 = vrcp.pop %v1409
  %v1412 = vmul.f32 1.0, %v1411
  %v1413 = vrcp.pop %v1410
  %v1414 = vmul.f32 1.0, %v1413
  %v1415 = vtanh.pop %v1401
  %v1416 = vtanh.pop %v1402
  %v1417 = vmul.f32 %v1412, %v1300
  %v1418 = vmul.f32 %v1414, %v1301
  %1421 = vrot.lane.b32.xlu0 %v1415, 64
  %v1422 = vpop.permute.xlu0 %1421
  %1423 = vrot.lane.b32.xlu0 %v1416, 64
  %v1424 = vpop.permute.xlu0 %1423
  %v1427 = vmul.f32 %v1412, %v1422
  %v1428 = vmul.f32 %v1414, %v1424
  %1431 = vrot.lane.b32.xlu0 %v1427, 32
  %v1432 = vpop.permute.xlu0 %1431
  %1433 = vrot.lane.b32.xlu0 %v1428, 32
  %v1434 = vpop.permute.xlu0 %1433
  %v1437 = vadd.f32 %v1417, %v1432
  %v1438 = vadd.f32 %v1418, %v1434
  %v1439 = vtanh.pop %v1437
  %v1440 = vtanh.pop %v1438
  %1443 = vrot.lane.b32.xlu0 %v1439, 64
  %v1444 = vpop.permute.xlu0 %1443
  %1445 = vrot.lane.b32.xlu0 %v1440, 64
  %v1446 = vpop.permute.xlu0 %1445
  %v1449 = vmul.f32 %v1412, %v1444
  %v1450 = vmul.f32 %v1414, %v1446
  %v1451 = vld [vmem:[#allocation2 + $0x60] sm:$0xff]
  %v1452 = vld [vmem:[#allocation2 + $0x68] sm:$0xff]
  %1455 = vrot.lane.b32.xlu0 %v1449, 32
  %v1456 = vpop.permute.xlu0 %1455
  %1457 = vrot.lane.b32.xlu0 %v1450, 32
  %v1458 = vpop.permute.xlu0 %1457
  %v1459 = vsel %vm637, %v1456, 0
  %v1461 = vsel %vm637, %v1458, 0
  %1463 = vmatprep.subr.mxu0 0.0
  %1464 = vmatpush1.msra.mxu0 0.0
  %1465 = vmatprep.subr.mxu0 0.0
  %1466 = vmatpush1.msra.mxu0 0.0
  %1467 = vmatprep.subr.mxu0 0.0
  %1468 = vmatpush1.msra.mxu0 0.0
  %1469 = vmatprep.subr.mxu0 0.0
  %1470 = vmatpush1.msra.mxu0 0.0
  %1471 = vmatprep.subr.mxu0 0.0
  %1472 = vmatpush1.msra.mxu0 0.0
  %1473 = vmatprep.subr.mxu0 0.0
  %1474 = vmatpush1.msra.mxu0 0.0
  %1475 = vmatprep.subr.mxu0 0.0
  %1476 = vmatpush1.msra.mxu0 0.0
  %1477 = vmatprep.subr.mxu0 0.0
  %1478 = vmatpush1.msra.mxu0 0.0
  %1479 = vmatprep.subr.mxu0 0.0
  %1480 = vmatpush1.msra.mxu0 0.0
  %1481 = vmatprep.subr.mxu0 0.0
  %1482 = vmatpush1.msra.mxu0 0.0
  %1483 = vmatprep.subr.mxu0 0.0
  %1484 = vmatpush1.msra.mxu0 0.0
  %1485 = vmatprep.subr.mxu0 0.0
  %1486 = vmatpush1.msra.mxu0 0.0
  %1487 = vmatprep.subr.mxu0 0.0
  %1488 = vmatpush1.msra.mxu0 %v401
  %1489 = vmatprep.subr.mxu0 0.0
  %1490 = vmatpush1.msra.mxu0 %v400
  %1491 = vmatprep.subr.mxu0 0.0
  %1492 = vmatpush1.msra.mxu0 %v399
  %1493 = vmatprep.subr.mxu0 0.0
  %1494 = vmatpush1.msra.mxu0 %v398
  %1495 = vmatprep.subr.mxu0 0.0
  %1496 = vmatpush2.msra.mxu0 0.0
  %1497 = vmatprep.subr.mxu0 0.0
  %1498 = vmatpush2.msra.mxu0 0.0
  %1499 = vmatprep.subr.mxu0 0.0
  %1500 = vmatpush2.msra.mxu0 0.0
  %1501 = vmatprep.subr.mxu0 0.0
  %1502 = vmatpush2.msra.mxu0 0.0
  %1503 = vmatprep.subr.mxu0 0.0
  %1504 = vmatpush2.msra.mxu0 0.0
  %1505 = vmatprep.subr.mxu0 0.0
  %1506 = vmatpush2.msra.mxu0 0.0
  %1507 = vmatprep.subr.mxu0 0.0
  %1508 = vmatpush2.msra.mxu0 0.0
  %1509 = vmatprep.subr.mxu0 0.0
  %1510 = vmatpush2.msra.mxu0 0.0
  %1511 = vmatprep.subr.mxu0 0.0
  %1512 = vmatpush2.msra.mxu0 0.0
  %1513 = vmatprep.subr.mxu0 0.0
  %1514 = vmatpush2.msra.mxu0 0.0
  %1515 = vmatprep.subr.mxu0 0.0
  %1516 = vmatpush2.msra.mxu0 0.0
  %1517 = vmatprep.subr.mxu0 0.0
  %1518 = vmatpush2.msra.mxu0 0.0
  %1519 = vmatprep.subr.mxu0 0.0
  %1520 = vmatpush2.msra.mxu0 0.0
  %1521 = vmatprep.subr.mxu0 0.0
  %1522 = vmatpush2.msra.mxu0 0.0
  %1523 = vmatprep.subr.mxu0 0.0
  %1524 = vmatpush2.msra.mxu0 0.0
  %1525 = vmatprep.subr.mxu0 0.0
  %1526 = vmatpush2.msra.mxu0 0.0
  %1527 = vmatprep.mubr.f32.mxu0 0.0
  %1528 = vmatmul.mubr.f32.gmra.mxu0 %v1459
  %v1529 = vpop.f32.mrf.mxu0
  %v1530 = vadd.f32 0.0, %v1529
  %v1531 = vpop.f32.mrf.mxu0
  %1532 = vmatprep.mubr.f32.mxu0 0.0
  %1533 = vmatmul.mubr.f32.gmra.mxu0 %v1461
  %v1534 = vpop.f32.mrf.mxu0
  %v1535 = vadd.f32 0.0, %v1534
  %v1536 = vpop.f32.mrf.mxu0
  %1537 = vdwg.mxu0
  %v1538 = vadd.f32 %v1451, %v1530
  %v1539 = vadd.f32 %v1452, %v1535
  %v1540 = vxor.u32 %v1538, 2147483648
  %v1541 = vxor.u32 %v1539, 2147483648
  %v1542 = vmul.f32 %v1540, 1.442695
  %v1543 = vpow.pop %v1542
  %v1544 = vmul.f32 %v1541, 1.442695
  %v1545 = vpow.pop %v1544
  %v1546 = vadd.f32 %v1543, 1.0
  %v1547 = vadd.f32 %v1545, 1.0
  %v1548 = vrcp.pop %v1546
  %v1549 = vmul.f32 1.0, %v1548
  %v1550 = vrcp.pop %v1547
  %v1551 = vmul.f32 1.0, %v1550
  %v1552 = vtanh.pop %v1538
  %v1553 = vtanh.pop %v1539
  %v1554 = vmul.f32 %v1549, %v1437
  %v1555 = vmul.f32 %v1551, %v1438
  %1558 = vrot.lane.b32.xlu0 %v1552, 64
  %v1559 = vpop.permute.xlu0 %1558
  %1560 = vrot.lane.b32.xlu0 %v1553, 64
  %v1561 = vpop.permute.xlu0 %1560
  %v1564 = vmul.f32 %v1549, %v1559
  %v1565 = vmul.f32 %v1551, %v1561
  %1568 = vrot.lane.b32.xlu0 %v1564, 32
  %v1569 = vpop.permute.xlu0 %1568
  %1570 = vrot.lane.b32.xlu0 %v1565, 32
  %v1571 = vpop.permute.xlu0 %1570
  %v1574 = vadd.f32 %v1554, %v1569
  %v1575 = vadd.f32 %v1555, %v1571
  %v1576 = vtanh.pop %v1574
  %v1577 = vtanh.pop %v1575
  %1580 = vrot.lane.b32.xlu0 %v1576, 64
  %v1581 = vpop.permute.xlu0 %1580
  %1582 = vrot.lane.b32.xlu0 %v1577, 64
  %v1583 = vpop.permute.xlu0 %1582
  %v1586 = vmul.f32 %v1549, %v1581
  %v1587 = vmul.f32 %v1551, %v1583
  %v1588 = vld [vmem:[#allocation2 + $0x70] sm:$0xff]
  %v1589 = vld [vmem:[#allocation2 + $0x78] sm:$0xff]
  %1592 = vrot.lane.b32.xlu0 %v1586, 32
  %v1593 = vpop.permute.xlu0 %1592
  %1594 = vrot.lane.b32.xlu0 %v1587, 32
  %v1595 = vpop.permute.xlu0 %1594
  %v1596 = vsel %vm637, %v1593, 0
  %v1598 = vsel %vm637, %v1595, 0
  %1600 = vmatprep.subr.mxu0 0.0
  %1601 = vmatpush1.msra.mxu0 0.0
  %1602 = vmatprep.subr.mxu0 0.0
  %1603 = vmatpush1.msra.mxu0 0.0
  %1604 = vmatprep.subr.mxu0 0.0
  %1605 = vmatpush1.msra.mxu0 0.0
  %1606 = vmatprep.subr.mxu0 0.0
  %1607 = vmatpush1.msra.mxu0 0.0
  %1608 = vmatprep.subr.mxu0 0.0
  %1609 = vmatpush1.msra.mxu0 0.0
  %1610 = vmatprep.subr.mxu0 0.0
  %1611 = vmatpush1.msra.mxu0 0.0
  %1612 = vmatprep.subr.mxu0 0.0
  %1613 = vmatpush1.msra.mxu0 0.0
  %1614 = vmatprep.subr.mxu0 0.0
  %1615 = vmatpush1.msra.mxu0 0.0
  %1616 = vmatprep.subr.mxu0 0.0
  %1617 = vmatpush1.msra.mxu0 0.0
  %1618 = vmatprep.subr.mxu0 0.0
  %1619 = vmatpush1.msra.mxu0 0.0
  %1620 = vmatprep.subr.mxu0 0.0
  %1621 = vmatpush1.msra.mxu0 0.0
  %1622 = vmatprep.subr.mxu0 0.0
  %1623 = vmatpush1.msra.mxu0 0.0
  %1624 = vmatprep.subr.mxu0 0.0
  %1625 = vmatpush1.msra.mxu0 %v401
  %1626 = vmatprep.subr.mxu0 0.0
  %1627 = vmatpush1.msra.mxu0 %v400
  %1628 = vmatprep.subr.mxu0 0.0
  %1629 = vmatpush1.msra.mxu0 %v399
  %1630 = vmatprep.subr.mxu0 0.0
  %1631 = vmatpush1.msra.mxu0 %v398
  %1632 = vmatprep.subr.mxu0 0.0
  %1633 = vmatpush2.msra.mxu0 0.0
  %1634 = vmatprep.subr.mxu0 0.0
  %1635 = vmatpush2.msra.mxu0 0.0
  %1636 = vmatprep.subr.mxu0 0.0
  %1637 = vmatpush2.msra.mxu0 0.0
  %1638 = vmatprep.subr.mxu0 0.0
  %1639 = vmatpush2.msra.mxu0 0.0
  %1640 = vmatprep.subr.mxu0 0.0
  %1641 = vmatpush2.msra.mxu0 0.0
  %1642 = vmatprep.subr.mxu0 0.0
  %1643 = vmatpush2.msra.mxu0 0.0
  %1644 = vmatprep.subr.mxu0 0.0
  %1645 = vmatpush2.msra.mxu0 0.0
  %1646 = vmatprep.subr.mxu0 0.0
  %1647 = vmatpush2.msra.mxu0 0.0
  %1648 = vmatprep.subr.mxu0 0.0
  %1649 = vmatpush2.msra.mxu0 0.0
  %1650 = vmatprep.subr.mxu0 0.0
  %1651 = vmatpush2.msra.mxu0 0.0
  %1652 = vmatprep.subr.mxu0 0.0
  %1653 = vmatpush2.msra.mxu0 0.0
  %1654 = vmatprep.subr.mxu0 0.0
  %1655 = vmatpush2.msra.mxu0 0.0
  %1656 = vmatprep.subr.mxu0 0.0
  %1657 = vmatpush2.msra.mxu0 0.0
  %1658 = vmatprep.subr.mxu0 0.0
  %1659 = vmatpush2.msra.mxu0 0.0
  %1660 = vmatprep.subr.mxu0 0.0
  %1661 = vmatpush2.msra.mxu0 0.0
  %1662 = vmatprep.subr.mxu0 0.0
  %1663 = vmatpush2.msra.mxu0 0.0
  %1664 = vmatprep.mubr.f32.mxu0 0.0
  %1665 = vmatmul.mubr.f32.gmra.mxu0 %v1596
  %v1666 = vpop.f32.mrf.mxu0
  %v1667 = vadd.f32 0.0, %v1666
  %v1668 = vpop.f32.mrf.mxu0
  %1669 = vmatprep.mubr.f32.mxu0 0.0
  %1670 = vmatmul.mubr.f32.gmra.mxu0 %v1598
  %v1671 = vpop.f32.mrf.mxu0
  %v1672 = vadd.f32 0.0, %v1671
  %v1673 = vpop.f32.mrf.mxu0
  %1674 = vdwg.mxu0
  %v1675 = vadd.f32 %v1588, %v1667
  %v1676 = vadd.f32 %v1589, %v1672
  %v1677 = vxor.u32 %v1675, 2147483648
  %v1678 = vxor.u32 %v1676, 2147483648
  %v1679 = vmul.f32 %v1677, 1.442695
  %v1680 = vpow.pop %v1679
  %v1681 = vmul.f32 %v1678, 1.442695
  %v1682 = vpow.pop %v1681
  %v1683 = vadd.f32 %v1680, 1.0
  %v1684 = vadd.f32 %v1682, 1.0
  %v1685 = vrcp.pop %v1683
  %v1686 = vmul.f32 1.0, %v1685
  %v1687 = vrcp.pop %v1684
  %v1688 = vmul.f32 1.0, %v1687
  %v1689 = vtanh.pop %v1675
  %v1690 = vtanh.pop %v1676
  %v1691 = vmul.f32 %v1686, %v1574
  %v1692 = vmul.f32 %v1688, %v1575
  %1695 = vrot.lane.b32.xlu0 %v1689, 64
  %v1696 = vpop.permute.xlu0 %1695
  %1697 = vrot.lane.b32.xlu0 %v1690, 64
  %v1698 = vpop.permute.xlu0 %1697
  %v1701 = vmul.f32 %v1686, %v1696
  %v1702 = vmul.f32 %v1688, %v1698
  %1705 = vrot.lane.b32.xlu0 %v1701, 32
  %v1706 = vpop.permute.xlu0 %1705
  %1707 = vrot.lane.b32.xlu0 %v1702, 32
  %v1708 = vpop.permute.xlu0 %1707
  %v1711 = vadd.f32 %v1691, %v1706
  %v1712 = vadd.f32 %v1692, %v1708
  %v1713 = vtanh.pop %v1711
  %v1714 = vtanh.pop %v1712
  %1717 = vrot.lane.b32.xlu0 %v1713, 64
  %v1718 = vpop.permute.xlu0 %1717
  %1719 = vrot.lane.b32.xlu0 %v1714, 64
  %v1720 = vpop.permute.xlu0 %1719
  %v1723 = vmul.f32 %v1686, %v1718
  %v1724 = vmul.f32 %v1688, %v1720
  %v1725 = vlaneseq
  %v1726 = vshrl.u32 %v1725, 7
  %v1727 = vadd.s32 %v1726, 8
  %v1728 = vadd.s32 %v1726, 16
  %v1729 = vadd.s32 %v1726, 24
  %v1730 = vlaneseq
  %v1731 = vand.u32 %v1730, 127
  %v1732 = vadd.s32 %v1731, 128
  %v1733 = vadd.s32 %v1731, 256
  %v1734 = vadd.s32 %v1731, 384
  %v1735 = vadd.s32 %v1731, 512
  %v1736 = vadd.s32 %v1731, 640
  %v1737 = vadd.s32 %v1731, 768
  %v1738 = vadd.s32 %v1731, 896
  %v1739 = vshra.s32 %v1731, 5
  %v1740 = vshra.s32 %v1732, 5
  %v1741 = vshra.s32 %v1733, 5
  %v1742 = vshra.s32 %v1734, 5
  %v1743 = vshra.s32 %v1735, 5
  %v1744 = vshra.s32 %v1736, 5
  %v1745 = vshra.s32 %v1737, 5
  %v1746 = vshra.s32 %v1738, 5
  %vm1747 = vcmp.eq.s32.totalorder %v1739, %v1726
  %vm1748 = vcmp.eq.s32.totalorder %v1740, %v1726
  %vm1749 = vcmp.eq.s32.totalorder %v1741, %v1726
  %vm1750 = vcmp.eq.s32.totalorder %v1742, %v1726
  %vm1751 = vcmp.eq.s32.totalorder %v1743, %v1726
  %vm1752 = vcmp.eq.s32.totalorder %v1744, %v1726
  %vm1753 = vcmp.eq.s32.totalorder %v1745, %v1726
  %vm1754 = vcmp.eq.s32.totalorder %v1746, %v1726
  %vm1755 = vcmp.eq.s32.totalorder %v1739, %v1727
  %vm1756 = vcmp.eq.s32.totalorder %v1740, %v1727
  %vm1757 = vcmp.eq.s32.totalorder %v1741, %v1727
  %vm1758 = vcmp.eq.s32.totalorder %v1742, %v1727
  %vm1759 = vcmp.eq.s32.totalorder %v1743, %v1727
  %vm1760 = vcmp.eq.s32.totalorder %v1744, %v1727
  %vm1761 = vcmp.eq.s32.totalorder %v1745, %v1727
  %vm1762 = vcmp.eq.s32.totalorder %v1746, %v1727
  %vm1763 = vcmp.eq.s32.totalorder %v1739, %v1728
  %vm1764 = vcmp.eq.s32.totalorder %v1740, %v1728
  %vm1765 = vcmp.eq.s32.totalorder %v1741, %v1728
  %vm1766 = vcmp.eq.s32.totalorder %v1742, %v1728
  %vm1767 = vcmp.eq.s32.totalorder %v1743, %v1728
  %vm1768 = vcmp.eq.s32.totalorder %v1744, %v1728
  %vm1769 = vcmp.eq.s32.totalorder %v1745, %v1728
  %vm1770 = vcmp.eq.s32.totalorder %v1746, %v1728
  %vm1771 = vcmp.eq.s32.totalorder %v1739, %v1729
  %vm1772 = vcmp.eq.s32.totalorder %v1740, %v1729
  %vm1773 = vcmp.eq.s32.totalorder %v1741, %v1729
  %vm1774 = vcmp.eq.s32.totalorder %v1742, %v1729
  %vm1775 = vcmp.eq.s32.totalorder %v1743, %v1729
  %vm1776 = vcmp.eq.s32.totalorder %v1744, %v1729
  %vm1777 = vcmp.eq.s32.totalorder %v1745, %v1729
  %vm1778 = vcmp.eq.s32.totalorder %v1746, %v1729
  %v1779 = vsel %vm1747, 1, 0
  %v1780 = vsel %vm1748, 1, 0
  %v1781 = vsel %vm1749, 1, 0
  %v1782 = vsel %vm1750, 1, 0
  %v1783 = vsel %vm1751, 1, 0
  %v1784 = vsel %vm1752, 1, 0
  %v1785 = vsel %vm1753, 1, 0
  %v1786 = vsel %vm1754, 1, 0
  %v1787 = vsel %vm1755, 1, 0
  %v1788 = vsel %vm1756, 1, 0
  %v1789 = vsel %vm1757, 1, 0
  %v1790 = vsel %vm1758, 1, 0
  %v1791 = vsel %vm1759, 1, 0
  %v1792 = vsel %vm1760, 1, 0
  %v1793 = vsel %vm1761, 1, 0
  %v1794 = vsel %vm1762, 1, 0
  %v1795 = vsel %vm1763, 1, 0
  %v1796 = vsel %vm1764, 1, 0
  %v1797 = vsel %vm1765, 1, 0
  %v1798 = vsel %vm1766, 1, 0
  %v1799 = vsel %vm1767, 1, 0
  %v1800 = vsel %vm1768, 1, 0
  %v1801 = vsel %vm1769, 1, 0
  %v1802 = vsel %vm1770, 1, 0
  %v1803 = vsel %vm1771, 1, 0
  %v1804 = vsel %vm1772, 1, 0
  %v1805 = vsel %vm1773, 1, 0
  %v1806 = vsel %vm1774, 1, 0
  %v1807 = vsel %vm1775, 1, 0
  %v1808 = vsel %vm1776, 1, 0
  %v1809 = vsel %vm1777, 1, 0
  %v1810 = vsel %vm1778, 1, 0
  %v1811 = vcvt.s32.f32 %v1779
  %v1812 = vcvt.s32.f32 %v1780
  %v1813 = vcvt.s32.f32 %v1781
  %v1814 = vcvt.s32.f32 %v1782
  %v1815 = vcvt.s32.f32 %v1783
  %v1816 = vcvt.s32.f32 %v1784
  %v1817 = vcvt.s32.f32 %v1785
  %v1818 = vcvt.s32.f32 %v1786
  %v1819 = vcvt.s32.f32 %v1787
  %v1820 = vcvt.s32.f32 %v1788
  %v1821 = vcvt.s32.f32 %v1789
  %v1822 = vcvt.s32.f32 %v1790
  %v1823 = vcvt.s32.f32 %v1791
  %v1824 = vcvt.s32.f32 %v1792
  %v1825 = vcvt.s32.f32 %v1793
  %v1826 = vcvt.s32.f32 %v1794
  %v1827 = vcvt.s32.f32 %v1795
  %v1828 = vcvt.s32.f32 %v1796
  %v1829 = vcvt.s32.f32 %v1797
  %v1830 = vcvt.s32.f32 %v1798
  %v1831 = vcvt.s32.f32 %v1799
  %v1832 = vcvt.s32.f32 %v1800
  %v1833 = vcvt.s32.f32 %v1801
  %v1834 = vcvt.s32.f32 %v1802
  %v1835 = vcvt.s32.f32 %v1803
  %v1836 = vcvt.s32.f32 %v1804
  %v1837 = vcvt.s32.f32 %v1805
  %v1838 = vcvt.s32.f32 %v1806
  %v1839 = vcvt.s32.f32 %v1807
  %v1840 = vcvt.s32.f32 %v1808
  %v1841 = vcvt.s32.f32 %v1809
  %v1842 = vcvt.s32.f32 %v1810
  %v1843 = vand.u32 %v1731, 31
  %v1844 = vand.u32 %v1732, 31
  %v1845 = vand.u32 %v1733, 31
  %v1846 = vand.u32 %v1734, 31
  %v1847 = vand.u32 %v1735, 31
  %v1848 = vand.u32 %v1736, 31
  %v1849 = vand.u32 %v1737, 31
  %v1850 = vand.u32 %v1738, 31
  %vm1851 = vcmp.eq.s32.totalorder %v1843, %v1726
  %vm1852 = vcmp.eq.s32.totalorder %v1844, %v1726
  %vm1853 = vcmp.eq.s32.totalorder %v1845, %v1726
  %vm1854 = vcmp.eq.s32.totalorder %v1846, %v1726
  %vm1855 = vcmp.eq.s32.totalorder %v1847, %v1726
  %vm1856 = vcmp.eq.s32.totalorder %v1848, %v1726
  %vm1857 = vcmp.eq.s32.totalorder %v1849, %v1726
  %vm1858 = vcmp.eq.s32.totalorder %v1850, %v1726
  %vm1859 = vcmp.eq.s32.totalorder %v1843, %v1727
  %vm1860 = vcmp.eq.s32.totalorder %v1844, %v1727
  %vm1861 = vcmp.eq.s32.totalorder %v1845, %v1727
  %vm1862 = vcmp.eq.s32.totalorder %v1846, %v1727
  %vm1863 = vcmp.eq.s32.totalorder %v1847, %v1727
  %vm1864 = vcmp.eq.s32.totalorder %v1848, %v1727
  %vm1865 = vcmp.eq.s32.totalorder %v1849, %v1727
  %vm1866 = vcmp.eq.s32.totalorder %v1850, %v1727
  %vm1867 = vcmp.eq.s32.totalorder %v1843, %v1728
  %vm1868 = vcmp.eq.s32.totalorder %v1844, %v1728
  %vm1869 = vcmp.eq.s32.totalorder %v1845, %v1728
  %vm1870 = vcmp.eq.s32.totalorder %v1846, %v1728
  %vm1871 = vcmp.eq.s32.totalorder %v1847, %v1728
  %vm1872 = vcmp.eq.s32.totalorder %v1848, %v1728
  %vm1873 = vcmp.eq.s32.totalorder %v1849, %v1728
  %vm1874 = vcmp.eq.s32.totalorder %v1850, %v1728
  %vm1875 = vcmp.eq.s32.totalorder %v1843, %v1729
  %vm1876 = vcmp.eq.s32.totalorder %v1844, %v1729
  %vm1877 = vcmp.eq.s32.totalorder %v1845, %v1729
  %vm1878 = vcmp.eq.s32.totalorder %v1846, %v1729
  %vm1879 = vcmp.eq.s32.totalorder %v1847, %v1729
  %vm1880 = vcmp.eq.s32.totalorder %v1848, %v1729
  %vm1881 = vcmp.eq.s32.totalorder %v1849, %v1729
  %vm1882 = vcmp.eq.s32.totalorder %v1850, %v1729
  %v1883 = vsel %vm1851, 1, 0
  %v1884 = vsel %vm1852, 1, 0
  %v1885 = vsel %vm1853, 1, 0
  %v1886 = vsel %vm1854, 1, 0
  %v1887 = vsel %vm1855, 1, 0
  %v1888 = vsel %vm1856, 1, 0
  %v1889 = vsel %vm1857, 1, 0
  %v1890 = vsel %vm1858, 1, 0
  %v1891 = vsel %vm1859, 1, 0
  %v1892 = vsel %vm1860, 1, 0
  %v1893 = vsel %vm1861, 1, 0
  %v1894 = vsel %vm1862, 1, 0
  %v1895 = vsel %vm1863, 1, 0
  %v1896 = vsel %vm1864, 1, 0
  %v1897 = vsel %vm1865, 1, 0
  %v1898 = vsel %vm1866, 1, 0
  %v1899 = vsel %vm1867, 1, 0
  %v1900 = vsel %vm1868, 1, 0
  %v1901 = vsel %vm1869, 1, 0
  %v1902 = vsel %vm1870, 1, 0
  %v1903 = vsel %vm1871, 1, 0
  %v1904 = vsel %vm1872, 1, 0
  %v1905 = vsel %vm1873, 1, 0
  %v1906 = vsel %vm1874, 1, 0
  %v1907 = vsel %vm1875, 1, 0
  %v1908 = vsel %vm1876, 1, 0
  %v1909 = vsel %vm1877, 1, 0
  %v1910 = vsel %vm1878, 1, 0
  %v1911 = vsel %vm1879, 1, 0
  %v1912 = vsel %vm1880, 1, 0
  %v1913 = vsel %vm1881, 1, 0
  %v1914 = vsel %vm1882, 1, 0
  %v1915 = vcvt.s32.f32 %v1883
  %v1916 = vcvt.s32.f32 %v1884
  %v1917 = vcvt.s32.f32 %v1885
  %v1918 = vcvt.s32.f32 %v1886
  %v1919 = vcvt.s32.f32 %v1887
  %v1920 = vcvt.s32.f32 %v1888
  %v1921 = vcvt.s32.f32 %v1889
  %v1922 = vcvt.s32.f32 %v1890
  %v1923 = vcvt.s32.f32 %v1891
  %v1924 = vcvt.s32.f32 %v1892
  %v1925 = vcvt.s32.f32 %v1893
  %v1926 = vcvt.s32.f32 %v1894
  %v1927 = vcvt.s32.f32 %v1895
  %v1928 = vcvt.s32.f32 %v1896
  %v1929 = vcvt.s32.f32 %v1897
  %v1930 = vcvt.s32.f32 %v1898
  %v1931 = vcvt.s32.f32 %v1899
  %v1932 = vcvt.s32.f32 %v1900
  %v1933 = vcvt.s32.f32 %v1901
  %v1934 = vcvt.s32.f32 %v1902
  %v1935 = vcvt.s32.f32 %v1903
  %v1936 = vcvt.s32.f32 %v1904
  %v1937 = vcvt.s32.f32 %v1905
  %v1938 = vcvt.s32.f32 %v1906
  %v1939 = vcvt.s32.f32 %v1907
  %v1940 = vcvt.s32.f32 %v1908
  %v1941 = vcvt.s32.f32 %v1909
  %v1942 = vcvt.s32.f32 %v1910
  %v1943 = vcvt.s32.f32 %v1911
  %v1944 = vcvt.s32.f32 %v1912
  %v1945 = vcvt.s32.f32 %v1913
  %v1946 = vcvt.s32.f32 %v1914
  %1948 = vrot.lane.b32.xlu0 %v1723, 32
  %v1949 = vpop.permute.xlu0 %1948
  %v1950 = vsel %vm637, %v1949, 0
  %1952 = vmatprep.subr.mxu0 0.0
  %1953 = vmatpush1.msra.mxu0 0.0
  %1954 = vmatprep.subr.mxu0 0.0
  %1955 = vmatpush1.msra.mxu0 0.0
  %1956 = vmatprep.subr.mxu0 0.0
  %1957 = vmatpush1.msra.mxu0 0.0
  %1958 = vmatprep.subr.mxu0 0.0
  %1959 = vmatpush1.msra.mxu0 0.0
  %1960 = vmatprep.subr.mxu0 0.0
  %1961 = vmatpush1.msra.mxu0 0.0
  %1962 = vmatprep.subr.mxu0 0.0
  %1963 = vmatpush1.msra.mxu0 0.0
  %1964 = vmatprep.subr.mxu0 0.0
  %1965 = vmatpush1.msra.mxu0 0.0
  %1966 = vmatprep.subr.mxu0 0.0
  %1967 = vmatpush1.msra.mxu0 0.0
  %1968 = vmatprep.subr.mxu0 0.0
  %1969 = vmatpush1.msra.mxu0 0.0
  %1970 = vmatprep.subr.mxu0 0.0
  %1971 = vmatpush1.msra.mxu0 0.0
  %1972 = vmatprep.subr.mxu0 0.0
  %1973 = vmatpush1.msra.mxu0 0.0
  %1974 = vmatprep.subr.mxu0 0.0
  %1975 = vmatpush1.msra.mxu0 0.0
  %1976 = vmatprep.subr.mxu0 %v1836
  %1977 = vmatpush1.msra.mxu0 %v1835
  %1978 = vmatprep.subr.mxu0 %v1828
  %1979 = vmatpush1.msra.mxu0 %v1827
  %1980 = vmatprep.subr.mxu0 %v1820
  %1981 = vmatpush1.msra.mxu0 %v1819
  %1982 = vmatprep.subr.mxu0 %v1812
  %1983 = vmatpush1.msra.mxu0 %v1811
  %1984 = vmatprep.subr.mxu0 0.0
  %1985 = vmatpush2.msra.mxu0 0.0
  %1986 = vmatprep.subr.mxu0 0.0
  %1987 = vmatpush2.msra.mxu0 0.0
  %1988 = vmatprep.subr.mxu0 0.0
  %1989 = vmatpush2.msra.mxu0 0.0
  %1990 = vmatprep.subr.mxu0 0.0
  %1991 = vmatpush2.msra.mxu0 0.0
  %1992 = vmatprep.subr.mxu0 0.0
  %1993 = vmatpush2.msra.mxu0 0.0
  %1994 = vmatprep.subr.mxu0 0.0
  %1995 = vmatpush2.msra.mxu0 0.0
  %1996 = vmatprep.subr.mxu0 0.0
  %1997 = vmatpush2.msra.mxu0 0.0
  %1998 = vmatprep.subr.mxu0 0.0
  %1999 = vmatpush2.msra.mxu0 0.0
  %2000 = vmatprep.subr.mxu0 0.0
  %2001 = vmatpush2.msra.mxu0 0.0
  %2002 = vmatprep.subr.mxu0 0.0
  %2003 = vmatpush2.msra.mxu0 0.0
  %2004 = vmatprep.subr.mxu0 0.0
  %2005 = vmatpush2.msra.mxu0 0.0
  %2006 = vmatprep.subr.mxu0 0.0
  %2007 = vmatpush2.msra.mxu0 0.0
  %2008 = vmatprep.subr.mxu0 0.0
  %2009 = vmatpush2.msra.mxu0 0.0
  %2010 = vmatprep.subr.mxu0 0.0
  %2011 = vmatpush2.msra.mxu0 0.0
  %2012 = vmatprep.subr.mxu0 0.0
  %2013 = vmatpush2.msra.mxu0 0.0
  %2014 = vmatprep.subr.mxu0 0.0
  %2015 = vmatpush2.msra.mxu0 0.0
  %2016 = vmatprep.mubr.f32.mxu0 0.0
  %2017 = vmatmul.mubr.f32.gmra.mxu0 %v1950
  %v2018 = vpop.f32.mrf.mxu0
  %v2019 = vadd.f32 0.0, %v2018
  %v2020 = vpop.f32.mrf.mxu0
  %v2021 = vadd.f32 0.0, %v2020
  %2022 = vdwg.mxu0
  %2023 = vmatprep.subr.mxu0 0.0
  %2024 = vmatpush1.msra.mxu0 0.0
  %2025 = vmatprep.subr.mxu0 0.0
  %2026 = vmatpush1.msra.mxu0 0.0
  %2027 = vmatprep.subr.mxu0 0.0
  %2028 = vmatpush1.msra.mxu0 0.0
  %2029 = vmatprep.subr.mxu0 0.0
  %2030 = vmatpush1.msra.mxu0 0.0
  %2031 = vmatprep.subr.mxu0 0.0
  %2032 = vmatpush1.msra.mxu0 0.0
  %2033 = vmatprep.subr.mxu0 0.0
  %2034 = vmatpush1.msra.mxu0 0.0
  %2035 = vmatprep.subr.mxu0 0.0
  %2036 = vmatpush1.msra.mxu0 0.0
  %2037 = vmatprep.subr.mxu0 0.0
  %2038 = vmatpush1.msra.mxu0 0.0
  %2039 = vmatprep.subr.mxu0 0.0
  %2040 = vmatpush1.msra.mxu0 0.0
  %2041 = vmatprep.subr.mxu0 0.0
  %2042 = vmatpush1.msra.mxu0 0.0
  %2043 = vmatprep.subr.mxu0 0.0
  %2044 = vmatpush1.msra.mxu0 0.0
  %2045 = vmatprep.subr.mxu0 0.0
  %2046 = vmatpush1.msra.mxu0 0.0
  %2047 = vmatprep.subr.mxu0 %v1838
  %2048 = vmatpush1.msra.mxu0 %v1837
  %2049 = vmatprep.subr.mxu0 %v1830
  %2050 = vmatpush1.msra.mxu0 %v1829
  %2051 = vmatprep.subr.mxu0 %v1822
  %2052 = vmatpush1.msra.mxu0 %v1821
  %2053 = vmatprep.subr.mxu0 %v1814
  %2054 = vmatpush1.msra.mxu0 %v1813
  %2055 = vmatprep.subr.mxu0 0.0
  %2056 = vmatpush2.msra.mxu0 0.0
  %2057 = vmatprep.subr.mxu0 0.0
  %2058 = vmatpush2.msra.mxu0 0.0
  %2059 = vmatprep.subr.mxu0 0.0
  %2060 = vmatpush2.msra.mxu0 0.0
  %2061 = vmatprep.subr.mxu0 0.0
  %2062 = vmatpush2.msra.mxu0 0.0
  %2063 = vmatprep.subr.mxu0 0.0
  %2064 = vmatpush2.msra.mxu0 0.0
  %2065 = vmatprep.subr.mxu0 0.0
  %2066 = vmatpush2.msra.mxu0 0.0
  %2067 = vmatprep.subr.mxu0 0.0
  %2068 = vmatpush2.msra.mxu0 0.0
  %2069 = vmatprep.subr.mxu0 0.0
  %2070 = vmatpush2.msra.mxu0 0.0
  %2071 = vmatprep.subr.mxu0 0.0
  %2072 = vmatpush2.msra.mxu0 0.0
  %2073 = vmatprep.subr.mxu0 0.0
  %2074 = vmatpush2.msra.mxu0 0.0
  %2075 = vmatprep.subr.mxu0 0.0
  %2076 = vmatpush2.msra.mxu0 0.0
  %2077 = vmatprep.subr.mxu0 0.0
  %2078 = vmatpush2.msra.mxu0 0.0
  %2079 = vmatprep.subr.mxu0 0.0
  %2080 = vmatpush2.msra.mxu0 0.0
  %2081 = vmatprep.subr.mxu0 0.0
  %2082 = vmatpush2.msra.mxu0 0.0
  %2083 = vmatprep.subr.mxu0 0.0
  %2084 = vmatpush2.msra.mxu0 0.0
  %2085 = vmatprep.subr.mxu0 0.0
  %2086 = vmatpush2.msra.mxu0 0.0
  %2087 = vmatprep.mubr.f32.mxu0 0.0
  %2088 = vmatmul.mubr.f32.gmra.mxu0 %v1950
  %v2089 = vpop.f32.mrf.mxu0
  %v2090 = vadd.f32 0.0, %v2089
  %v2091 = vpop.f32.mrf.mxu0
  %v2092 = vadd.f32 0.0, %v2091
  %2093 = vdwg.mxu0
  %2094 = vmatprep.subr.mxu0 0.0
  %2095 = vmatpush1.msra.mxu0 0.0
  %2096 = vmatprep.subr.mxu0 0.0
  %2097 = vmatpush1.msra.mxu0 0.0
  %2098 = vmatprep.subr.mxu0 0.0
  %2099 = vmatpush1.msra.mxu0 0.0
  %2100 = vmatprep.subr.mxu0 0.0
  %2101 = vmatpush1.msra.mxu0 0.0
  %2102 = vmatprep.subr.mxu0 0.0
  %2103 = vmatpush1.msra.mxu0 0.0
  %2104 = vmatprep.subr.mxu0 0.0
  %2105 = vmatpush1.msra.mxu0 0.0
  %2106 = vmatprep.subr.mxu0 0.0
  %2107 = vmatpush1.msra.mxu0 0.0
  %2108 = vmatprep.subr.mxu0 0.0
  %2109 = vmatpush1.msra.mxu0 0.0
  %2110 = vmatprep.subr.mxu0 0.0
  %2111 = vmatpush1.msra.mxu0 0.0
  %2112 = vmatprep.subr.mxu0 0.0
  %2113 = vmatpush1.msra.mxu0 0.0
  %2114 = vmatprep.subr.mxu0 0.0
  %2115 = vmatpush1.msra.mxu0 0.0
  %2116 = vmatprep.subr.mxu0 0.0
  %2117 = vmatpush1.msra.mxu0 0.0
  %2118 = vmatprep.subr.mxu0 %v1840
  %2119 = vmatpush1.msra.mxu0 %v1839
  %2120 = vmatprep.subr.mxu0 %v1832
  %2121 = vmatpush1.msra.mxu0 %v1831
  %2122 = vmatprep.subr.mxu0 %v1824
  %2123 = vmatpush1.msra.mxu0 %v1823
  %2124 = vmatprep.subr.mxu0 %v1816
  %2125 = vmatpush1.msra.mxu0 %v1815
  %2126 = vmatprep.subr.mxu0 0.0
  %2127 = vmatpush2.msra.mxu0 0.0
  %2128 = vmatprep.subr.mxu0 0.0
  %2129 = vmatpush2.msra.mxu0 0.0
  %2130 = vmatprep.subr.mxu0 0.0
  %2131 = vmatpush2.msra.mxu0 0.0
  %2132 = vmatprep.subr.mxu0 0.0
  %2133 = vmatpush2.msra.mxu0 0.0
  %2134 = vmatprep.subr.mxu0 0.0
  %2135 = vmatpush2.msra.mxu0 0.0
  %2136 = vmatprep.subr.mxu0 0.0
  %2137 = vmatpush2.msra.mxu0 0.0
  %2138 = vmatprep.subr.mxu0 0.0
  %2139 = vmatpush2.msra.mxu0 0.0
  %2140 = vmatprep.subr.mxu0 0.0
  %2141 = vmatpush2.msra.mxu0 0.0
  %2142 = vmatprep.subr.mxu0 0.0
  %2143 = vmatpush2.msra.mxu0 0.0
  %2144 = vmatprep.subr.mxu0 0.0
  %2145 = vmatpush2.msra.mxu0 0.0
  %2146 = vmatprep.subr.mxu0 0.0
  %2147 = vmatpush2.msra.mxu0 0.0
  %2148 = vmatprep.subr.mxu0 0.0
  %2149 = vmatpush2.msra.mxu0 0.0
  %2150 = vmatprep.subr.mxu0 0.0
  %2151 = vmatpush2.msra.mxu0 0.0
  %2152 = vmatprep.subr.mxu0 0.0
  %2153 = vmatpush2.msra.mxu0 0.0
  %2154 = vmatprep.subr.mxu0 0.0
  %2155 = vmatpush2.msra.mxu0 0.0
  %2156 = vmatprep.subr.mxu0 0.0
  %2157 = vmatpush2.msra.mxu0 0.0
  %2158 = vmatprep.mubr.f32.mxu0 0.0
  %2159 = vmatmul.mubr.f32.gmra.mxu0 %v1950
  %v2160 = vpop.f32.mrf.mxu0
  %v2161 = vadd.f32 0.0, %v2160
  %v2162 = vpop.f32.mrf.mxu0
  %v2163 = vadd.f32 0.0, %v2162
  %2164 = vdwg.mxu0
  %2165 = vmatprep.subr.mxu0 0.0
  %2166 = vmatpush1.msra.mxu0 0.0
  %2167 = vmatprep.subr.mxu0 0.0
  %2168 = vmatpush1.msra.mxu0 0.0
  %2169 = vmatprep.subr.mxu0 0.0
  %2170 = vmatpush1.msra.mxu0 0.0
  %2171 = vmatprep.subr.mxu0 0.0
  %2172 = vmatpush1.msra.mxu0 0.0
  %2173 = vmatprep.subr.mxu0 0.0
  %2174 = vmatpush1.msra.mxu0 0.0
  %2175 = vmatprep.subr.mxu0 0.0
  %2176 = vmatpush1.msra.mxu0 0.0
  %2177 = vmatprep.subr.mxu0 0.0
  %2178 = vmatpush1.msra.mxu0 0.0
  %2179 = vmatprep.subr.mxu0 0.0
  %2180 = vmatpush1.msra.mxu0 0.0
  %2181 = vmatprep.subr.mxu0 0.0
  %2182 = vmatpush1.msra.mxu0 0.0
  %2183 = vmatprep.subr.mxu0 0.0
  %2184 = vmatpush1.msra.mxu0 0.0
  %2185 = vmatprep.subr.mxu0 0.0
  %2186 = vmatpush1.msra.mxu0 0.0
  %2187 = vmatprep.subr.mxu0 0.0
  %2188 = vmatpush1.msra.mxu0 0.0
  %2189 = vmatprep.subr.mxu0 %v1842
  %2190 = vmatpush1.msra.mxu0 %v1841
  %2191 = vmatprep.subr.mxu0 %v1834
  %2192 = vmatpush1.msra.mxu0 %v1833
  %2193 = vmatprep.subr.mxu0 %v1826
  %2194 = vmatpush1.msra.mxu0 %v1825
  %2195 = vmatprep.subr.mxu0 %v1818
  %2196 = vmatpush1.msra.mxu0 %v1817
  %2197 = vmatprep.subr.mxu0 0.0
  %2198 = vmatpush2.msra.mxu0 0.0
  %2199 = vmatprep.subr.mxu0 0.0
  %2200 = vmatpush2.msra.mxu0 0.0
  %2201 = vmatprep.subr.mxu0 0.0
  %2202 = vmatpush2.msra.mxu0 0.0
  %2203 = vmatprep.subr.mxu0 0.0
  %2204 = vmatpush2.msra.mxu0 0.0
  %2205 = vmatprep.subr.mxu0 0.0
  %2206 = vmatpush2.msra.mxu0 0.0
  %2207 = vmatprep.subr.mxu0 0.0
  %2208 = vmatpush2.msra.mxu0 0.0
  %2209 = vmatprep.subr.mxu0 0.0
  %2210 = vmatpush2.msra.mxu0 0.0
  %2211 = vmatprep.subr.mxu0 0.0
  %2212 = vmatpush2.msra.mxu0 0.0
  %2213 = vmatprep.subr.mxu0 0.0
  %2214 = vmatpush2.msra.mxu0 0.0
  %2215 = vmatprep.subr.mxu0 0.0
  %2216 = vmatpush2.msra.mxu0 0.0
  %2217 = vmatprep.subr.mxu0 0.0
  %2218 = vmatpush2.msra.mxu0 0.0
  %2219 = vmatprep.subr.mxu0 0.0
  %2220 = vmatpush2.msra.mxu0 0.0
  %2221 = vmatprep.subr.mxu0 0.0
  %2222 = vmatpush2.msra.mxu0 0.0
  %2223 = vmatprep.subr.mxu0 0.0
  %2224 = vmatpush2.msra.mxu0 0.0
  %2225 = vmatprep.subr.mxu0 0.0
  %2226 = vmatpush2.msra.mxu0 0.0
  %2227 = vmatprep.subr.mxu0 0.0
  %2228 = vmatpush2.msra.mxu0 0.0
  %2229 = vmatprep.mubr.f32.mxu0 0.0
  %2230 = vmatmul.mubr.f32.gmra.mxu0 %v1950
  %v2231 = vpop.f32.mrf.mxu0
  %v2232 = vadd.f32 0.0, %v2231
  %v2233 = vpop.f32.mrf.mxu0
  %v2234 = vadd.f32 0.0, %v2233
  %2235 = vdwg.mxu0
  %2237 = vrot.lane.b32.xlu0 %v1724, 32
  %v2238 = vpop.permute.xlu0 %2237
  %v2239 = vsel %vm637, %v2238, 0
  %2241 = vmatprep.subr.mxu0 0.0
  %2242 = vmatpush1.msra.mxu0 0.0
  %2243 = vmatprep.subr.mxu0 0.0
  %2244 = vmatpush1.msra.mxu0 0.0
  %2245 = vmatprep.subr.mxu0 0.0
  %2246 = vmatpush1.msra.mxu0 0.0
  %2247 = vmatprep.subr.mxu0 0.0
  %2248 = vmatpush1.msra.mxu0 0.0
  %2249 = vmatprep.subr.mxu0 0.0
  %2250 = vmatpush1.msra.mxu0 0.0
  %2251 = vmatprep.subr.mxu0 0.0
  %2252 = vmatpush1.msra.mxu0 0.0
  %2253 = vmatprep.subr.mxu0 0.0
  %2254 = vmatpush1.msra.mxu0 0.0
  %2255 = vmatprep.subr.mxu0 0.0
  %2256 = vmatpush1.msra.mxu0 0.0
  %2257 = vmatprep.subr.mxu0 0.0
  %2258 = vmatpush1.msra.mxu0 0.0
  %2259 = vmatprep.subr.mxu0 0.0
  %2260 = vmatpush1.msra.mxu0 0.0
  %2261 = vmatprep.subr.mxu0 0.0
  %2262 = vmatpush1.msra.mxu0 0.0
  %2263 = vmatprep.subr.mxu0 0.0
  %2264 = vmatpush1.msra.mxu0 0.0
  %2265 = vmatprep.subr.mxu0 %v1940
  %2266 = vmatpush1.msra.mxu0 %v1939
  %2267 = vmatprep.subr.mxu0 %v1932
  %2268 = vmatpush1.msra.mxu0 %v1931
  %2269 = vmatprep.subr.mxu0 %v1924
  %2270 = vmatpush1.msra.mxu0 %v1923
  %2271 = vmatprep.subr.mxu0 %v1916
  %2272 = vmatpush1.msra.mxu0 %v1915
  %2273 = vmatprep.subr.mxu0 0.0
  %2274 = vmatpush2.msra.mxu0 0.0
  %2275 = vmatprep.subr.mxu0 0.0
  %2276 = vmatpush2.msra.mxu0 0.0
  %2277 = vmatprep.subr.mxu0 0.0
  %2278 = vmatpush2.msra.mxu0 0.0
  %2279 = vmatprep.subr.mxu0 0.0
  %2280 = vmatpush2.msra.mxu0 0.0
  %2281 = vmatprep.subr.mxu0 0.0
  %2282 = vmatpush2.msra.mxu0 0.0
  %2283 = vmatprep.subr.mxu0 0.0
  %2284 = vmatpush2.msra.mxu0 0.0
  %2285 = vmatprep.subr.mxu0 0.0
  %2286 = vmatpush2.msra.mxu0 0.0
  %2287 = vmatprep.subr.mxu0 0.0
  %2288 = vmatpush2.msra.mxu0 0.0
  %2289 = vmatprep.subr.mxu0 0.0
  %2290 = vmatpush2.msra.mxu0 0.0
  %2291 = vmatprep.subr.mxu0 0.0
  %2292 = vmatpush2.msra.mxu0 0.0
  %2293 = vmatprep.subr.mxu0 0.0
  %2294 = vmatpush2.msra.mxu0 0.0
  %2295 = vmatprep.subr.mxu0 0.0
  %2296 = vmatpush2.msra.mxu0 0.0
  %2297 = vmatprep.subr.mxu0 0.0
  %2298 = vmatpush2.msra.mxu0 0.0
  %2299 = vmatprep.subr.mxu0 0.0
  %2300 = vmatpush2.msra.mxu0 0.0
  %2301 = vmatprep.subr.mxu0 0.0
  %2302 = vmatpush2.msra.mxu0 0.0
  %2303 = vmatprep.subr.mxu0 0.0
  %2304 = vmatpush2.msra.mxu0 0.0
  %2305 = vmatprep.mubr.f32.mxu0 0.0
  %2306 = vmatmul.mubr.f32.gmra.mxu0 %v2239
  %v2307 = vpop.f32.mrf.mxu0
  %v2308 = vadd.f32 0.0, %v2307
  %v2309 = vpop.f32.mrf.mxu0
  %v2310 = vadd.f32 0.0, %v2309
  %2311 = vdwg.mxu0
  %2312 = vmatprep.subr.mxu0 0.0
  %2313 = vmatpush1.msra.mxu0 0.0
  %2314 = vmatprep.subr.mxu0 0.0
  %2315 = vmatpush1.msra.mxu0 0.0
  %2316 = vmatprep.subr.mxu0 0.0
  %2317 = vmatpush1.msra.mxu0 0.0
  %2318 = vmatprep.subr.mxu0 0.0
  %2319 = vmatpush1.msra.mxu0 0.0
  %2320 = vmatprep.subr.mxu0 0.0
  %2321 = vmatpush1.msra.mxu0 0.0
  %2322 = vmatprep.subr.mxu0 0.0
  %2323 = vmatpush1.msra.mxu0 0.0
  %2324 = vmatprep.subr.mxu0 0.0
  %2325 = vmatpush1.msra.mxu0 0.0
  %2326 = vmatprep.subr.mxu0 0.0
  %2327 = vmatpush1.msra.mxu0 0.0
  %2328 = vmatprep.subr.mxu0 0.0
  %2329 = vmatpush1.msra.mxu0 0.0
  %2330 = vmatprep.subr.mxu0 0.0
  %2331 = vmatpush1.msra.mxu0 0.0
  %2332 = vmatprep.subr.mxu0 0.0
  %2333 = vmatpush1.msra.mxu0 0.0
  %2334 = vmatprep.subr.mxu0 0.0
  %2335 = vmatpush1.msra.mxu0 0.0
  %2336 = vmatprep.subr.mxu0 %v1942
  %2337 = vmatpush1.msra.mxu0 %v1941
  %2338 = vmatprep.subr.mxu0 %v1934
  %2339 = vmatpush1.msra.mxu0 %v1933
  %2340 = vmatprep.subr.mxu0 %v1926
  %2341 = vmatpush1.msra.mxu0 %v1925
  %2342 = vmatprep.subr.mxu0 %v1918
  %2343 = vmatpush1.msra.mxu0 %v1917
  %2344 = vmatprep.subr.mxu0 0.0
  %2345 = vmatpush2.msra.mxu0 0.0
  %2346 = vmatprep.subr.mxu0 0.0
  %2347 = vmatpush2.msra.mxu0 0.0
  %2348 = vmatprep.subr.mxu0 0.0
  %2349 = vmatpush2.msra.mxu0 0.0
  %2350 = vmatprep.subr.mxu0 0.0
  %2351 = vmatpush2.msra.mxu0 0.0
  %2352 = vmatprep.subr.mxu0 0.0
  %2353 = vmatpush2.msra.mxu0 0.0
  %2354 = vmatprep.subr.mxu0 0.0
  %2355 = vmatpush2.msra.mxu0 0.0
  %2356 = vmatprep.subr.mxu0 0.0
  %2357 = vmatpush2.msra.mxu0 0.0
  %2358 = vmatprep.subr.mxu0 0.0
  %2359 = vmatpush2.msra.mxu0 0.0
  %2360 = vmatprep.subr.mxu0 0.0
  %2361 = vmatpush2.msra.mxu0 0.0
  %2362 = vmatprep.subr.mxu0 0.0
  %2363 = vmatpush2.msra.mxu0 0.0
  %2364 = vmatprep.subr.mxu0 0.0
  %2365 = vmatpush2.msra.mxu0 0.0
  %2366 = vmatprep.subr.mxu0 0.0
  %2367 = vmatpush2.msra.mxu0 0.0
  %2368 = vmatprep.subr.mxu0 0.0
  %2369 = vmatpush2.msra.mxu0 0.0
  %2370 = vmatprep.subr.mxu0 0.0
  %2371 = vmatpush2.msra.mxu0 0.0
  %2372 = vmatprep.subr.mxu0 0.0
  %2373 = vmatpush2.msra.mxu0 0.0
  %2374 = vmatprep.subr.mxu0 0.0
  %2375 = vmatpush2.msra.mxu0 0.0
  %2376 = vmatprep.mubr.f32.mxu0 0.0
  %2377 = vmatmul.mubr.f32.gmra.mxu0 %v2239
  %v2378 = vpop.f32.mrf.mxu0
  %v2379 = vadd.f32 0.0, %v2378
  %v2380 = vpop.f32.mrf.mxu0
  %v2381 = vadd.f32 0.0, %v2380
  %2382 = vdwg.mxu0
  %2383 = vmatprep.subr.mxu0 0.0
  %2384 = vmatpush1.msra.mxu0 0.0
  %2385 = vmatprep.subr.mxu0 0.0
  %2386 = vmatpush1.msra.mxu0 0.0
  %2387 = vmatprep.subr.mxu0 0.0
  %2388 = vmatpush1.msra.mxu0 0.0
  %2389 = vmatprep.subr.mxu0 0.0
  %2390 = vmatpush1.msra.mxu0 0.0
  %2391 = vmatprep.subr.mxu0 0.0
  %2392 = vmatpush1.msra.mxu0 0.0
  %2393 = vmatprep.subr.mxu0 0.0
  %2394 = vmatpush1.msra.mxu0 0.0
  %2395 = vmatprep.subr.mxu0 0.0
  %2396 = vmatpush1.msra.mxu0 0.0
  %2397 = vmatprep.subr.mxu0 0.0
  %2398 = vmatpush1.msra.mxu0 0.0
  %2399 = vmatprep.subr.mxu0 0.0
  %2400 = vmatpush1.msra.mxu0 0.0
  %2401 = vmatprep.subr.mxu0 0.0
  %2402 = vmatpush1.msra.mxu0 0.0
  %2403 = vmatprep.subr.mxu0 0.0
  %2404 = vmatpush1.msra.mxu0 0.0
  %2405 = vmatprep.subr.mxu0 0.0
  %2406 = vmatpush1.msra.mxu0 0.0
  %2407 = vmatprep.subr.mxu0 %v1944
  %2408 = vmatpush1.msra.mxu0 %v1943
  %2409 = vmatprep.subr.mxu0 %v1936
  %2410 = vmatpush1.msra.mxu0 %v1935
  %2411 = vmatprep.subr.mxu0 %v1928
  %2412 = vmatpush1.msra.mxu0 %v1927
  %2413 = vmatprep.subr.mxu0 %v1920
  %2414 = vmatpush1.msra.mxu0 %v1919
  %2415 = vmatprep.subr.mxu0 0.0
  %2416 = vmatpush2.msra.mxu0 0.0
  %2417 = vmatprep.subr.mxu0 0.0
  %2418 = vmatpush2.msra.mxu0 0.0
  %2419 = vmatprep.subr.mxu0 0.0
  %2420 = vmatpush2.msra.mxu0 0.0
  %2421 = vmatprep.subr.mxu0 0.0
  %2422 = vmatpush2.msra.mxu0 0.0
  %2423 = vmatprep.subr.mxu0 0.0
  %2424 = vmatpush2.msra.mxu0 0.0
  %2425 = vmatprep.subr.mxu0 0.0
  %2426 = vmatpush2.msra.mxu0 0.0
  %2427 = vmatprep.subr.mxu0 0.0
  %2428 = vmatpush2.msra.mxu0 0.0
  %2429 = vmatprep.subr.mxu0 0.0
  %2430 = vmatpush2.msra.mxu0 0.0
  %2431 = vmatprep.subr.mxu0 0.0
  %2432 = vmatpush2.msra.mxu0 0.0
  %2433 = vmatprep.subr.mxu0 0.0
  %2434 = vmatpush2.msra.mxu0 0.0
  %2435 = vmatprep.subr.mxu0 0.0
  %2436 = vmatpush2.msra.mxu0 0.0
  %2437 = vmatprep.subr.mxu0 0.0
  %2438 = vmatpush2.msra.mxu0 0.0
  %2439 = vmatprep.subr.mxu0 0.0
  %2440 = vmatpush2.msra.mxu0 0.0
  %2441 = vmatprep.subr.mxu0 0.0
  %2442 = vmatpush2.msra.mxu0 0.0
  %2443 = vmatprep.subr.mxu0 0.0
  %2444 = vmatpush2.msra.mxu0 0.0
  %2445 = vmatprep.subr.mxu0 0.0
  %2446 = vmatpush2.msra.mxu0 0.0
  %2447 = vmatprep.mubr.f32.mxu0 0.0
  %2448 = vmatmul.mubr.f32.gmra.mxu0 %v2239
  %v2449 = vpop.f32.mrf.mxu0
  %v2450 = vadd.f32 0.0, %v2449
  %v2451 = vpop.f32.mrf.mxu0
  %v2452 = vadd.f32 0.0, %v2451
  %2453 = vdwg.mxu0
  %2454 = vmatprep.subr.mxu0 0.0
  %2455 = vmatpush1.msra.mxu0 0.0
  %2456 = vmatprep.subr.mxu0 0.0
  %2457 = vmatpush1.msra.mxu0 0.0
  %2458 = vmatprep.subr.mxu0 0.0
  %2459 = vmatpush1.msra.mxu0 0.0
  %2460 = vmatprep.subr.mxu0 0.0
  %2461 = vmatpush1.msra.mxu0 0.0
  %2462 = vmatprep.subr.mxu0 0.0
  %2463 = vmatpush1.msra.mxu0 0.0
  %2464 = vmatprep.subr.mxu0 0.0
  %2465 = vmatpush1.msra.mxu0 0.0
  %2466 = vmatprep.subr.mxu0 0.0
  %2467 = vmatpush1.msra.mxu0 0.0
  %2468 = vmatprep.subr.mxu0 0.0
  %2469 = vmatpush1.msra.mxu0 0.0
  %2470 = vmatprep.subr.mxu0 0.0
  %2471 = vmatpush1.msra.mxu0 0.0
  %2472 = vmatprep.subr.mxu0 0.0
  %2473 = vmatpush1.msra.mxu0 0.0
  %2474 = vmatprep.subr.mxu0 0.0
  %2475 = vmatpush1.msra.mxu0 0.0
  %2476 = vmatprep.subr.mxu0 0.0
  %2477 = vmatpush1.msra.mxu0 0.0
  %2478 = vmatprep.subr.mxu0 %v1946
  %2479 = vmatpush1.msra.mxu0 %v1945
  %2480 = vmatprep.subr.mxu0 %v1938
  %2481 = vmatpush1.msra.mxu0 %v1937
  %2482 = vmatprep.subr.mxu0 %v1930
  %2483 = vmatpush1.msra.mxu0 %v1929
  %2484 = vmatprep.subr.mxu0 %v1922
  %2485 = vmatpush1.msra.mxu0 %v1921
  %2486 = vmatprep.subr.mxu0 0.0
  %2487 = vmatpush2.msra.mxu0 0.0
  %2488 = vmatprep.subr.mxu0 0.0
  %2489 = vmatpush2.msra.mxu0 0.0
  %2490 = vmatprep.subr.mxu0 0.0
  %2491 = vmatpush2.msra.mxu0 0.0
  %2492 = vmatprep.subr.mxu0 0.0
  %2493 = vmatpush2.msra.mxu0 0.0
  %2494 = vmatprep.subr.mxu0 0.0
  %2495 = vmatpush2.msra.mxu0 0.0
  %2496 = vmatprep.subr.mxu0 0.0
  %2497 = vmatpush2.msra.mxu0 0.0
  %2498 = vmatprep.subr.mxu0 0.0
  %2499 = vmatpush2.msra.mxu0 0.0
  %2500 = vmatprep.subr.mxu0 0.0
  %2501 = vmatpush2.msra.mxu0 0.0
  %2502 = vmatprep.subr.mxu0 0.0
  %2503 = vmatpush2.msra.mxu0 0.0
  %2504 = vmatprep.subr.mxu0 0.0
  %2505 = vmatpush2.msra.mxu0 0.0
  %2506 = vmatprep.subr.mxu0 0.0
  %2507 = vmatpush2.msra.mxu0 0.0
  %2508 = vmatprep.subr.mxu0 0.0
  %2509 = vmatpush2.msra.mxu0 0.0
  %2510 = vmatprep.subr.mxu0 0.0
  %2511 = vmatpush2.msra.mxu0 0.0
  %2512 = vmatprep.subr.mxu0 0.0
  %2513 = vmatpush2.msra.mxu0 0.0
  %2514 = vmatprep.subr.mxu0 0.0
  %2515 = vmatpush2.msra.mxu0 0.0
  %2516 = vmatprep.subr.mxu0 0.0
  %2517 = vmatpush2.msra.mxu0 0.0
  %2518 = vmatprep.mubr.f32.mxu0 0.0
  %2519 = vmatmul.mubr.f32.gmra.mxu0 %v2239
  %v2520 = vpop.f32.mrf.mxu0
  %v2521 = vadd.f32 0.0, %v2520
  %v2522 = vpop.f32.mrf.mxu0
  %v2523 = vadd.f32 0.0, %v2522
  %2524 = vdwg.mxu0
  %v2525 = vmul.f32 %v2019, %v2308
  %v2526 = vmul.f32 %v2021, %v2310
  %v2527 = vmul.f32 %v2090, %v2379
  %v2528 = vmul.f32 %v2092, %v2381
  %v2529 = vmul.f32 %v2161, %v2450
  %v2530 = vmul.f32 %v2163, %v2452
  %v2531 = vmul.f32 %v2232, %v2521
  %v2532 = vmul.f32 %v2234, %v2523
  %v2533 = vrot.slane %v2525, 4
  %v2534 = vmax.f32 %v2525, %v2533
  %v2535 = vrot.slane %v2534, 2
  %v2536 = vmax.f32 %v2534, %v2535
  %v2537 = vrot.slane %v2536, 1
  %v2538 = vmax.f32 %v2536, %v2537
  %v2539 = vrot.slane %v2526, 4
  %v2540 = vmax.f32 %v2526, %v2539
  %v2541 = vrot.slane %v2540, 2
  %v2542 = vmax.f32 %v2540, %v2541
  %v2543 = vrot.slane %v2542, 1
  %v2544 = vmax.f32 %v2542, %v2543
  %v2545 = vrot.slane %v2527, 4
  %v2546 = vmax.f32 %v2527, %v2545
  %v2547 = vrot.slane %v2546, 2
  %v2548 = vmax.f32 %v2546, %v2547
  %v2549 = vrot.slane %v2548, 1
  %v2550 = vmax.f32 %v2548, %v2549
  %v2551 = vrot.slane %v2528, 4
  %v2552 = vmax.f32 %v2528, %v2551
  %v2553 = vrot.slane %v2552, 2
  %v2554 = vmax.f32 %v2552, %v2553
  %v2555 = vrot.slane %v2554, 1
  %v2556 = vmax.f32 %v2554, %v2555
  %v2557 = vrot.slane %v2529, 4
  %v2558 = vmax.f32 %v2529, %v2557
  %v2559 = vrot.slane %v2558, 2
  %v2560 = vmax.f32 %v2558, %v2559
  %v2561 = vrot.slane %v2560, 1
  %v2562 = vmax.f32 %v2560, %v2561
  %v2563 = vrot.slane %v2530, 4
  %v2564 = vmax.f32 %v2530, %v2563
  %v2565 = vrot.slane %v2564, 2
  %v2566 = vmax.f32 %v2564, %v2565
  %v2567 = vrot.slane %v2566, 1
  %v2568 = vmax.f32 %v2566, %v2567
  %v2569 = vrot.slane %v2531, 4
  %v2570 = vmax.f32 %v2531, %v2569
  %v2571 = vrot.slane %v2570, 2
  %v2572 = vmax.f32 %v2570, %v2571
  %v2573 = vrot.slane %v2572, 1
  %v2574 = vmax.f32 %v2572, %v2573
  %v2575 = vrot.slane %v2532, 4
  %v2576 = vmax.f32 %v2532, %v2575
  %v2577 = vrot.slane %v2576, 2
  %v2578 = vmax.f32 %v2576, %v2577
  %v2579 = vrot.slane %v2578, 1
  %v2580 = vmax.f32 %v2578, %v2579
  %v2581 = vsub.f32 %v2525, %v2538
  %v2582 = vsub.f32 %v2526, %v2544
  %v2583 = vsub.f32 %v2527, %v2550
  %v2584 = vsub.f32 %v2528, %v2556
  %v2585 = vsub.f32 %v2529, %v2562
  %v2586 = vsub.f32 %v2530, %v2568
  %v2587 = vsub.f32 %v2531, %v2574
  %v2588 = vsub.f32 %v2532, %v2580
  %v2589 = vmul.f32 %v2581, 1.442695
  %v2590 = vpow.pop %v2589
  %v2591 = vmul.f32 %v2582, 1.442695
  %v2592 = vpow.pop %v2591
  %v2593 = vmul.f32 %v2583, 1.442695
  %v2594 = vpow.pop %v2593
  %v2595 = vmul.f32 %v2584, 1.442695
  %v2596 = vpow.pop %v2595
  %v2597 = vmul.f32 %v2585, 1.442695
  %v2598 = vpow.pop %v2597
  %v2599 = vmul.f32 %v2586, 1.442695
  %v2600 = vpow.pop %v2599
  %v2601 = vmul.f32 %v2587, 1.442695
  %v2602 = vpow.pop %v2601
  %v2603 = vmul.f32 %v2588, 1.442695
  %v2604 = vpow.pop %v2603
  %v2605 = vrot.slane %v2590, 4
  %v2606 = vadd.f32 %v2590, %v2605
  %v2607 = vrot.slane %v2606, 2
  %v2608 = vadd.f32 %v2606, %v2607
  %v2609 = vrot.slane %v2608, 1
  %v2610 = vadd.f32 %v2608, %v2609
  %v2611 = vrot.slane %v2592, 4
  %v2612 = vadd.f32 %v2592, %v2611
  %v2613 = vrot.slane %v2612, 2
  %v2614 = vadd.f32 %v2612, %v2613
  %v2615 = vrot.slane %v2614, 1
  %v2616 = vadd.f32 %v2614, %v2615
  %v2617 = vrot.slane %v2594, 4
  %v2618 = vadd.f32 %v2594, %v2617
  %v2619 = vrot.slane %v2618, 2
  %v2620 = vadd.f32 %v2618, %v2619
  %v2621 = vrot.slane %v2620, 1
  %v2622 = vadd.f32 %v2620, %v2621
  %v2623 = vrot.slane %v2596, 4
  %v2624 = vadd.f32 %v2596, %v2623
  %v2625 = vrot.slane %v2624, 2
  %v2626 = vadd.f32 %v2624, %v2625
  %v2627 = vrot.slane %v2626, 1
  %v2628 = vadd.f32 %v2626, %v2627
  %v2629 = vrot.slane %v2598, 4
  %v2630 = vadd.f32 %v2598, %v2629
  %v2631 = vrot.slane %v2630, 2
  %v2632 = vadd.f32 %v2630, %v2631
  %v2633 = vrot.slane %v2632, 1
  %v2634 = vadd.f32 %v2632, %v2633
  %v2635 = vrot.slane %v2600, 4
  %v2636 = vadd.f32 %v2600, %v2635
  %v2637 = vrot.slane %v2636, 2
  %v2638 = vadd.f32 %v2636, %v2637
  %v2639 = vrot.slane %v2638, 1
  %v2640 = vadd.f32 %v2638, %v2639
  %v2641 = vrot.slane %v2602, 4
  %v2642 = vadd.f32 %v2602, %v2641
  %v2643 = vrot.slane %v2642, 2
  %v2644 = vadd.f32 %v2642, %v2643
  %v2645 = vrot.slane %v2644, 1
  %v2646 = vadd.f32 %v2644, %v2645
  %v2647 = vrot.slane %v2604, 4
  %v2648 = vadd.f32 %v2604, %v2647
  %v2649 = vrot.slane %v2648, 2
  %v2650 = vadd.f32 %v2648, %v2649
  %v2651 = vrot.slane %v2650, 1
  %v2652 = vadd.f32 %v2650, %v2651
  %v2653 = vrcp.pop %v2610
  %v2654 = vmul.f32 1.0, %v2653
  %v2655 = vrcp.pop %v2616
  %v2656 = vmul.f32 1.0, %v2655
  %v2657 = vrcp.pop %v2622
  %v2658 = vmul.f32 1.0, %v2657
  %v2659 = vrcp.pop %v2628
  %v2660 = vmul.f32 1.0, %v2659
  %v2661 = vrcp.pop %v2634
  %v2662 = vmul.f32 1.0, %v2661
  %v2663 = vrcp.pop %v2640
  %v2664 = vmul.f32 1.0, %v2663
  %v2665 = vrcp.pop %v2646
  %v2666 = vmul.f32 1.0, %v2665
  %v2667 = vrcp.pop %v2652
  %v2668 = vmul.f32 1.0, %v2667
  %v2669 = vmul.f32 %v2590, %v2654
  %v2670 = vmul.f32 %v2592, %v2656
  %v2671 = vmul.f32 %v2594, %v2658
  %v2672 = vmul.f32 %v2596, %v2660
  %v2673 = vmul.f32 %v2598, %v2662
  %v2674 = vmul.f32 %v2600, %v2664
  %v2675 = vmul.f32 %v2602, %v2666
  %v2676 = vmul.f32 %v2604, %v2668
  %v2677 = vmul.f32 %v2669, %v2525
  %v2678 = vmul.f32 %v2670, %v2526
  %v2679 = vmul.f32 %v2671, %v2527
  %v2680 = vmul.f32 %v2672, %v2528
  %v2681 = vmul.f32 %v2673, %v2529
  %v2682 = vmul.f32 %v2674, %v2530
  %v2683 = vmul.f32 %v2675, %v2531
  %v2684 = vmul.f32 %v2676, %v2532
  %v2685 = vmax.f32 %v2677, 0.0
  %v2686 = vmax.f32 %v2678, 0.0
  %v2687 = vmax.f32 %v2679, 0.0
  %v2688 = vmax.f32 %v2680, 0.0
  %v2689 = vmax.f32 %v2681, 0.0
  %v2690 = vmax.f32 %v2682, 0.0
  %v2691 = vmax.f32 %v2683, 0.0
  %v2692 = vmax.f32 %v2684, 0.0
  %s2693 = smul.u32 1024, 1
  %s2694 = sshll.u32 %s2693, 4
  %2695 = dma.done [#allocation5], %s2694
  %s2696 = smul.u32 128, 1
  %s2697 = sshll.u32 %s2696, 4
  %2698 = dma.done %s322, %s2697
  %v2699 = vld [vmem:[#allocation3] sm:$0xff]
  %v2700 = vld [vmem:[#allocation3 + $0x8] sm:$0xff]
  %v2701 = vld [vmem:[#allocation3 + $0x10] sm:$0xff]
  %v2702 = vld [vmem:[#allocation3 + $0x18] sm:$0xff]
  %v2703 = vld [vmem:[#allocation3 + $0x20] sm:$0xff]
  %v2704 = vld [vmem:[#allocation3 + $0x28] sm:$0xff]
  %v2705 = vld [vmem:[#allocation3 + $0x30] sm:$0xff]
  %v2706 = vld [vmem:[#allocation3 + $0x38] sm:$0xff]
  %v2707 = vld [vmem:[#allocation3 + $0x40] sm:$0xff]
  %v2708 = vld [vmem:[#allocation3 + $0x48] sm:$0xff]
  %v2709 = vld [vmem:[#allocation3 + $0x50] sm:$0xff]
  %v2710 = vld [vmem:[#allocation3 + $0x58] sm:$0xff]
  %v2711 = vld [vmem:[#allocation3 + $0x60] sm:$0xff]
  %v2712 = vld [vmem:[#allocation3 + $0x68] sm:$0xff]
  %v2713 = vld [vmem:[#allocation3 + $0x70] sm:$0xff]
  %v2714 = vld [vmem:[#allocation3 + $0x78] sm:$0xff]
  %v2715 = vld [vmem:[#allocation3 + $0x80] sm:$0xff]
  %v2716 = vld [vmem:[#allocation3 + $0x88] sm:$0xff]
  %v2717 = vld [vmem:[#allocation3 + $0x90] sm:$0xff]
  %v2718 = vld [vmem:[#allocation3 + $0x98] sm:$0xff]
  %v2719 = vld [vmem:[#allocation3 + $0xa0] sm:$0xff]
  %v2720 = vld [vmem:[#allocation3 + $0xa8] sm:$0xff]
  %v2721 = vld [vmem:[#allocation3 + $0xb0] sm:$0xff]
  %v2722 = vld [vmem:[#allocation3 + $0xb8] sm:$0xff]
  %v2723 = vld [vmem:[#allocation3 + $0xc0] sm:$0xff]
  %v2724 = vld [vmem:[#allocation3 + $0xc8] sm:$0xff]
  %v2725 = vld [vmem:[#allocation3 + $0xd0] sm:$0xff]
  %v2726 = vld [vmem:[#allocation3 + $0xd8] sm:$0xff]
  %v2727 = vld [vmem:[#allocation3 + $0xe0] sm:$0xff]
  %v2728 = vld [vmem:[#allocation3 + $0xe8] sm:$0xff]
  %v2729 = vld [vmem:[#allocation3 + $0xf0] sm:$0xff]
  %v2730 = vld [vmem:[#allocation3 + $0xf8] sm:$0xff]
  %v2731 = vld [vmem:[#allocation3 + $0x100] sm:$0xff]
  %v2732 = vld [vmem:[#allocation3 + $0x108] sm:$0xff]
  %v2733 = vld [vmem:[#allocation3 + $0x110] sm:$0xff]
  %v2734 = vld [vmem:[#allocation3 + $0x118] sm:$0xff]
  %v2735 = vld [vmem:[#allocation3 + $0x120] sm:$0xff]
  %v2736 = vld [vmem:[#allocation3 + $0x128] sm:$0xff]
  %v2737 = vld [vmem:[#allocation3 + $0x130] sm:$0xff]
  %v2738 = vld [vmem:[#allocation3 + $0x138] sm:$0xff]
  %v2739 = vld [vmem:[#allocation3 + $0x140] sm:$0xff]
  %v2740 = vld [vmem:[#allocation3 + $0x148] sm:$0xff]
  %v2741 = vld [vmem:[#allocation3 + $0x150] sm:$0xff]
  %v2742 = vld [vmem:[#allocation3 + $0x158] sm:$0xff]
  %v2743 = vld [vmem:[#allocation3 + $0x160] sm:$0xff]
  %v2744 = vld [vmem:[#allocation3 + $0x168] sm:$0xff]
  %v2745 = vld [vmem:[#allocation3 + $0x170] sm:$0xff]
  %v2746 = vld [vmem:[#allocation3 + $0x178] sm:$0xff]
  %v2747 = vld [vmem:[#allocation3 + $0x180] sm:$0xff]
  %v2748 = vld [vmem:[#allocation3 + $0x188] sm:$0xff]
  %v2749 = vld [vmem:[#allocation3 + $0x190] sm:$0xff]
  %v2750 = vld [vmem:[#allocation3 + $0x198] sm:$0xff]
  %v2751 = vld [vmem:[#allocation3 + $0x1a0] sm:$0xff]
  %v2752 = vld [vmem:[#allocation3 + $0x1a8] sm:$0xff]
  %v2753 = vld [vmem:[#allocation3 + $0x1b0] sm:$0xff]
  %v2754 = vld [vmem:[#allocation3 + $0x1b8] sm:$0xff]
  %v2755 = vld [vmem:[#allocation3 + $0x1c0] sm:$0xff]
  %v2756 = vld [vmem:[#allocation3 + $0x1c8] sm:$0xff]
  %v2757 = vld [vmem:[#allocation3 + $0x1d0] sm:$0xff]
  %v2758 = vld [vmem:[#allocation3 + $0x1d8] sm:$0xff]
  %v2759 = vld [vmem:[#allocation3 + $0x1e0] sm:$0xff]
  %v2760 = vld [vmem:[#allocation3 + $0x1e8] sm:$0xff]
  %v2761 = vld [vmem:[#allocation3 + $0x1f0] sm:$0xff]
  %v2762 = vld [vmem:[#allocation3 + $0x1f8] sm:$0xff]
  %v2763 = vld [vmem:[#allocation3 + $0x200] sm:$0xff]
  %v2764 = vld [vmem:[#allocation3 + $0x208] sm:$0xff]
  %v2765 = vld [vmem:[#allocation3 + $0x210] sm:$0xff]
  %v2766 = vld [vmem:[#allocation3 + $0x218] sm:$0xff]
  %v2767 = vld [vmem:[#allocation3 + $0x220] sm:$0xff]
  %v2768 = vld [vmem:[#allocation3 + $0x228] sm:$0xff]
  %v2769 = vld [vmem:[#allocation3 + $0x230] sm:$0xff]
  %v2770 = vld [vmem:[#allocation3 + $0x238] sm:$0xff]
  %v2771 = vld [vmem:[#allocation3 + $0x240] sm:$0xff]
  %v2772 = vld [vmem:[#allocation3 + $0x248] sm:$0xff]
  %v2773 = vld [vmem:[#allocation3 + $0x250] sm:$0xff]
  %v2774 = vld [vmem:[#allocation3 + $0x258] sm:$0xff]
  %v2775 = vld [vmem:[#allocation3 + $0x260] sm:$0xff]
  %v2776 = vld [vmem:[#allocation3 + $0x268] sm:$0xff]
  %v2777 = vld [vmem:[#allocation3 + $0x270] sm:$0xff]
  %v2778 = vld [vmem:[#allocation3 + $0x278] sm:$0xff]
  %v2779 = vld [vmem:[#allocation3 + $0x280] sm:$0xff]
  %v2780 = vld [vmem:[#allocation3 + $0x288] sm:$0xff]
  %v2781 = vld [vmem:[#allocation3 + $0x290] sm:$0xff]
  %v2782 = vld [vmem:[#allocation3 + $0x298] sm:$0xff]
  %v2783 = vld [vmem:[#allocation3 + $0x2a0] sm:$0xff]
  %v2784 = vld [vmem:[#allocation3 + $0x2a8] sm:$0xff]
  %v2785 = vld [vmem:[#allocation3 + $0x2b0] sm:$0xff]
  %v2786 = vld [vmem:[#allocation3 + $0x2b8] sm:$0xff]
  %v2787 = vld [vmem:[#allocation3 + $0x2c0] sm:$0xff]
  %v2788 = vld [vmem:[#allocation3 + $0x2c8] sm:$0xff]
  %v2789 = vld [vmem:[#allocation3 + $0x2d0] sm:$0xff]
  %v2790 = vld [vmem:[#allocation3 + $0x2d8] sm:$0xff]
  %v2791 = vld [vmem:[#allocation3 + $0x2e0] sm:$0xff]
  %v2792 = vld [vmem:[#allocation3 + $0x2e8] sm:$0xff]
  %v2793 = vld [vmem:[#allocation3 + $0x2f0] sm:$0xff]
  %v2794 = vld [vmem:[#allocation3 + $0x2f8] sm:$0xff]
  %v2795 = vld [vmem:[#allocation3 + $0x300] sm:$0xff]
  %v2796 = vld [vmem:[#allocation3 + $0x308] sm:$0xff]
  %v2797 = vld [vmem:[#allocation3 + $0x310] sm:$0xff]
  %v2798 = vld [vmem:[#allocation3 + $0x318] sm:$0xff]
  %v2799 = vld [vmem:[#allocation3 + $0x320] sm:$0xff]
  %v2800 = vld [vmem:[#allocation3 + $0x328] sm:$0xff]
  %v2801 = vld [vmem:[#allocation3 + $0x330] sm:$0xff]
  %v2802 = vld [vmem:[#allocation3 + $0x338] sm:$0xff]
  %v2803 = vld [vmem:[#allocation3 + $0x340] sm:$0xff]
  %v2804 = vld [vmem:[#allocation3 + $0x348] sm:$0xff]
  %v2805 = vld [vmem:[#allocation3 + $0x350] sm:$0xff]
  %v2806 = vld [vmem:[#allocation3 + $0x358] sm:$0xff]
  %v2807 = vld [vmem:[#allocation3 + $0x360] sm:$0xff]
  %v2808 = vld [vmem:[#allocation3 + $0x368] sm:$0xff]
  %v2809 = vld [vmem:[#allocation3 + $0x370] sm:$0xff]
  %v2810 = vld [vmem:[#allocation3 + $0x378] sm:$0xff]
  %v2811 = vld [vmem:[#allocation3 + $0x380] sm:$0xff]
  %v2812 = vld [vmem:[#allocation3 + $0x388] sm:$0xff]
  %v2813 = vld [vmem:[#allocation3 + $0x390] sm:$0xff]
  %v2814 = vld [vmem:[#allocation3 + $0x398] sm:$0xff]
  %v2815 = vld [vmem:[#allocation3 + $0x3a0] sm:$0xff]
  %v2816 = vld [vmem:[#allocation3 + $0x3a8] sm:$0xff]
  %v2817 = vld [vmem:[#allocation3 + $0x3b0] sm:$0xff]
  %v2818 = vld [vmem:[#allocation3 + $0x3b8] sm:$0xff]
  %v2819 = vld [vmem:[#allocation3 + $0x3c0] sm:$0xff]
  %v2820 = vld [vmem:[#allocation3 + $0x3c8] sm:$0xff]
  %v2821 = vld [vmem:[#allocation3 + $0x3d0] sm:$0xff]
  %v2822 = vld [vmem:[#allocation3 + $0x3d8] sm:$0xff]
  %v2823 = vld [vmem:[#allocation3 + $0x3e0] sm:$0xff]
  %v2824 = vld [vmem:[#allocation3 + $0x3e8] sm:$0xff]
  %v2825 = vld [vmem:[#allocation3 + $0x3f0] sm:$0xff]
  %v2826 = vld [vmem:[#allocation3 + $0x3f8] sm:$0xff]
  %v2827 = vld [vmem:[%s5] sm:$0x1]
  %v2829 = vlaneseq
  %v2830 = vshrl.u32 %v2829, 7
  %v2831 = vsub.s32 0, %v2830
  %v2832 = vrot.slane %v2827, %v2831
  %2834 = vmatprep.subr.mxu0 0.0
  %2835 = vmatpush1.msra.mxu0 %v2714
  %2836 = vmatprep.subr.mxu0 0.0
  %2837 = vmatpush1.msra.mxu0 %v2713
  %2838 = vmatprep.subr.mxu0 0.0
  %2839 = vmatpush1.msra.mxu0 %v2712
  %2840 = vmatprep.subr.mxu0 0.0
  %2841 = vmatpush1.msra.mxu0 %v2711
  %2842 = vmatprep.subr.mxu0 0.0
  %2843 = vmatpush1.msra.mxu0 %v2710
  %2844 = vmatprep.subr.mxu0 0.0
  %2845 = vmatpush1.msra.mxu0 %v2709
  %2846 = vmatprep.subr.mxu0 0.0
  %2847 = vmatpush1.msra.mxu0 %v2708
  %2848 = vmatprep.subr.mxu0 0.0
  %2849 = vmatpush1.msra.mxu0 %v2707
  %2850 = vmatprep.subr.mxu0 0.0
  %2851 = vmatpush1.msra.mxu0 %v2706
  %2852 = vmatprep.subr.mxu0 0.0
  %2853 = vmatpush1.msra.mxu0 %v2705
  %2854 = vmatprep.subr.mxu0 0.0
  %2855 = vmatpush1.msra.mxu0 %v2704
  %2856 = vmatprep.subr.mxu0 0.0
  %2857 = vmatpush1.msra.mxu0 %v2703
  %2858 = vmatprep.subr.mxu0 0.0
  %2859 = vmatpush1.msra.mxu0 %v2702
  %2860 = vmatprep.subr.mxu0 0.0
  %2861 = vmatpush1.msra.mxu0 %v2701
  %2862 = vmatprep.subr.mxu0 0.0
  %2863 = vmatpush1.msra.mxu0 %v2700
  %2864 = vmatprep.subr.mxu0 0.0
  %2865 = vmatpush1.msra.mxu0 %v2699
  %2866 = vmatprep.subr.mxu0 0.0
  %2867 = vmatpush2.msra.mxu0 %v2730
  %2868 = vmatprep.subr.mxu0 0.0
  %2869 = vmatpush2.msra.mxu0 %v2729
  %2870 = vmatprep.subr.mxu0 0.0
  %2871 = vmatpush2.msra.mxu0 %v2728
  %2872 = vmatprep.subr.mxu0 0.0
  %2873 = vmatpush2.msra.mxu0 %v2727
  %2874 = vmatprep.subr.mxu0 0.0
  %2875 = vmatpush2.msra.mxu0 %v2726
  %2876 = vmatprep.subr.mxu0 0.0
  %2877 = vmatpush2.msra.mxu0 %v2725
  %2878 = vmatprep.subr.mxu0 0.0
  %2879 = vmatpush2.msra.mxu0 %v2724
  %2880 = vmatprep.subr.mxu0 0.0
  %2881 = vmatpush2.msra.mxu0 %v2723
  %2882 = vmatprep.subr.mxu0 0.0
  %2883 = vmatpush2.msra.mxu0 %v2722
  %2884 = vmatprep.subr.mxu0 0.0
  %2885 = vmatpush2.msra.mxu0 %v2721
  %2886 = vmatprep.subr.mxu0 0.0
  %2887 = vmatpush2.msra.mxu0 %v2720
  %2888 = vmatprep.subr.mxu0 0.0
  %2889 = vmatpush2.msra.mxu0 %v2719
  %2890 = vmatprep.subr.mxu0 0.0
  %2891 = vmatpush2.msra.mxu0 %v2718
  %2892 = vmatprep.subr.mxu0 0.0
  %2893 = vmatpush2.msra.mxu0 %v2717
  %2894 = vmatprep.subr.mxu0 0.0
  %2895 = vmatpush2.msra.mxu0 %v2716
  %2896 = vmatprep.subr.mxu0 0.0
  %2897 = vmatpush2.msra.mxu0 %v2715
  %2898 = vmatprep.mubr.f32.mxu0 %v2686
  %2899 = vmatmul.mubr.f32.gmra.mxu0 %v2685
  %v2900 = vpop.f32.mrf.mxu0
  %v2901 = vadd.f32 %v2832, %v2900
  %v2902 = vpop.f32.mrf.mxu0
  %2903 = vdwg.mxu0
  %2904 = vmatprep.subr.mxu0 0.0
  %2905 = vmatpush1.msra.mxu0 %v2746
  %2906 = vmatprep.subr.mxu0 0.0
  %2907 = vmatpush1.msra.mxu0 %v2745
  %2908 = vmatprep.subr.mxu0 0.0
  %2909 = vmatpush1.msra.mxu0 %v2744
  %2910 = vmatprep.subr.mxu0 0.0
  %2911 = vmatpush1.msra.mxu0 %v2743
  %2912 = vmatprep.subr.mxu0 0.0
  %2913 = vmatpush1.msra.mxu0 %v2742
  %2914 = vmatprep.subr.mxu0 0.0
  %2915 = vmatpush1.msra.mxu0 %v2741
  %2916 = vmatprep.subr.mxu0 0.0
  %2917 = vmatpush1.msra.mxu0 %v2740
  %2918 = vmatprep.subr.mxu0 0.0
  %2919 = vmatpush1.msra.mxu0 %v2739
  %2920 = vmatprep.subr.mxu0 0.0
  %2921 = vmatpush1.msra.mxu0 %v2738
  %2922 = vmatprep.subr.mxu0 0.0
  %2923 = vmatpush1.msra.mxu0 %v2737
  %2924 = vmatprep.subr.mxu0 0.0
  %2925 = vmatpush1.msra.mxu0 %v2736
  %2926 = vmatprep.subr.mxu0 0.0
  %2927 = vmatpush1.msra.mxu0 %v2735
  %2928 = vmatprep.subr.mxu0 0.0
  %2929 = vmatpush1.msra.mxu0 %v2734
  %2930 = vmatprep.subr.mxu0 0.0
  %2931 = vmatpush1.msra.mxu0 %v2733
  %2932 = vmatprep.subr.mxu0 0.0
  %2933 = vmatpush1.msra.mxu0 %v2732
  %2934 = vmatprep.subr.mxu0 0.0
  %2935 = vmatpush1.msra.mxu0 %v2731
  %2936 = vmatprep.subr.mxu0 0.0
  %2937 = vmatpush2.msra.mxu0 %v2762
  %2938 = vmatprep.subr.mxu0 0.0
  %2939 = vmatpush2.msra.mxu0 %v2761
  %2940 = vmatprep.subr.mxu0 0.0
  %2941 = vmatpush2.msra.mxu0 %v2760
  %2942 = vmatprep.subr.mxu0 0.0
  %2943 = vmatpush2.msra.mxu0 %v2759
  %2944 = vmatprep.subr.mxu0 0.0
  %2945 = vmatpush2.msra.mxu0 %v2758
  %2946 = vmatprep.subr.mxu0 0.0
  %2947 = vmatpush2.msra.mxu0 %v2757
  %2948 = vmatprep.subr.mxu0 0.0
  %2949 = vmatpush2.msra.mxu0 %v2756
  %2950 = vmatprep.subr.mxu0 0.0
  %2951 = vmatpush2.msra.mxu0 %v2755
  %2952 = vmatprep.subr.mxu0 0.0
  %2953 = vmatpush2.msra.mxu0 %v2754
  %2954 = vmatprep.subr.mxu0 0.0
  %2955 = vmatpush2.msra.mxu0 %v2753
  %2956 = vmatprep.subr.mxu0 0.0
  %2957 = vmatpush2.msra.mxu0 %v2752
  %2958 = vmatprep.subr.mxu0 0.0
  %2959 = vmatpush2.msra.mxu0 %v2751
  %2960 = vmatprep.subr.mxu0 0.0
  %2961 = vmatpush2.msra.mxu0 %v2750
  %2962 = vmatprep.subr.mxu0 0.0
  %2963 = vmatpush2.msra.mxu0 %v2749
  %2964 = vmatprep.subr.mxu0 0.0
  %2965 = vmatpush2.msra.mxu0 %v2748
  %2966 = vmatprep.subr.mxu0 0.0
  %2967 = vmatpush2.msra.mxu0 %v2747
  %2968 = vmatprep.mubr.f32.mxu0 %v2688
  %2969 = vmatmul.mubr.f32.gmra.mxu0 %v2687
  %v2970 = vpop.f32.mrf.mxu0
  %v2971 = vadd.f32 %v2901, %v2970
  %v2972 = vpop.f32.mrf.mxu0
  %2973 = vdwg.mxu0
  %2974 = vmatprep.subr.mxu0 0.0
  %2975 = vmatpush1.msra.mxu0 %v2778
  %2976 = vmatprep.subr.mxu0 0.0
  %2977 = vmatpush1.msra.mxu0 %v2777
  %2978 = vmatprep.subr.mxu0 0.0
  %2979 = vmatpush1.msra.mxu0 %v2776
  %2980 = vmatprep.subr.mxu0 0.0
  %2981 = vmatpush1.msra.mxu0 %v2775
  %2982 = vmatprep.subr.mxu0 0.0
  %2983 = vmatpush1.msra.mxu0 %v2774
  %2984 = vmatprep.subr.mxu0 0.0
  %2985 = vmatpush1.msra.mxu0 %v2773
  %2986 = vmatprep.subr.mxu0 0.0
  %2987 = vmatpush1.msra.mxu0 %v2772
  %2988 = vmatprep.subr.mxu0 0.0
  %2989 = vmatpush1.msra.mxu0 %v2771
  %2990 = vmatprep.subr.mxu0 0.0
  %2991 = vmatpush1.msra.mxu0 %v2770
  %2992 = vmatprep.subr.mxu0 0.0
  %2993 = vmatpush1.msra.mxu0 %v2769
  %2994 = vmatprep.subr.mxu0 0.0
  %2995 = vmatpush1.msra.mxu0 %v2768
  %2996 = vmatprep.subr.mxu0 0.0
  %2997 = vmatpush1.msra.mxu0 %v2767
  %2998 = vmatprep.subr.mxu0 0.0
  %2999 = vmatpush1.msra.mxu0 %v2766
  %3000 = vmatprep.subr.mxu0 0.0
  %3001 = vmatpush1.msra.mxu0 %v2765
  %3002 = vmatprep.subr.mxu0 0.0
  %3003 = vmatpush1.msra.mxu0 %v2764
  %3004 = vmatprep.subr.mxu0 0.0
  %3005 = vmatpush1.msra.mxu0 %v2763
  %3006 = vmatprep.subr.mxu0 0.0
  %3007 = vmatpush2.msra.mxu0 %v2794
  %3008 = vmatprep.subr.mxu0 0.0
  %3009 = vmatpush2.msra.mxu0 %v2793
  %3010 = vmatprep.subr.mxu0 0.0
  %3011 = vmatpush2.msra.mxu0 %v2792
  %3012 = vmatprep.subr.mxu0 0.0
  %3013 = vmatpush2.msra.mxu0 %v2791
  %3014 = vmatprep.subr.mxu0 0.0
  %3015 = vmatpush2.msra.mxu0 %v2790
  %3016 = vmatprep.subr.mxu0 0.0
  %3017 = vmatpush2.msra.mxu0 %v2789
  %3018 = vmatprep.subr.mxu0 0.0
  %3019 = vmatpush2.msra.mxu0 %v2788
  %3020 = vmatprep.subr.mxu0 0.0
  %3021 = vmatpush2.msra.mxu0 %v2787
  %3022 = vmatprep.subr.mxu0 0.0
  %3023 = vmatpush2.msra.mxu0 %v2786
  %3024 = vmatprep.subr.mxu0 0.0
  %3025 = vmatpush2.msra.mxu0 %v2785
  %3026 = vmatprep.subr.mxu0 0.0
  %3027 = vmatpush2.msra.mxu0 %v2784
  %3028 = vmatprep.subr.mxu0 0.0
  %3029 = vmatpush2.msra.mxu0 %v2783
  %3030 = vmatprep.subr.mxu0 0.0
  %3031 = vmatpush2.msra.mxu0 %v2782
  %3032 = vmatprep.subr.mxu0 0.0
  %3033 = vmatpush2.msra.mxu0 %v2781
  %3034 = vmatprep.subr.mxu0 0.0
  %3035 = vmatpush2.msra.mxu0 %v2780
  %3036 = vmatprep.subr.mxu0 0.0
  %3037 = vmatpush2.msra.mxu0 %v2779
  %3038 = vmatprep.mubr.f32.mxu0 %v2690
  %3039 = vmatmul.mubr.f32.gmra.mxu0 %v2689
  %v3040 = vpop.f32.mrf.mxu0
  %v3041 = vadd.f32 %v2971, %v3040
  %v3042 = vpop.f32.mrf.mxu0
  %3043 = vdwg.mxu0
  %3044 = vmatprep.subr.mxu0 0.0
  %3045 = vmatpush1.msra.mxu0 %v2810
  %3046 = vmatprep.subr.mxu0 0.0
  %3047 = vmatpush1.msra.mxu0 %v2809
  %3048 = vmatprep.subr.mxu0 0.0
  %3049 = vmatpush1.msra.mxu0 %v2808
  %3050 = vmatprep.subr.mxu0 0.0
  %3051 = vmatpush1.msra.mxu0 %v2807
  %3052 = vmatprep.subr.mxu0 0.0
  %3053 = vmatpush1.msra.mxu0 %v2806
  %3054 = vmatprep.subr.mxu0 0.0
  %3055 = vmatpush1.msra.mxu0 %v2805
  %3056 = vmatprep.subr.mxu0 0.0
  %3057 = vmatpush1.msra.mxu0 %v2804
  %3058 = vmatprep.subr.mxu0 0.0
  %3059 = vmatpush1.msra.mxu0 %v2803
  %3060 = vmatprep.subr.mxu0 0.0
  %3061 = vmatpush1.msra.mxu0 %v2802
  %3062 = vmatprep.subr.mxu0 0.0
  %3063 = vmatpush1.msra.mxu0 %v2801
  %3064 = vmatprep.subr.mxu0 0.0
  %3065 = vmatpush1.msra.mxu0 %v2800
  %3066 = vmatprep.subr.mxu0 0.0
  %3067 = vmatpush1.msra.mxu0 %v2799
  %3068 = vmatprep.subr.mxu0 0.0
  %3069 = vmatpush1.msra.mxu0 %v2798
  %3070 = vmatprep.subr.mxu0 0.0
  %3071 = vmatpush1.msra.mxu0 %v2797
  %3072 = vmatprep.subr.mxu0 0.0
  %3073 = vmatpush1.msra.mxu0 %v2796
  %3074 = vmatprep.subr.mxu0 0.0
  %3075 = vmatpush1.msra.mxu0 %v2795
  %3076 = vmatprep.subr.mxu0 0.0
  %3077 = vmatpush2.msra.mxu0 %v2826
  %3078 = vmatprep.subr.mxu0 0.0
  %3079 = vmatpush2.msra.mxu0 %v2825
  %3080 = vmatprep.subr.mxu0 0.0
  %3081 = vmatpush2.msra.mxu0 %v2824
  %3082 = vmatprep.subr.mxu0 0.0
  %3083 = vmatpush2.msra.mxu0 %v2823
  %3084 = vmatprep.subr.mxu0 0.0
  %3085 = vmatpush2.msra.mxu0 %v2822
  %3086 = vmatprep.subr.mxu0 0.0
  %3087 = vmatpush2.msra.mxu0 %v2821
  %3088 = vmatprep.subr.mxu0 0.0
  %3089 = vmatpush2.msra.mxu0 %v2820
  %3090 = vmatprep.subr.mxu0 0.0
  %3091 = vmatpush2.msra.mxu0 %v2819
  %3092 = vmatprep.subr.mxu0 0.0
  %3093 = vmatpush2.msra.mxu0 %v2818
  %3094 = vmatprep.subr.mxu0 0.0
  %3095 = vmatpush2.msra.mxu0 %v2817
  %3096 = vmatprep.subr.mxu0 0.0
  %3097 = vmatpush2.msra.mxu0 %v2816
  %3098 = vmatprep.subr.mxu0 0.0
  %3099 = vmatpush2.msra.mxu0 %v2815
  %3100 = vmatprep.subr.mxu0 0.0
  %3101 = vmatpush2.msra.mxu0 %v2814
  %3102 = vmatprep.subr.mxu0 0.0
  %3103 = vmatpush2.msra.mxu0 %v2813
  %3104 = vmatprep.subr.mxu0 0.0
  %3105 = vmatpush2.msra.mxu0 %v2812
  %3106 = vmatprep.subr.mxu0 0.0
  %3107 = vmatpush2.msra.mxu0 %v2811
  %3108 = vmatprep.mubr.f32.mxu0 %v2692
  %3109 = vmatmul.mubr.f32.gmra.mxu0 %v2691
  %v3110 = vpop.f32.mrf.mxu0
  %v3111 = vadd.f32 %v3041, %v3110
  %v3112 = vpop.f32.mrf.mxu0
  %3113 = vdwg.mxu0
  %v3114 = vmax.f32 %v3111, 0.0
  %v3115 = vld [vmem:[#allocation4] sm:$0xff]
  %v3116 = vld [vmem:[#allocation4 + $0x8] sm:$0xff]
  %v3117 = vld [vmem:[#allocation4 + $0x10] sm:$0xff]
  %v3118 = vld [vmem:[#allocation4 + $0x18] sm:$0xff]
  %v3119 = vld [vmem:[#allocation4 + $0x20] sm:$0xff]
  %v3120 = vld [vmem:[#allocation4 + $0x28] sm:$0xff]
  %v3121 = vld [vmem:[#allocation4 + $0x30] sm:$0xff]
  %v3122 = vld [vmem:[#allocation4 + $0x38] sm:$0xff]
  %v3123 = vld [vmem:[#allocation4 + $0x40] sm:$0xff]
  %v3124 = vld [vmem:[#allocation4 + $0x48] sm:$0xff]
  %v3125 = vld [vmem:[#allocation4 + $0x50] sm:$0xff]
  %v3126 = vld [vmem:[#allocation4 + $0x58] sm:$0xff]
  %v3127 = vld [vmem:[#allocation4 + $0x60] sm:$0xff]
  %v3128 = vld [vmem:[#allocation4 + $0x68] sm:$0xff]
  %v3129 = vld [vmem:[#allocation4 + $0x70] sm:$0xff]
  %v3130 = vld [vmem:[#allocation4 + $0x78] sm:$0xff]
  %v3131 = vld [vmem:[%s7] sm:$0x1]
  %v3133 = vlaneseq
  %v3134 = vshrl.u32 %v3133, 7
  %v3135 = vsub.s32 0, %v3134
  %v3136 = vrot.slane %v3131, %v3135
  %3138 = vmatprep.subr.mxu0 0.0
  %3139 = vmatpush1.msra.mxu0 %v3130
  %3140 = vmatprep.subr.mxu0 0.0
  %3141 = vmatpush1.msra.mxu0 %v3129
  %3142 = vmatprep.subr.mxu0 0.0
  %3143 = vmatpush1.msra.mxu0 %v3128
  %3144 = vmatprep.subr.mxu0 0.0
  %3145 = vmatpush1.msra.mxu0 %v3127
  %3146 = vmatprep.subr.mxu0 0.0
  %3147 = vmatpush1.msra.mxu0 %v3126
  %3148 = vmatprep.subr.mxu0 0.0
  %3149 = vmatpush1.msra.mxu0 %v3125
  %3150 = vmatprep.subr.mxu0 0.0
  %3151 = vmatpush1.msra.mxu0 %v3124
  %3152 = vmatprep.subr.mxu0 0.0
  %3153 = vmatpush1.msra.mxu0 %v3123
  %3154 = vmatprep.subr.mxu0 0.0
  %3155 = vmatpush1.msra.mxu0 %v3122
  %3156 = vmatprep.subr.mxu0 0.0
  %3157 = vmatpush1.msra.mxu0 %v3121
  %3158 = vmatprep.subr.mxu0 0.0
  %3159 = vmatpush1.msra.mxu0 %v3120
  %3160 = vmatprep.subr.mxu0 0.0
  %3161 = vmatpush1.msra.mxu0 %v3119
  %3162 = vmatprep.subr.mxu0 0.0
  %3163 = vmatpush1.msra.mxu0 %v3118
  %3164 = vmatprep.subr.mxu0 0.0
  %3165 = vmatpush1.msra.mxu0 %v3117
  %3166 = vmatprep.subr.mxu0 0.0
  %3167 = vmatpush1.msra.mxu0 %v3116
  %3168 = vmatprep.subr.mxu0 0.0
  %3169 = vmatpush1.msra.mxu0 %v3115
  %3170 = vmatprep.subr.mxu0 0.0
  %3171 = vmatpush2.msra.mxu0 0.0
  %3172 = vmatprep.subr.mxu0 0.0
  %3173 = vmatpush2.msra.mxu0 0.0
  %3174 = vmatprep.subr.mxu0 0.0
  %3175 = vmatpush2.msra.mxu0 0.0
  %3176 = vmatprep.subr.mxu0 0.0
  %3177 = vmatpush2.msra.mxu0 0.0
  %3178 = vmatprep.subr.mxu0 0.0
  %3179 = vmatpush2.msra.mxu0 0.0
  %3180 = vmatprep.subr.mxu0 0.0
  %3181 = vmatpush2.msra.mxu0 0.0
  %3182 = vmatprep.subr.mxu0 0.0
  %3183 = vmatpush2.msra.mxu0 0.0
  %3184 = vmatprep.subr.mxu0 0.0
  %3185 = vmatpush2.msra.mxu0 0.0
  %3186 = vmatprep.subr.mxu0 0.0
  %3187 = vmatpush2.msra.mxu0 0.0
  %3188 = vmatprep.subr.mxu0 0.0
  %3189 = vmatpush2.msra.mxu0 0.0
  %3190 = vmatprep.subr.mxu0 0.0
  %3191 = vmatpush2.msra.mxu0 0.0
  %3192 = vmatprep.subr.mxu0 0.0
  %3193 = vmatpush2.msra.mxu0 0.0
  %3194 = vmatprep.subr.mxu0 0.0
  %3195 = vmatpush2.msra.mxu0 0.0
  %3196 = vmatprep.subr.mxu0 0.0
  %3197 = vmatpush2.msra.mxu0 0.0
  %3198 = vmatprep.subr.mxu0 0.0
  %3199 = vmatpush2.msra.mxu0 0.0
  %3200 = vmatprep.subr.mxu0 0.0
  %3201 = vmatpush2.msra.mxu0 0.0
  %3202 = vmatprep.mubr.f32.mxu0 0.0
  %3203 = vmatmul.mubr.f32.gmra.mxu0 %v3114
  %v3204 = vpop.f32.mrf.mxu0
  %v3205 = vadd.f32 %v3136, %v3204
  %v3206 = vpop.f32.mrf.mxu0
  %3207 = vdwg.mxu0
  %3208 = vst [vmem:[%s8] sm:$0xff] %v3205
  // Predicated region
  $region94: #{manhattan_lstm_forward.1} parent=0 // pred_check
    _
  $region95: #{manhattan_lstm_forward.1} parent=0 // pred_check_branch
    %3210 = sbr.rel (0) target = $region97
  $region96: #{manhattan_lstm_forward.1} parent=0 // pred_region
    _
  $region97: #{manhattan_lstm_forward.1} parent=0 // pred_fallthru
    _
  // Predicated region
  $region98: #{manhattan_lstm_forward.1} parent=0 // pred_check
    _
  $region99: #{manhattan_lstm_forward.1} parent=0 // pred_check_branch
    %3212 = sbr.rel (0) target = $region101
  $region100: #{manhattan_lstm_forward.1} parent=0 // pred_region
    _
  $region101: #{manhattan_lstm_forward.1} parent=0 // pred_fallthru
    _
  %3213 = vsyncmov [#allocation5]
  %s3214 = vpop.sfrf %3213
  %p3215 = scmp.eq.s32.totalorder %s3214, 0
  %p3216 = pneg %p3215
  %3218 = shalt.err (%p3216)
  %s3219 = scalar_lea.sflag [#allocation5], 1
  %3220 = vsyncmov %s3219
  %s3221 = vpop.sfrf %3220
  %p3222 = scmp.eq.s32.totalorder %s3221, 0
  %p3223 = pneg %p3222
  %3225 = shalt.err (%p3223)

</llo_original>
